<compile_context>
chip_gen: v7x
topology: tpu7x:2x2x1
jax: 0.10.0
libtpu: 0.0.40
codegen_flags: <defaults>
</compile_context>

<pallas_src>
import functools
import math

import jax
import jax.numpy as jnp
from jax.experimental import pallas as pl
from jax.experimental.pallas import tpu as pltpu

IN_RAW = 18      # GRU input_size
IN_PAD = 32      # feature pad (multiple of 8; << 128)
H_GRU = 32       # GRU hidden size (per direction)
H_LSTM = 64      # LSTM hidden size
LANE = 128


def _bigru_lstm_kernel(
    x_ref,                      # (T*Bc, IN_PAD)  bf16
    wgi_ref, bgi_ref,           # (IN_PAD, 256) bf16, (1, 256) f32   GRU input proj (fwd|bwd), dense gates
    whhf_ref, bhnf_ref,         # (128, 128) bf16, (1, 128) f32      fwd GRU recurrent, b_hn
    whhb_ref, bhnb_ref,         # (128, 128) bf16, (1, 128) f32      bwd GRU recurrent, b_hn
    wihlf_ref, wihlb_ref,       # (128, 256) bf16 each               LSTM input-proj halves (g-gate x2)
    whhl_ref, bl_ref,           # (128, 256) bf16, (1, 256) f32      LSTM recurrent + folded bias
    out_ref,                    # (T*Bc, 128) f32                    LSTM hidden (lanes 0:64 real)
    gi_f_ref,                   # (T*Bc, 128) f32 scratch: fwd GRU input projection
    grub_ref,                   # (T*Bc, 128) f32 scratch: bwd GRU hidden outputs
    *, T, Bc,
):
    f32 = jnp.float32
    bf16 = jnp.bfloat16
    unroll = True if T <= 16 else (2 if Bc >= 32 else 4)

    zeros = jnp.zeros((Bc, LANE), f32)
    # Hoisted once (broadcast_in_dim is not CSE'd; never re-broadcast in a loop).
    bhn_f = jnp.broadcast_to(bhnf_ref[...], (Bc, LANE)).astype(f32)
    bhn_b = jnp.broadcast_to(bhnb_ref[...], (Bc, LANE)).astype(f32)

    def gru_step(gi, gh, bhn, h):
        # Packed lanes: [0:32]=n  [32:64]=z  [64:96]=r  [96:128]=z(dup); h real in [0:32].
        rz = jax.nn.sigmoid(gi + gh)                        # r @64:96, z @32:64 & @96:128
        r_at_n = pltpu.roll(rz, shift=64, axis=1)           # r -> lanes 0:32 (64 is direction-safe)
        n = jnp.tanh(gi + r_at_n * (gh + bhn))              # n @0:32
        z_at_h = pltpu.roll(rz, shift=32, axis=1)           # a z copy -> 0:32 under either roll dir
        return n + z_at_h * (h - n)                         # (1-z)*n + z*h, valid @0:32

    # -------- Phase 1: hoisted GRU input projection + backward-direction GRU --------
    def phase1(gi_b_ref):
        gi_all = (jnp.dot(x_ref[...], wgi_ref[...], preferred_element_type=f32)
                  + bgi_ref[...])                           # (T*Bc, 256) f32
        gi_f_ref[...] = gi_all[:, :LANE]
        gi_b_ref[...] = gi_all[:, LANE:]

        whh_b = whhb_ref[...]

        def bwd_body(s, h_b):
            t = T - 1 - s
            row = pl.multiple_of(t * Bc, 8)
            gi = gi_b_ref[pl.ds(row, Bc), :]
            gh = jnp.dot(h_b.astype(bf16), whh_b, preferred_element_type=f32)
            h_new = gru_step(gi, gh, bhn_b, h_b)
            grub_ref[pl.ds(row, Bc), :] = h_new
            return h_new

        jax.lax.fori_loop(0, T, bwd_body, zeros, unroll=unroll)

    pl.run_scoped(phase1, pltpu.VMEM((T * Bc, LANE), f32))

    # -------- Phase 2: hoisted bwd-half LSTM projection + fused fwd-GRU / LSTM loop --------
    def phase2(gil_ref):
        gil_ref[...] = (jnp.dot(grub_ref[...].astype(bf16), wihlb_ref[...],
                                preferred_element_type=f32) + bl_ref[...])

        whh_f = whhf_ref[...]
        wihl_f = wihlf_ref[...]
        whh_l = whhl_ref[...]

        def fwd_body(t, carry):
            h_f, h_l, c_l = carry
            row = pl.multiple_of(t * Bc, 8)

            # Forward-direction GRU step (recurrent matmul only).
            gi = gi_f_ref[pl.ds(row, Bc), :]
            gh = jnp.dot(h_f.astype(bf16), whh_f, preferred_element_type=f32)
            h_f_new = gru_step(gi, gh, bhn_f, h_f)

            # LSTM step.  Packed 256 lanes: [0:64]=i [64:128]=f [128:192]=2*g [192:256]=o;
            # h_l / c_l carry real values in lanes 0:64.
            gl = (gil_ref[pl.ds(row, Bc), :]
                  + jnp.dot(h_f_new.astype(bf16), wihl_f, preferred_element_type=f32)
                  + jnp.dot(h_l.astype(bf16), whh_l, preferred_element_type=f32))
            s0 = jax.nn.sigmoid(gl[:, :LANE])               # i @0:64, f @64:128
            s1 = jax.nn.sigmoid(gl[:, LANE:])               # sigmoid(2*g) @0:64, o @64:128
            f_at_c = pltpu.roll(s0, shift=64, axis=1)       # f -> 0:64 (direction-safe)
            o_at_c = pltpu.roll(s1, shift=64, axis=1)       # o -> 0:64 (direction-safe)
            g_t = 2.0 * s1 - 1.0                            # tanh(g) @0:64
            c_new = f_at_c * c_l + s0 * g_t
            h_new = o_at_c * jnp.tanh(c_new)
            out_ref[pl.ds(row, Bc), :] = h_new
            return h_f_new, h_new, c_new

        jax.lax.fori_loop(0, T, fwd_body, (zeros, zeros, zeros), unroll=unroll)

    pl.run_scoped(phase2, pltpu.VMEM((T * Bc, 2 * LANE), f32))


def init_params(key):
    """Deterministic params in PyTorch layouts (uniform(-1/sqrt(H), 1/sqrt(H)))."""
    ks = jax.random.split(key, 15)
    kg = 1.0 / math.sqrt(H_GRU)
    kl = 1.0 / math.sqrt(H_LSTM)
    kf = 1.0 / math.sqrt(H_LSTM)

    def u(k, shape, bound):
        return jax.random.uniform(k, shape, jnp.float32, -bound, bound)

    return {
        # GRU forward direction, gate row order r, z, n
        "gru_wih_f": u(ks[0], (3 * H_GRU, IN_RAW), kg),
        "gru_whh_f": u(ks[1], (3 * H_GRU, H_GRU), kg),
        "gru_bih_f": u(ks[2], (3 * H_GRU,), kg),
        "gru_bhh_f": u(ks[3], (3 * H_GRU,), kg),
        # GRU reverse direction
        "gru_wih_b": u(ks[4], (3 * H_GRU, IN_RAW), kg),
        "gru_whh_b": u(ks[5], (3 * H_GRU, H_GRU), kg),
        "gru_bih_b": u(ks[6], (3 * H_GRU,), kg),
        "gru_bhh_b": u(ks[7], (3 * H_GRU,), kg),
        # LSTM (input = 2*H_GRU), gate row order i, f, g, o
        "lstm_wih": u(ks[8], (4 * H_LSTM, 2 * H_GRU), kl),
        "lstm_whh": u(ks[9], (4 * H_LSTM, H_LSTM), kl),
        "lstm_bih": u(ks[10], (4 * H_LSTM,), kl),
        "lstm_bhh": u(ks[11], (4 * H_LSTM,), kl),
        # Linear(64, 1)
        "fc_w": u(ks[12], (1, H_LSTM), kf),
        "fc_b": u(ks[13], (1,), kf),
    }


def pack_params(p):
    """PyTorch-layout params -> dense-gate, contraction-last, bf16 kernel layouts."""
    f32 = jnp.float32
    bf16 = jnp.bfloat16
    H, HL = H_GRU, H_LSTM

    # ---- GRU: packed 128-lane layout per direction:  n | z | r | z(dup) ----
    def gru_dir(w_ih, w_hh, b_ih, b_hh):
        wr, wz, wn = w_ih[0:H], w_ih[H:2 * H], w_ih[2 * H:3 * H]
        ur, uz, un = w_hh[0:H], w_hh[H:2 * H], w_hh[2 * H:3 * H]
        br_i, bz_i, bn_i = b_ih[0:H], b_ih[H:2 * H], b_ih[2 * H:3 * H]
        br_h, bz_h, bn_h = b_hh[0:H], b_hh[H:2 * H], b_hh[2 * H:3 * H]

        wgi = jnp.zeros((IN_PAD, LANE), f32)
        wgi = wgi.at[:IN_RAW, 0:H].set(wn.T)
        wgi = wgi.at[:IN_RAW, H:2 * H].set(wz.T)
        wgi = wgi.at[:IN_RAW, 2 * H:3 * H].set(wr.T)
        wgi = wgi.at[:IN_RAW, 3 * H:4 * H].set(wz.T)          # z duplicate

        bgi = jnp.zeros((1, LANE), f32)
        bgi = bgi.at[0, 0:H].set(bn_i)                        # b_hn stays separate (inside r*(.))
        bgi = bgi.at[0, H:2 * H].set(bz_i + bz_h)
        bgi = bgi.at[0, 2 * H:3 * H].set(br_i + br_h)
        bgi = bgi.at[0, 3 * H:4 * H].set(bz_i + bz_h)

        whh = jnp.zeros((LANE, LANE), f32)
        whh = whh.at[:H, 0:H].set(un.T)
        whh = whh.at[:H, H:2 * H].set(uz.T)
        whh = whh.at[:H, 2 * H:3 * H].set(ur.T)
        whh = whh.at[:H, 3 * H:4 * H].set(uz.T)               # z duplicate

        bhn = jnp.zeros((1, LANE), f32).at[0, 0:H].set(bn_h)
        return wgi, bgi, whh, bhn

    wgi_f, bgi_f, whh_f, bhn_f = gru_dir(p["gru_wih_f"], p["gru_whh_f"],
                                         p["gru_bih_f"], p["gru_bhh_f"])
    wgi_b, bgi_b, whh_b, bhn_b = gru_dir(p["gru_wih_b"], p["gru_whh_b"],
                                         p["gru_bih_b"], p["gru_bhh_b"])
    wgi = jnp.concatenate([wgi_f, wgi_b], axis=1)             # (32, 256)
    bgi = jnp.concatenate([bgi_f, bgi_b], axis=1)             # (1, 256)

    # ---- LSTM: packed 256 lanes  i | f | 2*g | o  (g scaled for the sigmoid-only trick) ----
    def lstm_cols(w):
        wi, wf, wg, wo = w[0:HL], w[HL:2 * HL], w[2 * HL:3 * HL], w[3 * HL:4 * HL]
        return jnp.concatenate([wi.T, wf.T, 2.0 * wg.T, wo.T], axis=1)

    wihl_f = jnp.zeros((LANE, 2 * LANE), f32).at[0:H, :].set(
        lstm_cols(p["lstm_wih"][:, 0:H]))                     # fwd-GRU half (rows 0:32)
    wihl_b = jnp.zeros((LANE, 2 * LANE), f32).at[0:H, :].set(
        lstm_cols(p["lstm_wih"][:, H:2 * H]))                 # bwd-GRU half (rows 0:32)
    whhl = jnp.zeros((LANE, 2 * LANE), f32).at[0:HL, :].set(
        lstm_cols(p["lstm_whh"]))                             # recurrent (rows 0:64)

    b = p["lstm_bih"] + p["lstm_bhh"]
    bl = jnp.concatenate([b[0:HL], b[HL:2 * HL], 2.0 * b[2 * HL:3 * HL],
                          b[3 * HL:4 * HL]])[None, :]         # (1, 256)

    bf = lambda a: a.astype(bf16)
    return (bf(wgi), bgi, bf(whh_f), bhn_f, bf(whh_b), bhn_b,
            bf(wihl_f), bf(wihl_b), bf(whhl), bl)


def bigru_lstm_forward(x, p):
    """x: (B, T, 18) float32 -> (B, T, 1) float32 (matches the PyTorch forward)."""
    B, T, F = x.shape
    assert F == IN_RAW

    # Batch chunking: 2 chunks (one per v7x TensorCore, "parallel" grid axis)
    # whenever the batch is big enough; a single 8-row chunk otherwise.
    n_split = 2 if B > 8 else 1
    Bc = ((B + 8 * n_split - 1) // (8 * n_split)) * 8
    Bp = Bc * n_split
    rows = T * Bc

    x = x.astype(jnp.float32)
    x_tbf = jnp.transpose(x, (1, 0, 2))                                   # (T, B, 18)
    x_tbf = jnp.pad(x_tbf, ((0, 0), (0, Bp - B), (0, IN_PAD - IN_RAW)))   # (T, Bp, 32)
    x_ck = (x_tbf.reshape(T, n_split, Bc, IN_PAD)
            .transpose(1, 0, 2, 3)
            .reshape(n_split, rows, IN_PAD)
            .astype(jnp.bfloat16))                                        # (n_split, T*Bc, 32)

    packed = pack_params(p)

    def const_spec(arr):
        nd = arr.ndim
        return pl.BlockSpec(arr.shape, lambda i: (0,) * nd)

    in_specs = ([pl.BlockSpec((None, rows, IN_PAD), lambda i: (i, 0, 0))]
                + [const_spec(w) for w in packed])
    out_specs = pl.BlockSpec((None, rows, LANE), lambda i: (i, 0, 0))

    scratch = [
        pltpu.VMEM((rows, LANE), jnp.float32),   # gi_f  (fwd GRU input projection)
        pltpu.VMEM((rows, LANE), jnp.float32),   # grub  (bwd GRU hidden outputs)
    ]

    # VMEM budget clamped to the chip's real capacity (v7x: 64 MiB / TensorCore).
    try:
        vmem_cap = int(pltpu.get_tpu_info().vmem_capacity_bytes)
    except Exception:
        vmem_cap = 64 << 20
    if vmem_cap < (16 << 20):
        vmem_cap = 64 << 20
    weight_bytes = sum(int(w.size) * w.dtype.itemsize for w in packed)
    est = (2 * rows * IN_PAD * 2          # x block, double-buffered, bf16
           + 2 * rows * LANE * 4          # out block, double-buffered, f32
           + 2 * rows * LANE * 4          # gi_f + grub scratch
           + rows * 2 * LANE * 4          # peak run_scoped region (gil > gi_b)
           + 2 * weight_bytes)
    vmem_limit = min(int(0.8 * vmem_cap), max(est + (2 << 20), 16 << 20))

    kernel = functools.partial(_bigru_lstm_kernel, T=T, Bc=Bc)
    hall = pl.pallas_call(
        kernel,
        out_shape=jax.ShapeDtypeStruct((n_split, rows, LANE), jnp.float32),
        grid=(n_split,),
        in_specs=in_specs,
        out_specs=out_specs,
        scratch_shapes=scratch,
        compiler_params=pltpu.CompilerParams(
            dimension_semantics=("parallel",),
            vmem_limit_bytes=vmem_limit),
    )(x_ck, *packed)

    # Final Linear(64 -> 1) on the lane-dense hidden slab (skinny GEMM left to XLA;
    # the in-kernel version wasted ~128x MXU work on padding).
    h = hall[:, :, :H_LSTM]                                            # (n_split, T*Bc, 64)
    y = jnp.dot(h, p["fc_w"].T) + p["fc_b"]                            # (n_split, T*Bc, 1)
    y = y.reshape(n_split, T, Bc).transpose(1, 0, 2).reshape(T, Bp)    # (T, Bp)
    return jnp.transpose(y[:, :B], (1, 0))[:, :, None]                 # (B, T, 1)


def reference_forward(x, p):
    """Pure-JAX reference (same equations as torch GRU/LSTM/Linear)."""
    B, T, _ = x.shape
    x = x.astype(jnp.float32)
    H, H2 = H_GRU, H_LSTM
    hi = jax.lax.Precision.HIGHEST

    def gru_dir(xs, wih, whh, bih, bhh):
        def step(h, x_t):
            gi = jnp.dot(x_t, wih.T, precision=hi) + bih
            gh = jnp.dot(h, whh.T, precision=hi) + bhh
            r = jax.nn.sigmoid(gi[:, :H] + gh[:, :H])
            z = jax.nn.sigmoid(gi[:, H:2 * H] + gh[:, H:2 * H])
            n = jnp.tanh(gi[:, 2 * H:] + r * gh[:, 2 * H:])
            h_new = (1.0 - z) * n + z * h
            return h_new, h_new
        _, ys = jax.lax.scan(step, jnp.zeros((B, H), jnp.float32), xs)
        return ys

    xs = jnp.transpose(x, (1, 0, 2))              # (T, B, 18)
    yf = gru_dir(xs, p["gru_wih_f"], p["gru_whh_f"], p["gru_bih_f"], p["gru_bhh_f"])
    yb = gru_dir(xs[::-1], p["gru_wih_b"], p["gru_whh_b"], p["gru_bih_b"], p["gru_bhh_b"])[::-1]
    gru_out = jnp.concatenate([yf, yb], axis=-1)  # (T, B, 64)

    def lstm_step(carry, x_t):
        h, c = carry
        g = (jnp.dot(x_t, p["lstm_wih"].T, precision=hi) + p["lstm_bih"]
             + jnp.dot(h, p["lstm_whh"].T, precision=hi) + p["lstm_bhh"])
        i_g = jax.nn.sigmoid(g[:, :H2])
        f_g = jax.nn.sigmoid(g[:, H2:2 * H2])
        g_g = jnp.tanh(g[:, 2 * H2:3 * H2])
        o_g = jax.nn.sigmoid(g[:, 3 * H2:])
        c_new = f_g * c + i_g * g_g
        h_new = o_g * jnp.tanh(c_new)
        return (h_new, c_new), h_new

    init = (jnp.zeros((B, H2), jnp.float32), jnp.zeros((B, H2), jnp.float32))
    _, hs = jax.lax.scan(lstm_step, init, gru_out)            # (T, B, 64)
    out = jnp.dot(hs, p["fc_w"].T, precision=hi) + p["fc_b"]  # (T, B, 1)
    return jnp.transpose(out, (1, 0, 2))                      # (B, T, 1)


if __name__ == "__main__":
    key = jax.random.PRNGKey(0)
    k_param, k_x, k_x2 = jax.random.split(key, 3)
    params = init_params(k_param)

    # Small shape consistent with the module (batch=2, seq=8, features=18).
    B, T = 2, 8
    x = jax.random.normal(k_x, (B, T, IN_RAW), jnp.float32)

    out = jax.block_until_ready(bigru_lstm_forward(x, params))
    assert out.shape == (B, T, 1), out.shape
    ref = jax.block_until_ready(reference_forward(x, params))
    # bf16 MXU operands (f32 accumulate) -> slightly looser tolerance than pure f32.
    assert jnp.allclose(out, ref, atol=2e-2, rtol=2e-2), (
        float(jnp.max(jnp.abs(out - ref))))

    # Second case exercises the 2-chunk ("parallel" grid) path.
    B2, T2 = 12, 10
    x2 = jax.random.normal(k_x2, (B2, T2, IN_RAW), jnp.float32)
    out2 = jax.block_until_ready(bigru_lstm_forward(x2, params))
    assert out2.shape == (B2, T2, 1), out2.shape
    ref2 = jax.block_until_ready(reference_forward(x2, params))
    assert jnp.allclose(out2, ref2, atol=2e-2, rtol=2e-2), (
        float(jnp.max(jnp.abs(out2 - ref2))))

    print("KERNEL_OK")
</pallas_src>

<mosaic_0001>
module attributes {stable_mosaic.version = 11 : i64} {
  func.func @_bigru_lstm_kernel(%arg0: i32, %arg1: memref<1x64x32xbf16, #tpu.memory_space<vmem>>, %arg2: memref<32x256xbf16, #tpu.memory_space<vmem>>, %arg3: memref<1x256xf32, #tpu.memory_space<vmem>>, %arg4: memref<128x128xbf16, #tpu.memory_space<vmem>>, %arg5: memref<1x128xf32, #tpu.memory_space<vmem>>, %arg6: memref<128x128xbf16, #tpu.memory_space<vmem>>, %arg7: memref<1x128xf32, #tpu.memory_space<vmem>>, %arg8: memref<128x256xbf16, #tpu.memory_space<vmem>>, %arg9: memref<128x256xbf16, #tpu.memory_space<vmem>>, %arg10: memref<128x256xbf16, #tpu.memory_space<vmem>>, %arg11: memref<1x256xf32, #tpu.memory_space<vmem>>, %arg12: memref<1x64x128xf32, #tpu.memory_space<vmem>>, %arg13: memref<64x128xf32, #tpu.memory_space<vmem>>, %arg14: memref<64x128xf32, #tpu.memory_space<vmem>>) attributes {dimension_semantics = [#tpu.dimension_semantics<parallel>], iteration_bounds = array<i64: 1>, scalar_prefetch = 0 : i64, scratch_operands = 2 : i64, tpu.core_type = #tpu.core_type<tc>, window_params = [{transform_indices = @transform_0, window_bounds = array<i64: 1, 64, 32>}, {pipeline_mode = #tpu.pipeline_mode<synchronous>, transform_indices = @transform_1, window_bounds = array<i64: 32, 256>}, {pipeline_mode = #tpu.pipeline_mode<synchronous>, transform_indices = @transform_2, window_bounds = array<i64: 1, 256>}, {pipeline_mode = #tpu.pipeline_mode<synchronous>, transform_indices = @transform_3, window_bounds = array<i64: 128, 128>}, {pipeline_mode = #tpu.pipeline_mode<synchronous>, transform_indices = @transform_4, window_bounds = array<i64: 1, 128>}, {pipeline_mode = #tpu.pipeline_mode<synchronous>, transform_indices = @transform_5, window_bounds = array<i64: 128, 128>}, {pipeline_mode = #tpu.pipeline_mode<synchronous>, transform_indices = @transform_6, window_bounds = array<i64: 1, 128>}, {pipeline_mode = #tpu.pipeline_mode<synchronous>, transform_indices = @transform_7, window_bounds = array<i64: 128, 256>}, {pipeline_mode = #tpu.pipeline_mode<synchronous>, transform_indices = @transform_8, window_bounds = array<i64: 128, 256>}, {pipeline_mode = #tpu.pipeline_mode<synchronous>, transform_indices = @transform_9, window_bounds = array<i64: 128, 256>}, {pipeline_mode = #tpu.pipeline_mode<synchronous>, transform_indices = @transform_10, window_bounds = array<i64: 1, 256>}, {transform_indices = @transform_11, window_bounds = array<i64: 1, 64, 128>}]} {
    %cst = arith.constant 0.000000e+00 : f32
    %0 = vector.broadcast %cst : f32 to vector<8x128xf32>
    %c0 = arith.constant 0 : index
    %c0_0 = arith.constant 0 : index
    %1 = vector.load %arg5[%c0, %c0_0] : memref<1x128xf32, #tpu.memory_space<vmem>>, vector<1x128xf32>
    %2 = vector.shape_cast %1 : vector<1x128xf32> to vector<1x128xf32>
    %3 = vector.broadcast %2 : vector<1x128xf32> to vector<8x128xf32>
    %c0_1 = arith.constant 0 : index
    %c0_2 = arith.constant 0 : index
    %4 = vector.load %arg7[%c0_1, %c0_2] : memref<1x128xf32, #tpu.memory_space<vmem>>, vector<1x128xf32>
    %5 = vector.shape_cast %4 : vector<1x128xf32> to vector<1x128xf32>
    %6 = vector.broadcast %5 : vector<1x128xf32> to vector<8x128xf32>
    "tpu.region"() ({
      %alloca = memref.alloca() : memref<64x128xf32, #tpu.memory_space<vmem>>
      %c0_3 = arith.constant 0 : index
      %c0_4 = arith.constant 0 : index
      %c0_5 = arith.constant 0 : index
      %7 = vector.load %arg1[%c0_3, %c0_4, %c0_5] : memref<1x64x32xbf16, #tpu.memory_space<vmem>>, vector<1x64x32xbf16>
      %8 = vector.shape_cast %7 : vector<1x64x32xbf16> to vector<64x32xbf16>
      %c0_6 = arith.constant 0 : index
      %c0_7 = arith.constant 0 : index
      %9 = vector.load %arg2[%c0_6, %c0_7] : memref<32x256xbf16, #tpu.memory_space<vmem>>, vector<32x256xbf16>
      %cst_8 = arith.constant dense<0.000000e+00> : vector<64x256xf32>
      %10 = tpu.matmul %8, %9, %cst_8 {dimension_numbers = #tpu.dot_dimension_numbers<[1], [0], [0], [1], [0, 0, 1, 1], [], []>} : vector<64x32xbf16>, vector<32x256xbf16>, vector<64x256xf32> -> vector<64x256xf32>
      %c0_9 = arith.constant 0 : index
      %c0_10 = arith.constant 0 : index
      %11 = vector.load %arg3[%c0_9, %c0_10] : memref<1x256xf32, #tpu.memory_space<vmem>>, vector<1x256xf32>
      %12 = vector.broadcast %11 : vector<1x256xf32> to vector<64x256xf32>
      %13 = arith.addf %10, %12 : vector<64x256xf32>
      %14 = vector.extract_strided_slice %13 {offsets = [0, 0], sizes = [64, 128], strides = [1, 1]} : vector<64x256xf32> to vector<64x128xf32>
      %c0_11 = arith.constant 0 : index
      %c0_12 = arith.constant 0 : index
      %15 = vector.load %arg13[%c0_11, %c0_12] : memref<64x128xf32, #tpu.memory_space<vmem>>, vector<64x128xf32>
      tpu.vector_store %arg13[%c0_11, %c0_12], %14 {strides = array<i32>} : memref<64x128xf32, #tpu.memory_space<vmem>>, vector<64x128xf32>,
      %16 = vector.extract_strided_slice %13 {offsets = [0, 128], sizes = [64, 128], strides = [1, 1]} : vector<64x256xf32> to vector<64x128xf32>
      %c0_13 = arith.constant 0 : index
      %c0_14 = arith.constant 0 : index
      %17 = vector.load %alloca[%c0_13, %c0_14] : memref<64x128xf32, #tpu.memory_space<vmem>>, vector<64x128xf32>
      tpu.vector_store %alloca[%c0_13, %c0_14], %16 {strides = array<i32>} : memref<64x128xf32, #tpu.memory_space<vmem>>, vector<64x128xf32>,
      %c0_15 = arith.constant 0 : index
      %c0_16 = arith.constant 0 : index
      %18 = vector.load %arg6[%c0_15, %c0_16] : memref<128x128xbf16, #tpu.memory_space<vmem>>, vector<128x128xbf16>
      %c0_i32 = arith.constant 0 : i32
      %c7_i32 = arith.constant 7 : i32
      %19 = arith.subi %c7_i32, %c0_i32 : i32
      %c8_i32 = arith.constant 8 : i32
      %20 = arith.muli %19, %c8_i32 : i32
      %21 = tpu.assume_multiple %20, 8 : i32
      %22 = arith.index_cast %21 : i32 to index
      %c0_17 = arith.constant 0 : index
      %23 = vector.load %alloca[%22, %c0_17] : memref<64x128xf32, #tpu.memory_space<vmem>>, vector<8x128xf32>
      %24 = arith.truncf %0 : vector<8x128xf32> to vector<8x128xbf16>
      %cst_18 = arith.constant dense<0.000000e+00> : vector<8x128xf32>
      %25 = tpu.matmul %24, %18, %cst_18 {dimension_numbers = #tpu.dot_dimension_numbers<[1], [0], [0], [1], [0, 0, 1, 1], [], []>} : vector<8x128xbf16>, vector<128x128xbf16>, vector<8x128xf32> -> vector<8x128xf32>
      %26 = arith.addf %23, %25 : vector<8x128xf32>
      %27 = arith.negf %26 : vector<8x128xf32>
      %28 = math.exp %27 : vector<8x128xf32>
      %cst_19 = arith.constant 1.000000e+00 : f32
      %29 = vector.broadcast %cst_19 : f32 to vector<8x128xf32>
      %30 = arith.addf %29, %28 : vector<8x128xf32>
      %31 = arith.divf %29, %30 : vector<8x128xf32>
      %c64_i32 = arith.constant 64 : i32
      %32 = tpu.dynamic_rotate %31 by %c64_i32 dim 1 : vector<8x128xf32>, i32 -> vector<8x128xf32>
      %33 = arith.addf %25, %6 : vector<8x128xf32>
      %34 = arith.mulf %32, %33 : vector<8x128xf32>
      %35 = arith.addf %23, %34 : vector<8x128xf32>
      %36 = math.tanh %35 : vector<8x128xf32>
      %c32_i32 = arith.constant 32 : i32
      %37 = tpu.dynamic_rotate %31 by %c32_i32 dim 1 : vector<8x128xf32>, i32 -> vector<8x128xf32>
      %38 = arith.subf %0, %36 : vector<8x128xf32>
      %39 = arith.mulf %37, %38 : vector<8x128xf32>
      %40 = arith.addf %36, %39 : vector<8x128xf32>
      %41 = arith.index_cast %21 : i32 to index
      %c0_20 = arith.constant 0 : index
      %42 = vector.load %arg14[%41, %c0_20] : memref<64x128xf32, #tpu.memory_space<vmem>>, vector<8x128xf32>
      tpu.vector_store %arg14[%41, %c0_20], %40 {strides = array<i32>} : memref<64x128xf32, #tpu.memory_space<vmem>>, vector<8x128xf32>,
      %c1_i32 = arith.constant 1 : i32
      %c7_i32_21 = arith.constant 7 : i32
      %43 = arith.subi %c7_i32_21, %c1_i32 : i32
      %c8_i32_22 = arith.constant 8 : i32
      %44 = arith.muli %43, %c8_i32_22 : i32
      %45 = tpu.assume_multiple %44, 8 : i32
      %46 = arith.index_cast %45 : i32 to index
      %c0_23 = arith.constant 0 : index
      %47 = vector.load %alloca[%46, %c0_23] : memref<64x128xf32, #tpu.memory_space<vmem>>, vector<8x128xf32>
      %48 = arith.truncf %40 : vector<8x128xf32> to vector<8x128xbf16>
      %cst_24 = arith.constant dense<0.000000e+00> : vector<8x128xf32>
      %49 = tpu.matmul %48, %18, %cst_24 {dimension_numbers = #tpu.dot_dimension_numbers<[1], [0], [0], [1], [0, 0, 1, 1], [], []>} : vector<8x128xbf16>, vector<128x128xbf16>, vector<8x128xf32> -> vector<8x128xf32>
      %50 = arith.addf %47, %49 : vector<8x128xf32>
      %51 = arith.negf %50 : vector<8x128xf32>
      %52 = math.exp %51 : vector<8x128xf32>
      %cst_25 = arith.constant 1.000000e+00 : f32
      %53 = vector.broadcast %cst_25 : f32 to vector<8x128xf32>
      %54 = arith.addf %53, %52 : vector<8x128xf32>
      %55 = arith.divf %53, %54 : vector<8x128xf32>
      %c64_i32_26 = arith.constant 64 : i32
      %56 = tpu.dynamic_rotate %55 by %c64_i32_26 dim 1 : vector<8x128xf32>, i32 -> vector<8x128xf32>
      %57 = arith.addf %49, %6 : vector<8x128xf32>
      %58 = arith.mulf %56, %57 : vector<8x128xf32>
      %59 = arith.addf %47, %58 : vector<8x128xf32>
      %60 = math.tanh %59 : vector<8x128xf32>
      %c32_i32_27 = arith.constant 32 : i32
      %61 = tpu.dynamic_rotate %55 by %c32_i32_27 dim 1 : vector<8x128xf32>, i32 -> vector<8x128xf32>
      %62 = arith.subf %40, %60 : vector<8x128xf32>
      %63 = arith.mulf %61, %62 : vector<8x128xf32>
      %64 = arith.addf %60, %63 : vector<8x128xf32>
      %65 = arith.index_cast %45 : i32 to index
      %c0_28 = arith.constant 0 : index
      %66 = vector.load %arg14[%65, %c0_28] : memref<64x128xf32, #tpu.memory_space<vmem>>, vector<8x128xf32>
      tpu.vector_store %arg14[%65, %c0_28], %64 {strides = array<i32>} : memref<64x128xf32, #tpu.memory_space<vmem>>, vector<8x128xf32>,
      %c2_i32 = arith.constant 2 : i32
      %c7_i32_29 = arith.constant 7 : i32
      %67 = arith.subi %c7_i32_29, %c2_i32 : i32
      %c8_i32_30 = arith.constant 8 : i32
      %68 = arith.muli %67, %c8_i32_30 : i32
      %69 = tpu.assume_multiple %68, 8 : i32
      %70 = arith.index_cast %69 : i32 to index
      %c0_31 = arith.constant 0 : index
      %71 = vector.load %alloca[%70, %c0_31] : memref<64x128xf32, #tpu.memory_space<vmem>>, vector<8x128xf32>
      %72 = arith.truncf %64 : vector<8x128xf32> to vector<8x128xbf16>
      %cst_32 = arith.constant dense<0.000000e+00> : vector<8x128xf32>
      %73 = tpu.matmul %72, %18, %cst_32 {dimension_numbers = #tpu.dot_dimension_numbers<[1], [0], [0], [1], [0, 0, 1, 1], [], []>} : vector<8x128xbf16>, vector<128x128xbf16>, vector<8x128xf32> -> vector<8x128xf32>
      %74 = arith.addf %71, %73 : vector<8x128xf32>
      %75 = arith.negf %74 : vector<8x128xf32>
      %76 = math.exp %75 : vector<8x128xf32>
      %cst_33 = arith.constant 1.000000e+00 : f32
      %77 = vector.broadcast %cst_33 : f32 to vector<8x128xf32>
      %78 = arith.addf %77, %76 : vector<8x128xf32>
      %79 = arith.divf %77, %78 : vector<8x128xf32>
      %c64_i32_34 = arith.constant 64 : i32
      %80 = tpu.dynamic_rotate %79 by %c64_i32_34 dim 1 : vector<8x128xf32>, i32 -> vector<8x128xf32>
      %81 = arith.addf %73, %6 : vector<8x128xf32>
      %82 = arith.mulf %80, %81 : vector<8x128xf32>
      %83 = arith.addf %71, %82 : vector<8x128xf32>
      %84 = math.tanh %83 : vector<8x128xf32>
      %c32_i32_35 = arith.constant 32 : i32
      %85 = tpu.dynamic_rotate %79 by %c32_i32_35 dim 1 : vector<8x128xf32>, i32 -> vector<8x128xf32>
      %86 = arith.subf %64, %84 : vector<8x128xf32>
      %87 = arith.mulf %85, %86 : vector<8x128xf32>
      %88 = arith.addf %84, %87 : vector<8x128xf32>
      %89 = arith.index_cast %69 : i32 to index
      %c0_36 = arith.constant 0 : index
      %90 = vector.load %arg14[%89, %c0_36] : memref<64x128xf32, #tpu.memory_space<vmem>>, vector<8x128xf32>
      tpu.vector_store %arg14[%89, %c0_36], %88 {strides = array<i32>} : memref<64x128xf32, #tpu.memory_space<vmem>>, vector<8x128xf32>,
      %c3_i32 = arith.constant 3 : i32
      %c7_i32_37 = arith.constant 7 : i32
      %91 = arith.subi %c7_i32_37, %c3_i32 : i32
      %c8_i32_38 = arith.constant 8 : i32
      %92 = arith.muli %91, %c8_i32_38 : i32
      %93 = tpu.assume_multiple %92, 8 : i32
      %94 = arith.index_cast %93 : i32 to index
      %c0_39 = arith.constant 0 : index
      %95 = vector.load %alloca[%94, %c0_39] : memref<64x128xf32, #tpu.memory_space<vmem>>, vector<8x128xf32>
      %96 = arith.truncf %88 : vector<8x128xf32> to vector<8x128xbf16>
      %cst_40 = arith.constant dense<0.000000e+00> : vector<8x128xf32>
      %97 = tpu.matmul %96, %18, %cst_40 {dimension_numbers = #tpu.dot_dimension_numbers<[1], [0], [0], [1], [0, 0, 1, 1], [], []>} : vector<8x128xbf16>, vector<128x128xbf16>, vector<8x128xf32> -> vector<8x128xf32>
      %98 = arith.addf %95, %97 : vector<8x128xf32>
      %99 = arith.negf %98 : vector<8x128xf32>
      %100 = math.exp %99 : vector<8x128xf32>
      %cst_41 = arith.constant 1.000000e+00 : f32
      %101 = vector.broadcast %cst_41 : f32 to vector<8x128xf32>
      %102 = arith.addf %101, %100 : vector<8x128xf32>
      %103 = arith.divf %101, %102 : vector<8x128xf32>
      %c64_i32_42 = arith.constant 64 : i32
      %104 = tpu.dynamic_rotate %103 by %c64_i32_42 dim 1 : vector<8x128xf32>, i32 -> vector<8x128xf32>
      %105 = arith.addf %97, %6 : vector<8x128xf32>
      %106 = arith.mulf %104, %105 : vector<8x128xf32>
      %107 = arith.addf %95, %106 : vector<8x128xf32>
      %108 = math.tanh %107 : vector<8x128xf32>
      %c32_i32_43 = arith.constant 32 : i32
      %109 = tpu.dynamic_rotate %103 by %c32_i32_43 dim 1 : vector<8x128xf32>, i32 -> vector<8x128xf32>
      %110 = arith.subf %88, %108 : vector<8x128xf32>
      %111 = arith.mulf %109, %110 : vector<8x128xf32>
      %112 = arith.addf %108, %111 : vector<8x128xf32>
      %113 = arith.index_cast %93 : i32 to index
      %c0_44 = arith.constant 0 : index
      %114 = vector.load %arg14[%113, %c0_44] : memref<64x128xf32, #tpu.memory_space<vmem>>, vector<8x128xf32>
      tpu.vector_store %arg14[%113, %c0_44], %112 {strides = array<i32>} : memref<64x128xf32, #tpu.memory_space<vmem>>, vector<8x128xf32>,
      %c4_i32 = arith.constant 4 : i32
      %c7_i32_45 = arith.constant 7 : i32
      %115 = arith.subi %c7_i32_45, %c4_i32 : i32
      %c8_i32_46 = arith.constant 8 : i32
      %116 = arith.muli %115, %c8_i32_46 : i32
      %117 = tpu.assume_multiple %116, 8 : i32
      %118 = arith.index_cast %117 : i32 to index
      %c0_47 = arith.constant 0 : index
      %119 = vector.load %alloca[%118, %c0_47] : memref<64x128xf32, #tpu.memory_space<vmem>>, vector<8x128xf32>
      %120 = arith.truncf %112 : vector<8x128xf32> to vector<8x128xbf16>
      %cst_48 = arith.constant dense<0.000000e+00> : vector<8x128xf32>
      %121 = tpu.matmul %120, %18, %cst_48 {dimension_numbers = #tpu.dot_dimension_numbers<[1], [0], [0], [1], [0, 0, 1, 1], [], []>} : vector<8x128xbf16>, vector<128x128xbf16>, vector<8x128xf32> -> vector<8x128xf32>
      %122 = arith.addf %119, %121 : vector<8x128xf32>
      %123 = arith.negf %122 : vector<8x128xf32>
      %124 = math.exp %123 : vector<8x128xf32>
      %cst_49 = arith.constant 1.000000e+00 : f32
      %125 = vector.broadcast %cst_49 : f32 to vector<8x128xf32>
      %126 = arith.addf %125, %124 : vector<8x128xf32>
      %127 = arith.divf %125, %126 : vector<8x128xf32>
      %c64_i32_50 = arith.constant 64 : i32
      %128 = tpu.dynamic_rotate %127 by %c64_i32_50 dim 1 : vector<8x128xf32>, i32 -> vector<8x128xf32>
      %129 = arith.addf %121, %6 : vector<8x128xf32>
      %130 = arith.mulf %128, %129 : vector<8x128xf32>
      %131 = arith.addf %119, %130 : vector<8x128xf32>
      %132 = math.tanh %131 : vector<8x128xf32>
      %c32_i32_51 = arith.constant 32 : i32
      %133 = tpu.dynamic_rotate %127 by %c32_i32_51 dim 1 : vector<8x128xf32>, i32 -> vector<8x128xf32>
      %134 = arith.subf %112, %132 : vector<8x128xf32>
      %135 = arith.mulf %133, %134 : vector<8x128xf32>
      %136 = arith.addf %132, %135 : vector<8x128xf32>
      %137 = arith.index_cast %117 : i32 to index
      %c0_52 = arith.constant 0 : index
      %138 = vector.load %arg14[%137, %c0_52] : memref<64x128xf32, #tpu.memory_space<vmem>>, vector<8x128xf32>
      tpu.vector_store %arg14[%137, %c0_52], %136 {strides = array<i32>} : memref<64x128xf32, #tpu.memory_space<vmem>>, vector<8x128xf32>,
      %c5_i32 = arith.constant 5 : i32
      %c7_i32_53 = arith.constant 7 : i32
      %139 = arith.subi %c7_i32_53, %c5_i32 : i32
      %c8_i32_54 = arith.constant 8 : i32
      %140 = arith.muli %139, %c8_i32_54 : i32
      %141 = tpu.assume_multiple %140, 8 : i32
      %142 = arith.index_cast %141 : i32 to index
      %c0_55 = arith.constant 0 : index
      %143 = vector.load %alloca[%142, %c0_55] : memref<64x128xf32, #tpu.memory_space<vmem>>, vector<8x128xf32>
      %144 = arith.truncf %136 : vector<8x128xf32> to vector<8x128xbf16>
      %cst_56 = arith.constant dense<0.000000e+00> : vector<8x128xf32>
      %145 = tpu.matmul %144, %18, %cst_56 {dimension_numbers = #tpu.dot_dimension_numbers<[1], [0], [0], [1], [0, 0, 1, 1], [], []>} : vector<8x128xbf16>, vector<128x128xbf16>, vector<8x128xf32> -> vector<8x128xf32>
      %146 = arith.addf %143, %145 : vector<8x128xf32>
      %147 = arith.negf %146 : vector<8x128xf32>
      %148 = math.exp %147 : vector<8x128xf32>
      %cst_57 = arith.constant 1.000000e+00 : f32
      %149 = vector.broadcast %cst_57 : f32 to vector<8x128xf32>
      %150 = arith.addf %149, %148 : vector<8x128xf32>
      %151 = arith.divf %149, %150 : vector<8x128xf32>
      %c64_i32_58 = arith.constant 64 : i32
      %152 = tpu.dynamic_rotate %151 by %c64_i32_58 dim 1 : vector<8x128xf32>, i32 -> vector<8x128xf32>
      %153 = arith.addf %145, %6 : vector<8x128xf32>
      %154 = arith.mulf %152, %153 : vector<8x128xf32>
      %155 = arith.addf %143, %154 : vector<8x128xf32>
      %156 = math.tanh %155 : vector<8x128xf32>
      %c32_i32_59 = arith.constant 32 : i32
      %157 = tpu.dynamic_rotate %151 by %c32_i32_59 dim 1 : vector<8x128xf32>, i32 -> vector<8x128xf32>
      %158 = arith.subf %136, %156 : vector<8x128xf32>
      %159 = arith.mulf %157, %158 : vector<8x128xf32>
      %160 = arith.addf %156, %159 : vector<8x128xf32>
      %161 = arith.index_cast %141 : i32 to index
      %c0_60 = arith.constant 0 : index
      %162 = vector.load %arg14[%161, %c0_60] : memref<64x128xf32, #tpu.memory_space<vmem>>, vector<8x128xf32>
      tpu.vector_store %arg14[%161, %c0_60], %160 {strides = array<i32>} : memref<64x128xf32, #tpu.memory_space<vmem>>, vector<8x128xf32>,
      %c6_i32 = arith.constant 6 : i32
      %c7_i32_61 = arith.constant 7 : i32
      %163 = arith.subi %c7_i32_61, %c6_i32 : i32
      %c8_i32_62 = arith.constant 8 : i32
      %164 = arith.muli %163, %c8_i32_62 : i32
      %165 = tpu.assume_multiple %164, 8 : i32
      %166 = arith.index_cast %165 : i32 to index
      %c0_63 = arith.constant 0 : index
      %167 = vector.load %alloca[%166, %c0_63] : memref<64x128xf32, #tpu.memory_space<vmem>>, vector<8x128xf32>
      %168 = arith.truncf %160 : vector<8x128xf32> to vector<8x128xbf16>
      %cst_64 = arith.constant dense<0.000000e+00> : vector<8x128xf32>
      %169 = tpu.matmul %168, %18, %cst_64 {dimension_numbers = #tpu.dot_dimension_numbers<[1], [0], [0], [1], [0, 0, 1, 1], [], []>} : vector<8x128xbf16>, vector<128x128xbf16>, vector<8x128xf32> -> vector<8x128xf32>
      %170 = arith.addf %167, %169 : vector<8x128xf32>
      %171 = arith.negf %170 : vector<8x128xf32>
      %172 = math.exp %171 : vector<8x128xf32>
      %cst_65 = arith.constant 1.000000e+00 : f32
      %173 = vector.broadcast %cst_65 : f32 to vector<8x128xf32>
      %174 = arith.addf %173, %172 : vector<8x128xf32>
      %175 = arith.divf %173, %174 : vector<8x128xf32>
      %c64_i32_66 = arith.constant 64 : i32
      %176 = tpu.dynamic_rotate %175 by %c64_i32_66 dim 1 : vector<8x128xf32>, i32 -> vector<8x128xf32>
      %177 = arith.addf %169, %6 : vector<8x128xf32>
      %178 = arith.mulf %176, %177 : vector<8x128xf32>
      %179 = arith.addf %167, %178 : vector<8x128xf32>
      %180 = math.tanh %179 : vector<8x128xf32>
      %c32_i32_67 = arith.constant 32 : i32
      %181 = tpu.dynamic_rotate %175 by %c32_i32_67 dim 1 : vector<8x128xf32>, i32 -> vector<8x128xf32>
      %182 = arith.subf %160, %180 : vector<8x128xf32>
      %183 = arith.mulf %181, %182 : vector<8x128xf32>
      %184 = arith.addf %180, %183 : vector<8x128xf32>
      %185 = arith.index_cast %165 : i32 to index
      %c0_68 = arith.constant 0 : index
      %186 = vector.load %arg14[%185, %c0_68] : memref<64x128xf32, #tpu.memory_space<vmem>>, vector<8x128xf32>
      tpu.vector_store %arg14[%185, %c0_68], %184 {strides = array<i32>} : memref<64x128xf32, #tpu.memory_space<vmem>>, vector<8x128xf32>,
      %c7_i32_69 = arith.constant 7 : i32
      %c7_i32_70 = arith.constant 7 : i32
      %187 = arith.subi %c7_i32_70, %c7_i32_69 : i32
      %c8_i32_71 = arith.constant 8 : i32
      %188 = arith.muli %187, %c8_i32_71 : i32
      %189 = tpu.assume_multiple %188, 8 : i32
      %190 = arith.index_cast %189 : i32 to index
      %c0_72 = arith.constant 0 : index
      %191 = vector.load %alloca[%190, %c0_72] : memref<64x128xf32, #tpu.memory_space<vmem>>, vector<8x128xf32>
      %192 = arith.truncf %184 : vector<8x128xf32> to vector<8x128xbf16>
      %cst_73 = arith.constant dense<0.000000e+00> : vector<8x128xf32>
      %193 = tpu.matmul %192, %18, %cst_73 {dimension_numbers = #tpu.dot_dimension_numbers<[1], [0], [0], [1], [0, 0, 1, 1], [], []>} : vector<8x128xbf16>, vector<128x128xbf16>, vector<8x128xf32> -> vector<8x128xf32>
      %194 = arith.addf %191, %193 : vector<8x128xf32>
      %195 = arith.negf %194 : vector<8x128xf32>
      %196 = math.exp %195 : vector<8x128xf32>
      %cst_74 = arith.constant 1.000000e+00 : f32
      %197 = vector.broadcast %cst_74 : f32 to vector<8x128xf32>
      %198 = arith.addf %197, %196 : vector<8x128xf32>
      %199 = arith.divf %197, %198 : vector<8x128xf32>
      %c64_i32_75 = arith.constant 64 : i32
      %200 = tpu.dynamic_rotate %199 by %c64_i32_75 dim 1 : vector<8x128xf32>, i32 -> vector<8x128xf32>
      %201 = arith.addf %193, %6 : vector<8x128xf32>
      %202 = arith.mulf %200, %201 : vector<8x128xf32>
      %203 = arith.addf %191, %202 : vector<8x128xf32>
      %204 = math.tanh %203 : vector<8x128xf32>
      %c32_i32_76 = arith.constant 32 : i32
      %205 = tpu.dynamic_rotate %199 by %c32_i32_76 dim 1 : vector<8x128xf32>, i32 -> vector<8x128xf32>
      %206 = arith.subf %184, %204 : vector<8x128xf32>
      %207 = arith.mulf %205, %206 : vector<8x128xf32>
      %208 = arith.addf %204, %207 : vector<8x128xf32>
      %209 = arith.index_cast %189 : i32 to index
      %c0_77 = arith.constant 0 : index
      %210 = vector.load %arg14[%209, %c0_77] : memref<64x128xf32, #tpu.memory_space<vmem>>, vector<8x128xf32>
      tpu.vector_store %arg14[%209, %c0_77], %208 {strides = array<i32>} : memref<64x128xf32, #tpu.memory_space<vmem>>, vector<8x128xf32>,
      %c8_i32_78 = arith.constant 8 : i32
      tpu.yield
    }) : () -> ()
    "tpu.region"() ({
      %alloca = memref.alloca() : memref<64x256xf32, #tpu.memory_space<vmem>>
      %c0_3 = arith.constant 0 : index
      %c0_4 = arith.constant 0 : index
      %7 = vector.load %arg14[%c0_3, %c0_4] : memref<64x128xf32, #tpu.memory_space<vmem>>, vector<64x128xf32>
      %8 = arith.truncf %7 : vector<64x128xf32> to vector<64x128xbf16>
      %c0_5 = arith.constant 0 : index
      %c0_6 = arith.constant 0 : index
      %9 = vector.load %arg9[%c0_5, %c0_6] : memref<128x256xbf16, #tpu.memory_space<vmem>>, vector<128x256xbf16>
      %cst_7 = arith.constant dense<0.000000e+00> : vector<64x256xf32>
      %10 = tpu.matmul %8, %9, %cst_7 {dimension_numbers = #tpu.dot_dimension_numbers<[1], [0], [0], [1], [0, 0, 1, 1], [], []>} : vector<64x128xbf16>, vector<128x256xbf16>, vector<64x256xf32> -> vector<64x256xf32>
      %c0_8 = arith.constant 0 : index
      %c0_9 = arith.constant 0 : index
      %11 = vector.load %arg11[%c0_8, %c0_9] : memref<1x256xf32, #tpu.memory_space<vmem>>, vector<1x256xf32>
      %12 = vector.broadcast %11 : vector<1x256xf32> to vector<64x256xf32>
      %13 = arith.addf %10, %12 : vector<64x256xf32>
      %c0_10 = arith.constant 0 : index
      %c0_11 = arith.constant 0 : index
      %14 = vector.load %alloca[%c0_10, %c0_11] : memref<64x256xf32, #tpu.memory_space<vmem>>, vector<64x256xf32>
      tpu.vector_store %alloca[%c0_10, %c0_11], %13 {strides = array<i32>} : memref<64x256xf32, #tpu.memory_space<vmem>>, vector<64x256xf32>,
      %c0_12 = arith.constant 0 : index
      %c0_13 = arith.constant 0 : index
      %15 = vector.load %arg4[%c0_12, %c0_13] : memref<128x128xbf16, #tpu.memory_space<vmem>>, vector<128x128xbf16>
      %c0_14 = arith.constant 0 : index
      %c0_15 = arith.constant 0 : index
      %16 = vector.load %arg8[%c0_14, %c0_15] : memref<128x256xbf16, #tpu.memory_space<vmem>>, vector<128x256xbf16>
      %c0_16 = arith.constant 0 : index
      %c0_17 = arith.constant 0 : index
      %17 = vector.load %arg10[%c0_16, %c0_17] : memref<128x256xbf16, #tpu.memory_space<vmem>>, vector<128x256xbf16>
      %c0_i32 = arith.constant 0 : i32
      %c8_i32 = arith.constant 8 : i32
      %18 = arith.muli %c0_i32, %c8_i32 : i32
      %19 = tpu.assume_multiple %18, 8 : i32
      %20 = arith.index_cast %19 : i32 to index
      %c0_18 = arith.constant 0 : index
      %21 = vector.load %arg13[%20, %c0_18] : memref<64x128xf32, #tpu.memory_space<vmem>>, vector<8x128xf32>
      %22 = arith.truncf %0 : vector<8x128xf32> to vector<8x128xbf16>
      %cst_19 = arith.constant dense<0.000000e+00> : vector<8x128xf32>
      %23 = tpu.matmul %22, %15, %cst_19 {dimension_numbers = #tpu.dot_dimension_numbers<[1], [0], [0], [1], [0, 0, 1, 1], [], []>} : vector<8x128xbf16>, vector<128x128xbf16>, vector<8x128xf32> -> vector<8x128xf32>
      %24 = arith.addf %21, %23 : vector<8x128xf32>
      %25 = arith.negf %24 : vector<8x128xf32>
      %26 = math.exp %25 : vector<8x128xf32>
      %cst_20 = arith.constant 1.000000e+00 : f32
      %27 = vector.broadcast %cst_20 : f32 to vector<8x128xf32>
      %28 = arith.addf %27, %26 : vector<8x128xf32>
      %29 = arith.divf %27, %28 : vector<8x128xf32>
      %c64_i32 = arith.constant 64 : i32
      %30 = tpu.dynamic_rotate %29 by %c64_i32 dim 1 : vector<8x128xf32>, i32 -> vector<8x128xf32>
      %31 = arith.addf %23, %3 : vector<8x128xf32>
      %32 = arith.mulf %30, %31 : vector<8x128xf32>
      %33 = arith.addf %21, %32 : vector<8x128xf32>
      %34 = math.tanh %33 : vector<8x128xf32>
      %c32_i32 = arith.constant 32 : i32
      %35 = tpu.dynamic_rotate %29 by %c32_i32 dim 1 : vector<8x128xf32>, i32 -> vector<8x128xf32>
      %36 = arith.subf %0, %34 : vector<8x128xf32>
      %37 = arith.mulf %35, %36 : vector<8x128xf32>
      %38 = arith.addf %34, %37 : vector<8x128xf32>
      %39 = arith.index_cast %19 : i32 to index
      %c0_21 = arith.constant 0 : index
      %40 = vector.load %alloca[%39, %c0_21] : memref<64x256xf32, #tpu.memory_space<vmem>>, vector<8x256xf32>
      %41 = arith.truncf %38 : vector<8x128xf32> to vector<8x128xbf16>
      %cst_22 = arith.constant dense<0.000000e+00> : vector<8x256xf32>
      %42 = tpu.matmul %41, %16, %cst_22 {dimension_numbers = #tpu.dot_dimension_numbers<[1], [0], [0], [1], [0, 0, 1, 1], [], []>} : vector<8x128xbf16>, vector<128x256xbf16>, vector<8x256xf32> -> vector<8x256xf32>
      %43 = arith.addf %40, %42 : vector<8x256xf32>
      %44 = arith.truncf %0 : vector<8x128xf32> to vector<8x128xbf16>
      %cst_23 = arith.constant dense<0.000000e+00> : vector<8x256xf32>
      %45 = tpu.matmul %44, %17, %cst_23 {dimension_numbers = #tpu.dot_dimension_numbers<[1], [0], [0], [1], [0, 0, 1, 1], [], []>} : vector<8x128xbf16>, vector<128x256xbf16>, vector<8x256xf32> -> vector<8x256xf32>
      %46 = arith.addf %43, %45 : vector<8x256xf32>
      %47 = vector.extract_strided_slice %46 {offsets = [0, 0], sizes = [8, 128], strides = [1, 1]} : vector<8x256xf32> to vector<8x128xf32>
      %48 = arith.negf %47 : vector<8x128xf32>
      %49 = math.exp %48 : vector<8x128xf32>
      %cst_24 = arith.constant 1.000000e+00 : f32
      %50 = vector.broadcast %cst_24 : f32 to vector<8x128xf32>
      %51 = arith.addf %50, %49 : vector<8x128xf32>
      %52 = arith.divf %50, %51 : vector<8x128xf32>
      %53 = vector.extract_strided_slice %46 {offsets = [0, 128], sizes = [8, 128], strides = [1, 1]} : vector<8x256xf32> to vector<8x128xf32>
      %54 = arith.negf %53 : vector<8x128xf32>
      %55 = math.exp %54 : vector<8x128xf32>
      %cst_25 = arith.constant 1.000000e+00 : f32
      %56 = vector.broadcast %cst_25 : f32 to vector<8x128xf32>
      %57 = arith.addf %56, %55 : vector<8x128xf32>
      %58 = arith.divf %56, %57 : vector<8x128xf32>
      %c64_i32_26 = arith.constant 64 : i32
      %59 = tpu.dynamic_rotate %52 by %c64_i32_26 dim 1 : vector<8x128xf32>, i32 -> vector<8x128xf32>
      %c64_i32_27 = arith.constant 64 : i32
      %60 = tpu.dynamic_rotate %58 by %c64_i32_27 dim 1 : vector<8x128xf32>, i32 -> vector<8x128xf32>
      %cst_28 = arith.constant 2.000000e+00 : f32
      %61 = vector.broadcast %cst_28 : f32 to vector<8x128xf32>
      %62 = arith.mulf %61, %58 : vector<8x128xf32>
      %cst_29 = arith.constant 1.000000e+00 : f32
      %63 = vector.broadcast %cst_29 : f32 to vector<8x128xf32>
      %64 = arith.subf %62, %63 : vector<8x128xf32>
      %65 = arith.mulf %59, %0 : vector<8x128xf32>
      %66 = arith.mulf %52, %64 : vector<8x128xf32>
      %67 = arith.addf %65, %66 : vector<8x128xf32>
      %68 = math.tanh %67 : vector<8x128xf32>
      %69 = arith.mulf %60, %68 : vector<8x128xf32>
      %c0_30 = arith.constant 0 : index
      %70 = arith.index_cast %19 : i32 to index
      %c0_31 = arith.constant 0 : index
      %71 = vector.load %arg12[%c0_30, %70, %c0_31] : memref<1x64x128xf32, #tpu.memory_space<vmem>>, vector<1x8x128xf32>
      %72 = vector.shape_cast %71 : vector<1x8x128xf32> to vector<8x128xf32>
      %73 = vector.shape_cast %69 : vector<8x128xf32> to vector<1x8x128xf32>
      tpu.vector_store %arg12[%c0_30, %70, %c0_31], %73 {strides = array<i32>} : memref<1x64x128xf32, #tpu.memory_space<vmem>>, vector<1x8x128xf32>,
      %c1_i32 = arith.constant 1 : i32
      %c8_i32_32 = arith.constant 8 : i32
      %74 = arith.muli %c1_i32, %c8_i32_32 : i32
      %75 = tpu.assume_multiple %74, 8 : i32
      %76 = arith.index_cast %75 : i32 to index
      %c0_33 = arith.constant 0 : index
      %77 = vector.load %arg13[%76, %c0_33] : memref<64x128xf32, #tpu.memory_space<vmem>>, vector<8x128xf32>
      %78 = arith.truncf %38 : vector<8x128xf32> to vector<8x128xbf16>
      %cst_34 = arith.constant dense<0.000000e+00> : vector<8x128xf32>
      %79 = tpu.matmul %78, %15, %cst_34 {dimension_numbers = #tpu.dot_dimension_numbers<[1], [0], [0], [1], [0, 0, 1, 1], [], []>} : vector<8x128xbf16>, vector<128x128xbf16>, vector<8x128xf32> -> vector<8x128xf32>
      %80 = arith.addf %77, %79 : vector<8x128xf32>
      %81 = arith.negf %80 : vector<8x128xf32>
      %82 = math.exp %81 : vector<8x128xf32>
      %cst_35 = arith.constant 1.000000e+00 : f32
      %83 = vector.broadcast %cst_35 : f32 to vector<8x128xf32>
      %84 = arith.addf %83, %82 : vector<8x128xf32>
      %85 = arith.divf %83, %84 : vector<8x128xf32>
      %c64_i32_36 = arith.constant 64 : i32
      %86 = tpu.dynamic_rotate %85 by %c64_i32_36 dim 1 : vector<8x128xf32>, i32 -> vector<8x128xf32>
      %87 = arith.addf %79, %3 : vector<8x128xf32>
      %88 = arith.mulf %86, %87 : vector<8x128xf32>
      %89 = arith.addf %77, %88 : vector<8x128xf32>
      %90 = math.tanh %89 : vector<8x128xf32>
      %c32_i32_37 = arith.constant 32 : i32
      %91 = tpu.dynamic_rotate %85 by %c32_i32_37 dim 1 : vector<8x128xf32>, i32 -> vector<8x128xf32>
      %92 = arith.subf %38, %90 : vector<8x128xf32>
      %93 = arith.mulf %91, %92 : vector<8x128xf32>
      %94 = arith.addf %90, %93 : vector<8x128xf32>
      %95 = arith.index_cast %75 : i32 to index
      %c0_38 = arith.constant 0 : index
      %96 = vector.load %alloca[%95, %c0_38] : memref<64x256xf32, #tpu.memory_space<vmem>>, vector<8x256xf32>
      %97 = arith.truncf %94 : vector<8x128xf32> to vector<8x128xbf16>
      %cst_39 = arith.constant dense<0.000000e+00> : vector<8x256xf32>
      %98 = tpu.matmul %97, %16, %cst_39 {dimension_numbers = #tpu.dot_dimension_numbers<[1], [0], [0], [1], [0, 0, 1, 1], [], []>} : vector<8x128xbf16>, vector<128x256xbf16>, vector<8x256xf32> -> vector<8x256xf32>
      %99 = arith.addf %96, %98 : vector<8x256xf32>
      %100 = arith.truncf %69 : vector<8x128xf32> to vector<8x128xbf16>
      %cst_40 = arith.constant dense<0.000000e+00> : vector<8x256xf32>
      %101 = tpu.matmul %100, %17, %cst_40 {dimension_numbers = #tpu.dot_dimension_numbers<[1], [0], [0], [1], [0, 0, 1, 1], [], []>} : vector<8x128xbf16>, vector<128x256xbf16>, vector<8x256xf32> -> vector<8x256xf32>
      %102 = arith.addf %99, %101 : vector<8x256xf32>
      %103 = vector.extract_strided_slice %102 {offsets = [0, 0], sizes = [8, 128], strides = [1, 1]} : vector<8x256xf32> to vector<8x128xf32>
      %104 = arith.negf %103 : vector<8x128xf32>
      %105 = math.exp %104 : vector<8x128xf32>
      %cst_41 = arith.constant 1.000000e+00 : f32
      %106 = vector.broadcast %cst_41 : f32 to vector<8x128xf32>
      %107 = arith.addf %106, %105 : vector<8x128xf32>
      %108 = arith.divf %106, %107 : vector<8x128xf32>
      %109 = vector.extract_strided_slice %102 {offsets = [0, 128], sizes = [8, 128], strides = [1, 1]} : vector<8x256xf32> to vector<8x128xf32>
      %110 = arith.negf %109 : vector<8x128xf32>
      %111 = math.exp %110 : vector<8x128xf32>
      %cst_42 = arith.constant 1.000000e+00 : f32
      %112 = vector.broadcast %cst_42 : f32 to vector<8x128xf32>
      %113 = arith.addf %112, %111 : vector<8x128xf32>
      %114 = arith.divf %112, %113 : vector<8x128xf32>
      %c64_i32_43 = arith.constant 64 : i32
      %115 = tpu.dynamic_rotate %108 by %c64_i32_43 dim 1 : vector<8x128xf32>, i32 -> vector<8x128xf32>
      %c64_i32_44 = arith.constant 64 : i32
      %116 = tpu.dynamic_rotate %114 by %c64_i32_44 dim 1 : vector<8x128xf32>, i32 -> vector<8x128xf32>
      %cst_45 = arith.constant 2.000000e+00 : f32
      %117 = vector.broadcast %cst_45 : f32 to vector<8x128xf32>
      %118 = arith.mulf %117, %114 : vector<8x128xf32>
      %cst_46 = arith.constant 1.000000e+00 : f32
      %119 = vector.broadcast %cst_46 : f32 to vector<8x128xf32>
      %120 = arith.subf %118, %119 : vector<8x128xf32>
      %121 = arith.mulf %115, %67 : vector<8x128xf32>
      %122 = arith.mulf %108, %120 : vector<8x128xf32>
      %123 = arith.addf %121, %122 : vector<8x128xf32>
      %124 = math.tanh %123 : vector<8x128xf32>
      %125 = arith.mulf %116, %124 : vector<8x128xf32>
      %c0_47 = arith.constant 0 : index
      %126 = arith.index_cast %75 : i32 to index
      %c0_48 = arith.constant 0 : index
      %127 = vector.load %arg12[%c0_47, %126, %c0_48] : memref<1x64x128xf32, #tpu.memory_space<vmem>>, vector<1x8x128xf32>
      %128 = vector.shape_cast %127 : vector<1x8x128xf32> to vector<8x128xf32>
      %129 = vector.shape_cast %125 : vector<8x128xf32> to vector<1x8x128xf32>
      tpu.vector_store %arg12[%c0_47, %126, %c0_48], %129 {strides = array<i32>} : memref<1x64x128xf32, #tpu.memory_space<vmem>>, vector<1x8x128xf32>,
      %c2_i32 = arith.constant 2 : i32
      %c8_i32_49 = arith.constant 8 : i32
      %130 = arith.muli %c2_i32, %c8_i32_49 : i32
      %131 = tpu.assume_multiple %130, 8 : i32
      %132 = arith.index_cast %131 : i32 to index
      %c0_50 = arith.constant 0 : index
      %133 = vector.load %arg13[%132, %c0_50] : memref<64x128xf32, #tpu.memory_space<vmem>>, vector<8x128xf32>
      %134 = arith.truncf %94 : vector<8x128xf32> to vector<8x128xbf16>
      %cst_51 = arith.constant dense<0.000000e+00> : vector<8x128xf32>
      %135 = tpu.matmul %134, %15, %cst_51 {dimension_numbers = #tpu.dot_dimension_numbers<[1], [0], [0], [1], [0, 0, 1, 1], [], []>} : vector<8x128xbf16>, vector<128x128xbf16>, vector<8x128xf32> -> vector<8x128xf32>
      %136 = arith.addf %133, %135 : vector<8x128xf32>
      %137 = arith.negf %136 : vector<8x128xf32>
      %138 = math.exp %137 : vector<8x128xf32>
      %cst_52 = arith.constant 1.000000e+00 : f32
      %139 = vector.broadcast %cst_52 : f32 to vector<8x128xf32>
      %140 = arith.addf %139, %138 : vector<8x128xf32>
      %141 = arith.divf %139, %140 : vector<8x128xf32>
      %c64_i32_53 = arith.constant 64 : i32
      %142 = tpu.dynamic_rotate %141 by %c64_i32_53 dim 1 : vector<8x128xf32>, i32 -> vector<8x128xf32>
      %143 = arith.addf %135, %3 : vector<8x128xf32>
      %144 = arith.mulf %142, %143 : vector<8x128xf32>
      %145 = arith.addf %133, %144 : vector<8x128xf32>
      %146 = math.tanh %145 : vector<8x128xf32>
      %c32_i32_54 = arith.constant 32 : i32
      %147 = tpu.dynamic_rotate %141 by %c32_i32_54 dim 1 : vector<8x128xf32>, i32 -> vector<8x128xf32>
      %148 = arith.subf %94, %146 : vector<8x128xf32>
      %149 = arith.mulf %147, %148 : vector<8x128xf32>
      %150 = arith.addf %146, %149 : vector<8x128xf32>
      %151 = arith.index_cast %131 : i32 to index
      %c0_55 = arith.constant 0 : index
      %152 = vector.load %alloca[%151, %c0_55] : memref<64x256xf32, #tpu.memory_space<vmem>>, vector<8x256xf32>
      %153 = arith.truncf %150 : vector<8x128xf32> to vector<8x128xbf16>
      %cst_56 = arith.constant dense<0.000000e+00> : vector<8x256xf32>
      %154 = tpu.matmul %153, %16, %cst_56 {dimension_numbers = #tpu.dot_dimension_numbers<[1], [0], [0], [1], [0, 0, 1, 1], [], []>} : vector<8x128xbf16>, vector<128x256xbf16>, vector<8x256xf32> -> vector<8x256xf32>
      %155 = arith.addf %152, %154 : vector<8x256xf32>
      %156 = arith.truncf %125 : vector<8x128xf32> to vector<8x128xbf16>
      %cst_57 = arith.constant dense<0.000000e+00> : vector<8x256xf32>
      %157 = tpu.matmul %156, %17, %cst_57 {dimension_numbers = #tpu.dot_dimension_numbers<[1], [0], [0], [1], [0, 0, 1, 1], [], []>} : vector<8x128xbf16>, vector<128x256xbf16>, vector<8x256xf32> -> vector<8x256xf32>
      %158 = arith.addf %155, %157 : vector<8x256xf32>
      %159 = vector.extract_strided_slice %158 {offsets = [0, 0], sizes = [8, 128], strides = [1, 1]} : vector<8x256xf32> to vector<8x128xf32>
      %160 = arith.negf %159 : vector<8x128xf32>
      %161 = math.exp %160 : vector<8x128xf32>
      %cst_58 = arith.constant 1.000000e+00 : f32
      %162 = vector.broadcast %cst_58 : f32 to vector<8x128xf32>
      %163 = arith.addf %162, %161 : vector<8x128xf32>
      %164 = arith.divf %162, %163 : vector<8x128xf32>
      %165 = vector.extract_strided_slice %158 {offsets = [0, 128], sizes = [8, 128], strides = [1, 1]} : vector<8x256xf32> to vector<8x128xf32>
      %166 = arith.negf %165 : vector<8x128xf32>
      %167 = math.exp %166 : vector<8x128xf32>
      %cst_59 = arith.constant 1.000000e+00 : f32
      %168 = vector.broadcast %cst_59 : f32 to vector<8x128xf32>
      %169 = arith.addf %168, %167 : vector<8x128xf32>
      %170 = arith.divf %168, %169 : vector<8x128xf32>
      %c64_i32_60 = arith.constant 64 : i32
      %171 = tpu.dynamic_rotate %164 by %c64_i32_60 dim 1 : vector<8x128xf32>, i32 -> vector<8x128xf32>
      %c64_i32_61 = arith.constant 64 : i32
      %172 = tpu.dynamic_rotate %170 by %c64_i32_61 dim 1 : vector<8x128xf32>, i32 -> vector<8x128xf32>
      %cst_62 = arith.constant 2.000000e+00 : f32
      %173 = vector.broadcast %cst_62 : f32 to vector<8x128xf32>
      %174 = arith.mulf %173, %170 : vector<8x128xf32>
      %cst_63 = arith.constant 1.000000e+00 : f32
      %175 = vector.broadcast %cst_63 : f32 to vector<8x128xf32>
      %176 = arith.subf %174, %175 : vector<8x128xf32>
      %177 = arith.mulf %171, %123 : vector<8x128xf32>
      %178 = arith.mulf %164, %176 : vector<8x128xf32>
      %179 = arith.addf %177, %178 : vector<8x128xf32>
      %180 = math.tanh %179 : vector<8x128xf32>
      %181 = arith.mulf %172, %180 : vector<8x128xf32>
      %c0_64 = arith.constant 0 : index
      %182 = arith.index_cast %131 : i32 to index
      %c0_65 = arith.constant 0 : index
      %183 = vector.load %arg12[%c0_64, %182, %c0_65] : memref<1x64x128xf32, #tpu.memory_space<vmem>>, vector<1x8x128xf32>
      %184 = vector.shape_cast %183 : vector<1x8x128xf32> to vector<8x128xf32>
      %185 = vector.shape_cast %181 : vector<8x128xf32> to vector<1x8x128xf32>
      tpu.vector_store %arg12[%c0_64, %182, %c0_65], %185 {strides = array<i32>} : memref<1x64x128xf32, #tpu.memory_space<vmem>>, vector<1x8x128xf32>,
      %c3_i32 = arith.constant 3 : i32
      %c8_i32_66 = arith.constant 8 : i32
      %186 = arith.muli %c3_i32, %c8_i32_66 : i32
      %187 = tpu.assume_multiple %186, 8 : i32
      %188 = arith.index_cast %187 : i32 to index
      %c0_67 = arith.constant 0 : index
      %189 = vector.load %arg13[%188, %c0_67] : memref<64x128xf32, #tpu.memory_space<vmem>>, vector<8x128xf32>
      %190 = arith.truncf %150 : vector<8x128xf32> to vector<8x128xbf16>
      %cst_68 = arith.constant dense<0.000000e+00> : vector<8x128xf32>
      %191 = tpu.matmul %190, %15, %cst_68 {dimension_numbers = #tpu.dot_dimension_numbers<[1], [0], [0], [1], [0, 0, 1, 1], [], []>} : vector<8x128xbf16>, vector<128x128xbf16>, vector<8x128xf32> -> vector<8x128xf32>
      %192 = arith.addf %189, %191 : vector<8x128xf32>
      %193 = arith.negf %192 : vector<8x128xf32>
      %194 = math.exp %193 : vector<8x128xf32>
      %cst_69 = arith.constant 1.000000e+00 : f32
      %195 = vector.broadcast %cst_69 : f32 to vector<8x128xf32>
      %196 = arith.addf %195, %194 : vector<8x128xf32>
      %197 = arith.divf %195, %196 : vector<8x128xf32>
      %c64_i32_70 = arith.constant 64 : i32
      %198 = tpu.dynamic_rotate %197 by %c64_i32_70 dim 1 : vector<8x128xf32>, i32 -> vector<8x128xf32>
      %199 = arith.addf %191, %3 : vector<8x128xf32>
      %200 = arith.mulf %198, %199 : vector<8x128xf32>
      %201 = arith.addf %189, %200 : vector<8x128xf32>
      %202 = math.tanh %201 : vector<8x128xf32>
      %c32_i32_71 = arith.constant 32 : i32
      %203 = tpu.dynamic_rotate %197 by %c32_i32_71 dim 1 : vector<8x128xf32>, i32 -> vector<8x128xf32>
      %204 = arith.subf %150, %202 : vector<8x128xf32>
      %205 = arith.mulf %203, %204 : vector<8x128xf32>
      %206 = arith.addf %202, %205 : vector<8x128xf32>
      %207 = arith.index_cast %187 : i32 to index
      %c0_72 = arith.constant 0 : index
      %208 = vector.load %alloca[%207, %c0_72] : memref<64x256xf32, #tpu.memory_space<vmem>>, vector<8x256xf32>
      %209 = arith.truncf %206 : vector<8x128xf32> to vector<8x128xbf16>
      %cst_73 = arith.constant dense<0.000000e+00> : vector<8x256xf32>
      %210 = tpu.matmul %209, %16, %cst_73 {dimension_numbers = #tpu.dot_dimension_numbers<[1], [0], [0], [1], [0, 0, 1, 1], [], []>} : vector<8x128xbf16>, vector<128x256xbf16>, vector<8x256xf32> -> vector<8x256xf32>
      %211 = arith.addf %208, %210 : vector<8x256xf32>
      %212 = arith.truncf %181 : vector<8x128xf32> to vector<8x128xbf16>
      %cst_74 = arith.constant dense<0.000000e+00> : vector<8x256xf32>
      %213 = tpu.matmul %212, %17, %cst_74 {dimension_numbers = #tpu.dot_dimension_numbers<[1], [0], [0], [1], [0, 0, 1, 1], [], []>} : vector<8x128xbf16>, vector<128x256xbf16>, vector<8x256xf32> -> vector<8x256xf32>
      %214 = arith.addf %211, %213 : vector<8x256xf32>
      %215 = vector.extract_strided_slice %214 {offsets = [0, 0], sizes = [8, 128], strides = [1, 1]} : vector<8x256xf32> to vector<8x128xf32>
      %216 = arith.negf %215 : vector<8x128xf32>
      %217 = math.exp %216 : vector<8x128xf32>
      %cst_75 = arith.constant 1.000000e+00 : f32
      %218 = vector.broadcast %cst_75 : f32 to vector<8x128xf32>
      %219 = arith.addf %218, %217 : vector<8x128xf32>
      %220 = arith.divf %218, %219 : vector<8x128xf32>
      %221 = vector.extract_strided_slice %214 {offsets = [0, 128], sizes = [8, 128], strides = [1, 1]} : vector<8x256xf32> to vector<8x128xf32>
      %222 = arith.negf %221 : vector<8x128xf32>
      %223 = math.exp %222 : vector<8x128xf32>
      %cst_76 = arith.constant 1.000000e+00 : f32
      %224 = vector.broadcast %cst_76 : f32 to vector<8x128xf32>
      %225 = arith.addf %224, %223 : vector<8x128xf32>
      %226 = arith.divf %224, %225 : vector<8x128xf32>
      %c64_i32_77 = arith.constant 64 : i32
      %227 = tpu.dynamic_rotate %220 by %c64_i32_77 dim 1 : vector<8x128xf32>, i32 -> vector<8x128xf32>
      %c64_i32_78 = arith.constant 64 : i32
      %228 = tpu.dynamic_rotate %226 by %c64_i32_78 dim 1 : vector<8x128xf32>, i32 -> vector<8x128xf32>
      %cst_79 = arith.constant 2.000000e+00 : f32
      %229 = vector.broadcast %cst_79 : f32 to vector<8x128xf32>
      %230 = arith.mulf %229, %226 : vector<8x128xf32>
      %cst_80 = arith.constant 1.000000e+00 : f32
      %231 = vector.broadcast %cst_80 : f32 to vector<8x128xf32>
      %232 = arith.subf %230, %231 : vector<8x128xf32>
      %233 = arith.mulf %227, %179 : vector<8x128xf32>
      %234 = arith.mulf %220, %232 : vector<8x128xf32>
      %235 = arith.addf %233, %234 : vector<8x128xf32>
      %236 = math.tanh %235 : vector<8x128xf32>
      %237 = arith.mulf %228, %236 : vector<8x128xf32>
      %c0_81 = arith.constant 0 : index
      %238 = arith.index_cast %187 : i32 to index
      %c0_82 = arith.constant 0 : index
      %239 = vector.load %arg12[%c0_81, %238, %c0_82] : memref<1x64x128xf32, #tpu.memory_space<vmem>>, vector<1x8x128xf32>
      %240 = vector.shape_cast %239 : vector<1x8x128xf32> to vector<8x128xf32>
      %241 = vector.shape_cast %237 : vector<8x128xf32> to vector<1x8x128xf32>
      tpu.vector_store %arg12[%c0_81, %238, %c0_82], %241 {strides = array<i32>} : memref<1x64x128xf32, #tpu.memory_space<vmem>>, vector<1x8x128xf32>,
      %c4_i32 = arith.constant 4 : i32
      %c8_i32_83 = arith.constant 8 : i32
      %242 = arith.muli %c4_i32, %c8_i32_83 : i32
      %243 = tpu.assume_multiple %242, 8 : i32
      %244 = arith.index_cast %243 : i32 to index
      %c0_84 = arith.constant 0 : index
      %245 = vector.load %arg13[%244, %c0_84] : memref<64x128xf32, #tpu.memory_space<vmem>>, vector<8x128xf32>
      %246 = arith.truncf %206 : vector<8x128xf32> to vector<8x128xbf16>
      %cst_85 = arith.constant dense<0.000000e+00> : vector<8x128xf32>
      %247 = tpu.matmul %246, %15, %cst_85 {dimension_numbers = #tpu.dot_dimension_numbers<[1], [0], [0], [1], [0, 0, 1, 1], [], []>} : vector<8x128xbf16>, vector<128x128xbf16>, vector<8x128xf32> -> vector<8x128xf32>
      %248 = arith.addf %245, %247 : vector<8x128xf32>
      %249 = arith.negf %248 : vector<8x128xf32>
      %250 = math.exp %249 : vector<8x128xf32>
      %cst_86 = arith.constant 1.000000e+00 : f32
      %251 = vector.broadcast %cst_86 : f32 to vector<8x128xf32>
      %252 = arith.addf %251, %250 : vector<8x128xf32>
      %253 = arith.divf %251, %252 : vector<8x128xf32>
      %c64_i32_87 = arith.constant 64 : i32
      %254 = tpu.dynamic_rotate %253 by %c64_i32_87 dim 1 : vector<8x128xf32>, i32 -> vector<8x128xf32>
      %255 = arith.addf %247, %3 : vector<8x128xf32>
      %256 = arith.mulf %254, %255 : vector<8x128xf32>
      %257 = arith.addf %245, %256 : vector<8x128xf32>
      %258 = math.tanh %257 : vector<8x128xf32>
      %c32_i32_88 = arith.constant 32 : i32
      %259 = tpu.dynamic_rotate %253 by %c32_i32_88 dim 1 : vector<8x128xf32>, i32 -> vector<8x128xf32>
      %260 = arith.subf %206, %258 : vector<8x128xf32>
      %261 = arith.mulf %259, %260 : vector<8x128xf32>
      %262 = arith.addf %258, %261 : vector<8x128xf32>
      %263 = arith.index_cast %243 : i32 to index
      %c0_89 = arith.constant 0 : index
      %264 = vector.load %alloca[%263, %c0_89] : memref<64x256xf32, #tpu.memory_space<vmem>>, vector<8x256xf32>
      %265 = arith.truncf %262 : vector<8x128xf32> to vector<8x128xbf16>
      %cst_90 = arith.constant dense<0.000000e+00> : vector<8x256xf32>
      %266 = tpu.matmul %265, %16, %cst_90 {dimension_numbers = #tpu.dot_dimension_numbers<[1], [0], [0], [1], [0, 0, 1, 1], [], []>} : vector<8x128xbf16>, vector<128x256xbf16>, vector<8x256xf32> -> vector<8x256xf32>
      %267 = arith.addf %264, %266 : vector<8x256xf32>
      %268 = arith.truncf %237 : vector<8x128xf32> to vector<8x128xbf16>
      %cst_91 = arith.constant dense<0.000000e+00> : vector<8x256xf32>
      %269 = tpu.matmul %268, %17, %cst_91 {dimension_numbers = #tpu.dot_dimension_numbers<[1], [0], [0], [1], [0, 0, 1, 1], [], []>} : vector<8x128xbf16>, vector<128x256xbf16>, vector<8x256xf32> -> vector<8x256xf32>
      %270 = arith.addf %267, %269 : vector<8x256xf32>
      %271 = vector.extract_strided_slice %270 {offsets = [0, 0], sizes = [8, 128], strides = [1, 1]} : vector<8x256xf32> to vector<8x128xf32>
      %272 = arith.negf %271 : vector<8x128xf32>
      %273 = math.exp %272 : vector<8x128xf32>
      %cst_92 = arith.constant 1.000000e+00 : f32
      %274 = vector.broadcast %cst_92 : f32 to vector<8x128xf32>
      %275 = arith.addf %274, %273 : vector<8x128xf32>
      %276 = arith.divf %274, %275 : vector<8x128xf32>
      %277 = vector.extract_strided_slice %270 {offsets = [0, 128], sizes = [8, 128], strides = [1, 1]} : vector<8x256xf32> to vector<8x128xf32>
      %278 = arith.negf %277 : vector<8x128xf32>
      %279 = math.exp %278 : vector<8x128xf32>
      %cst_93 = arith.constant 1.000000e+00 : f32
      %280 = vector.broadcast %cst_93 : f32 to vector<8x128xf32>
      %281 = arith.addf %280, %279 : vector<8x128xf32>
      %282 = arith.divf %280, %281 : vector<8x128xf32>
      %c64_i32_94 = arith.constant 64 : i32
      %283 = tpu.dynamic_rotate %276 by %c64_i32_94 dim 1 : vector<8x128xf32>, i32 -> vector<8x128xf32>
      %c64_i32_95 = arith.constant 64 : i32
      %284 = tpu.dynamic_rotate %282 by %c64_i32_95 dim 1 : vector<8x128xf32>, i32 -> vector<8x128xf32>
      %cst_96 = arith.constant 2.000000e+00 : f32
      %285 = vector.broadcast %cst_96 : f32 to vector<8x128xf32>
      %286 = arith.mulf %285, %282 : vector<8x128xf32>
      %cst_97 = arith.constant 1.000000e+00 : f32
      %287 = vector.broadcast %cst_97 : f32 to vector<8x128xf32>
      %288 = arith.subf %286, %287 : vector<8x128xf32>
      %289 = arith.mulf %283, %235 : vector<8x128xf32>
      %290 = arith.mulf %276, %288 : vector<8x128xf32>
      %291 = arith.addf %289, %290 : vector<8x128xf32>
      %292 = math.tanh %291 : vector<8x128xf32>
      %293 = arith.mulf %284, %292 : vector<8x128xf32>
      %c0_98 = arith.constant 0 : index
      %294 = arith.index_cast %243 : i32 to index
      %c0_99 = arith.constant 0 : index
      %295 = vector.load %arg12[%c0_98, %294, %c0_99] : memref<1x64x128xf32, #tpu.memory_space<vmem>>, vector<1x8x128xf32>
      %296 = vector.shape_cast %295 : vector<1x8x128xf32> to vector<8x128xf32>
      %297 = vector.shape_cast %293 : vector<8x128xf32> to vector<1x8x128xf32>
      tpu.vector_store %arg12[%c0_98, %294, %c0_99], %297 {strides = array<i32>} : memref<1x64x128xf32, #tpu.memory_space<vmem>>, vector<1x8x128xf32>,
      %c5_i32 = arith.constant 5 : i32
      %c8_i32_100 = arith.constant 8 : i32
      %298 = arith.muli %c5_i32, %c8_i32_100 : i32
      %299 = tpu.assume_multiple %298, 8 : i32
      %300 = arith.index_cast %299 : i32 to index
      %c0_101 = arith.constant 0 : index
      %301 = vector.load %arg13[%300, %c0_101] : memref<64x128xf32, #tpu.memory_space<vmem>>, vector<8x128xf32>
      %302 = arith.truncf %262 : vector<8x128xf32> to vector<8x128xbf16>
      %cst_102 = arith.constant dense<0.000000e+00> : vector<8x128xf32>
      %303 = tpu.matmul %302, %15, %cst_102 {dimension_numbers = #tpu.dot_dimension_numbers<[1], [0], [0], [1], [0, 0, 1, 1], [], []>} : vector<8x128xbf16>, vector<128x128xbf16>, vector<8x128xf32> -> vector<8x128xf32>
      %304 = arith.addf %301, %303 : vector<8x128xf32>
      %305 = arith.negf %304 : vector<8x128xf32>
      %306 = math.exp %305 : vector<8x128xf32>
      %cst_103 = arith.constant 1.000000e+00 : f32
      %307 = vector.broadcast %cst_103 : f32 to vector<8x128xf32>
      %308 = arith.addf %307, %306 : vector<8x128xf32>
      %309 = arith.divf %307, %308 : vector<8x128xf32>
      %c64_i32_104 = arith.constant 64 : i32
      %310 = tpu.dynamic_rotate %309 by %c64_i32_104 dim 1 : vector<8x128xf32>, i32 -> vector<8x128xf32>
      %311 = arith.addf %303, %3 : vector<8x128xf32>
      %312 = arith.mulf %310, %311 : vector<8x128xf32>
      %313 = arith.addf %301, %312 : vector<8x128xf32>
      %314 = math.tanh %313 : vector<8x128xf32>
      %c32_i32_105 = arith.constant 32 : i32
      %315 = tpu.dynamic_rotate %309 by %c32_i32_105 dim 1 : vector<8x128xf32>, i32 -> vector<8x128xf32>
      %316 = arith.subf %262, %314 : vector<8x128xf32>
      %317 = arith.mulf %315, %316 : vector<8x128xf32>
      %318 = arith.addf %314, %317 : vector<8x128xf32>
      %319 = arith.index_cast %299 : i32 to index
      %c0_106 = arith.constant 0 : index
      %320 = vector.load %alloca[%319, %c0_106] : memref<64x256xf32, #tpu.memory_space<vmem>>, vector<8x256xf32>
      %321 = arith.truncf %318 : vector<8x128xf32> to vector<8x128xbf16>
      %cst_107 = arith.constant dense<0.000000e+00> : vector<8x256xf32>
      %322 = tpu.matmul %321, %16, %cst_107 {dimension_numbers = #tpu.dot_dimension_numbers<[1], [0], [0], [1], [0, 0, 1, 1], [], []>} : vector<8x128xbf16>, vector<128x256xbf16>, vector<8x256xf32> -> vector<8x256xf32>
      %323 = arith.addf %320, %322 : vector<8x256xf32>
      %324 = arith.truncf %293 : vector<8x128xf32> to vector<8x128xbf16>
      %cst_108 = arith.constant dense<0.000000e+00> : vector<8x256xf32>
      %325 = tpu.matmul %324, %17, %cst_108 {dimension_numbers = #tpu.dot_dimension_numbers<[1], [0], [0], [1], [0, 0, 1, 1], [], []>} : vector<8x128xbf16>, vector<128x256xbf16>, vector<8x256xf32> -> vector<8x256xf32>
      %326 = arith.addf %323, %325 : vector<8x256xf32>
      %327 = vector.extract_strided_slice %326 {offsets = [0, 0], sizes = [8, 128], strides = [1, 1]} : vector<8x256xf32> to vector<8x128xf32>
      %328 = arith.negf %327 : vector<8x128xf32>
      %329 = math.exp %328 : vector<8x128xf32>
      %cst_109 = arith.constant 1.000000e+00 : f32
      %330 = vector.broadcast %cst_109 : f32 to vector<8x128xf32>
      %331 = arith.addf %330, %329 : vector<8x128xf32>
      %332 = arith.divf %330, %331 : vector<8x128xf32>
      %333 = vector.extract_strided_slice %326 {offsets = [0, 128], sizes = [8, 128], strides = [1, 1]} : vector<8x256xf32> to vector<8x128xf32>
      %334 = arith.negf %333 : vector<8x128xf32>
      %335 = math.exp %334 : vector<8x128xf32>
      %cst_110 = arith.constant 1.000000e+00 : f32
      %336 = vector.broadcast %cst_110 : f32 to vector<8x128xf32>
      %337 = arith.addf %336, %335 : vector<8x128xf32>
      %338 = arith.divf %336, %337 : vector<8x128xf32>
      %c64_i32_111 = arith.constant 64 : i32
      %339 = tpu.dynamic_rotate %332 by %c64_i32_111 dim 1 : vector<8x128xf32>, i32 -> vector<8x128xf32>
      %c64_i32_112 = arith.constant 64 : i32
      %340 = tpu.dynamic_rotate %338 by %c64_i32_112 dim 1 : vector<8x128xf32>, i32 -> vector<8x128xf32>
      %cst_113 = arith.constant 2.000000e+00 : f32
      %341 = vector.broadcast %cst_113 : f32 to vector<8x128xf32>
      %342 = arith.mulf %341, %338 : vector<8x128xf32>
      %cst_114 = arith.constant 1.000000e+00 : f32
      %343 = vector.broadcast %cst_114 : f32 to vector<8x128xf32>
      %344 = arith.subf %342, %343 : vector<8x128xf32>
      %345 = arith.mulf %339, %291 : vector<8x128xf32>
      %346 = arith.mulf %332, %344 : vector<8x128xf32>
      %347 = arith.addf %345, %346 : vector<8x128xf32>
      %348 = math.tanh %347 : vector<8x128xf32>
      %349 = arith.mulf %340, %348 : vector<8x128xf32>
      %c0_115 = arith.constant 0 : index
      %350 = arith.index_cast %299 : i32 to index
      %c0_116 = arith.constant 0 : index
      %351 = vector.load %arg12[%c0_115, %350, %c0_116] : memref<1x64x128xf32, #tpu.memory_space<vmem>>, vector<1x8x128xf32>
      %352 = vector.shape_cast %351 : vector<1x8x128xf32> to vector<8x128xf32>
      %353 = vector.shape_cast %349 : vector<8x128xf32> to vector<1x8x128xf32>
      tpu.vector_store %arg12[%c0_115, %350, %c0_116], %353 {strides = array<i32>} : memref<1x64x128xf32, #tpu.memory_space<vmem>>, vector<1x8x128xf32>,
      %c6_i32 = arith.constant 6 : i32
      %c8_i32_117 = arith.constant 8 : i32
      %354 = arith.muli %c6_i32, %c8_i32_117 : i32
      %355 = tpu.assume_multiple %354, 8 : i32
      %356 = arith.index_cast %355 : i32 to index
      %c0_118 = arith.constant 0 : index
      %357 = vector.load %arg13[%356, %c0_118] : memref<64x128xf32, #tpu.memory_space<vmem>>, vector<8x128xf32>
      %358 = arith.truncf %318 : vector<8x128xf32> to vector<8x128xbf16>
      %cst_119 = arith.constant dense<0.000000e+00> : vector<8x128xf32>
      %359 = tpu.matmul %358, %15, %cst_119 {dimension_numbers = #tpu.dot_dimension_numbers<[1], [0], [0], [1], [0, 0, 1, 1], [], []>} : vector<8x128xbf16>, vector<128x128xbf16>, vector<8x128xf32> -> vector<8x128xf32>
      %360 = arith.addf %357, %359 : vector<8x128xf32>
      %361 = arith.negf %360 : vector<8x128xf32>
      %362 = math.exp %361 : vector<8x128xf32>
      %cst_120 = arith.constant 1.000000e+00 : f32
      %363 = vector.broadcast %cst_120 : f32 to vector<8x128xf32>
      %364 = arith.addf %363, %362 : vector<8x128xf32>
      %365 = arith.divf %363, %364 : vector<8x128xf32>
      %c64_i32_121 = arith.constant 64 : i32
      %366 = tpu.dynamic_rotate %365 by %c64_i32_121 dim 1 : vector<8x128xf32>, i32 -> vector<8x128xf32>
      %367 = arith.addf %359, %3 : vector<8x128xf32>
      %368 = arith.mulf %366, %367 : vector<8x128xf32>
      %369 = arith.addf %357, %368 : vector<8x128xf32>
      %370 = math.tanh %369 : vector<8x128xf32>
      %c32_i32_122 = arith.constant 32 : i32
      %371 = tpu.dynamic_rotate %365 by %c32_i32_122 dim 1 : vector<8x128xf32>, i32 -> vector<8x128xf32>
      %372 = arith.subf %318, %370 : vector<8x128xf32>
      %373 = arith.mulf %371, %372 : vector<8x128xf32>
      %374 = arith.addf %370, %373 : vector<8x128xf32>
      %375 = arith.index_cast %355 : i32 to index
      %c0_123 = arith.constant 0 : index
      %376 = vector.load %alloca[%375, %c0_123] : memref<64x256xf32, #tpu.memory_space<vmem>>, vector<8x256xf32>
      %377 = arith.truncf %374 : vector<8x128xf32> to vector<8x128xbf16>
      %cst_124 = arith.constant dense<0.000000e+00> : vector<8x256xf32>
      %378 = tpu.matmul %377, %16, %cst_124 {dimension_numbers = #tpu.dot_dimension_numbers<[1], [0], [0], [1], [0, 0, 1, 1], [], []>} : vector<8x128xbf16>, vector<128x256xbf16>, vector<8x256xf32> -> vector<8x256xf32>
      %379 = arith.addf %376, %378 : vector<8x256xf32>
      %380 = arith.truncf %349 : vector<8x128xf32> to vector<8x128xbf16>
      %cst_125 = arith.constant dense<0.000000e+00> : vector<8x256xf32>
      %381 = tpu.matmul %380, %17, %cst_125 {dimension_numbers = #tpu.dot_dimension_numbers<[1], [0], [0], [1], [0, 0, 1, 1], [], []>} : vector<8x128xbf16>, vector<128x256xbf16>, vector<8x256xf32> -> vector<8x256xf32>
      %382 = arith.addf %379, %381 : vector<8x256xf32>
      %383 = vector.extract_strided_slice %382 {offsets = [0, 0], sizes = [8, 128], strides = [1, 1]} : vector<8x256xf32> to vector<8x128xf32>
      %384 = arith.negf %383 : vector<8x128xf32>
      %385 = math.exp %384 : vector<8x128xf32>
      %cst_126 = arith.constant 1.000000e+00 : f32
      %386 = vector.broadcast %cst_126 : f32 to vector<8x128xf32>
      %387 = arith.addf %386, %385 : vector<8x128xf32>
      %388 = arith.divf %386, %387 : vector<8x128xf32>
      %389 = vector.extract_strided_slice %382 {offsets = [0, 128], sizes = [8, 128], strides = [1, 1]} : vector<8x256xf32> to vector<8x128xf32>
      %390 = arith.negf %389 : vector<8x128xf32>
      %391 = math.exp %390 : vector<8x128xf32>
      %cst_127 = arith.constant 1.000000e+00 : f32
      %392 = vector.broadcast %cst_127 : f32 to vector<8x128xf32>
      %393 = arith.addf %392, %391 : vector<8x128xf32>
      %394 = arith.divf %392, %393 : vector<8x128xf32>
      %c64_i32_128 = arith.constant 64 : i32
      %395 = tpu.dynamic_rotate %388 by %c64_i32_128 dim 1 : vector<8x128xf32>, i32 -> vector<8x128xf32>
      %c64_i32_129 = arith.constant 64 : i32
      %396 = tpu.dynamic_rotate %394 by %c64_i32_129 dim 1 : vector<8x128xf32>, i32 -> vector<8x128xf32>
      %cst_130 = arith.constant 2.000000e+00 : f32
      %397 = vector.broadcast %cst_130 : f32 to vector<8x128xf32>
      %398 = arith.mulf %397, %394 : vector<8x128xf32>
      %cst_131 = arith.constant 1.000000e+00 : f32
      %399 = vector.broadcast %cst_131 : f32 to vector<8x128xf32>
      %400 = arith.subf %398, %399 : vector<8x128xf32>
      %401 = arith.mulf %395, %347 : vector<8x128xf32>
      %402 = arith.mulf %388, %400 : vector<8x128xf32>
      %403 = arith.addf %401, %402 : vector<8x128xf32>
      %404 = math.tanh %403 : vector<8x128xf32>
      %405 = arith.mulf %396, %404 : vector<8x128xf32>
      %c0_132 = arith.constant 0 : index
      %406 = arith.index_cast %355 : i32 to index
      %c0_133 = arith.constant 0 : index
      %407 = vector.load %arg12[%c0_132, %406, %c0_133] : memref<1x64x128xf32, #tpu.memory_space<vmem>>, vector<1x8x128xf32>
      %408 = vector.shape_cast %407 : vector<1x8x128xf32> to vector<8x128xf32>
      %409 = vector.shape_cast %405 : vector<8x128xf32> to vector<1x8x128xf32>
      tpu.vector_store %arg12[%c0_132, %406, %c0_133], %409 {strides = array<i32>} : memref<1x64x128xf32, #tpu.memory_space<vmem>>, vector<1x8x128xf32>,
      %c7_i32 = arith.constant 7 : i32
      %c8_i32_134 = arith.constant 8 : i32
      %410 = arith.muli %c7_i32, %c8_i32_134 : i32
      %411 = tpu.assume_multiple %410, 8 : i32
      %412 = arith.index_cast %411 : i32 to index
      %c0_135 = arith.constant 0 : index
      %413 = vector.load %arg13[%412, %c0_135] : memref<64x128xf32, #tpu.memory_space<vmem>>, vector<8x128xf32>
      %414 = arith.truncf %374 : vector<8x128xf32> to vector<8x128xbf16>
      %cst_136 = arith.constant dense<0.000000e+00> : vector<8x128xf32>
      %415 = tpu.matmul %414, %15, %cst_136 {dimension_numbers = #tpu.dot_dimension_numbers<[1], [0], [0], [1], [0, 0, 1, 1], [], []>} : vector<8x128xbf16>, vector<128x128xbf16>, vector<8x128xf32> -> vector<8x128xf32>
      %416 = arith.addf %413, %415 : vector<8x128xf32>
      %417 = arith.negf %416 : vector<8x128xf32>
      %418 = math.exp %417 : vector<8x128xf32>
      %cst_137 = arith.constant 1.000000e+00 : f32
      %419 = vector.broadcast %cst_137 : f32 to vector<8x128xf32>
      %420 = arith.addf %419, %418 : vector<8x128xf32>
      %421 = arith.divf %419, %420 : vector<8x128xf32>
      %c64_i32_138 = arith.constant 64 : i32
      %422 = tpu.dynamic_rotate %421 by %c64_i32_138 dim 1 : vector<8x128xf32>, i32 -> vector<8x128xf32>
      %423 = arith.addf %415, %3 : vector<8x128xf32>
      %424 = arith.mulf %422, %423 : vector<8x128xf32>
      %425 = arith.addf %413, %424 : vector<8x128xf32>
      %426 = math.tanh %425 : vector<8x128xf32>
      %c32_i32_139 = arith.constant 32 : i32
      %427 = tpu.dynamic_rotate %421 by %c32_i32_139 dim 1 : vector<8x128xf32>, i32 -> vector<8x128xf32>
      %428 = arith.subf %374, %426 : vector<8x128xf32>
      %429 = arith.mulf %427, %428 : vector<8x128xf32>
      %430 = arith.addf %426, %429 : vector<8x128xf32>
      %431 = arith.index_cast %411 : i32 to index
      %c0_140 = arith.constant 0 : index
      %432 = vector.load %alloca[%431, %c0_140] : memref<64x256xf32, #tpu.memory_space<vmem>>, vector<8x256xf32>
      %433 = arith.truncf %430 : vector<8x128xf32> to vector<8x128xbf16>
      %cst_141 = arith.constant dense<0.000000e+00> : vector<8x256xf32>
      %434 = tpu.matmul %433, %16, %cst_141 {dimension_numbers = #tpu.dot_dimension_numbers<[1], [0], [0], [1], [0, 0, 1, 1], [], []>} : vector<8x128xbf16>, vector<128x256xbf16>, vector<8x256xf32> -> vector<8x256xf32>
      %435 = arith.addf %432, %434 : vector<8x256xf32>
      %436 = arith.truncf %405 : vector<8x128xf32> to vector<8x128xbf16>
      %cst_142 = arith.constant dense<0.000000e+00> : vector<8x256xf32>
      %437 = tpu.matmul %436, %17, %cst_142 {dimension_numbers = #tpu.dot_dimension_numbers<[1], [0], [0], [1], [0, 0, 1, 1], [], []>} : vector<8x128xbf16>, vector<128x256xbf16>, vector<8x256xf32> -> vector<8x256xf32>
      %438 = arith.addf %435, %437 : vector<8x256xf32>
      %439 = vector.extract_strided_slice %438 {offsets = [0, 0], sizes = [8, 128], strides = [1, 1]} : vector<8x256xf32> to vector<8x128xf32>
      %440 = arith.negf %439 : vector<8x128xf32>
      %441 = math.exp %440 : vector<8x128xf32>
      %cst_143 = arith.constant 1.000000e+00 : f32
      %442 = vector.broadcast %cst_143 : f32 to vector<8x128xf32>
      %443 = arith.addf %442, %441 : vector<8x128xf32>
      %444 = arith.divf %442, %443 : vector<8x128xf32>
      %445 = vector.extract_strided_slice %438 {offsets = [0, 128], sizes = [8, 128], strides = [1, 1]} : vector<8x256xf32> to vector<8x128xf32>
      %446 = arith.negf %445 : vector<8x128xf32>
      %447 = math.exp %446 : vector<8x128xf32>
      %cst_144 = arith.constant 1.000000e+00 : f32
      %448 = vector.broadcast %cst_144 : f32 to vector<8x128xf32>
      %449 = arith.addf %448, %447 : vector<8x128xf32>
      %450 = arith.divf %448, %449 : vector<8x128xf32>
      %c64_i32_145 = arith.constant 64 : i32
      %451 = tpu.dynamic_rotate %444 by %c64_i32_145 dim 1 : vector<8x128xf32>, i32 -> vector<8x128xf32>
      %c64_i32_146 = arith.constant 64 : i32
      %452 = tpu.dynamic_rotate %450 by %c64_i32_146 dim 1 : vector<8x128xf32>, i32 -> vector<8x128xf32>
      %cst_147 = arith.constant 2.000000e+00 : f32
      %453 = vector.broadcast %cst_147 : f32 to vector<8x128xf32>
      %454 = arith.mulf %453, %450 : vector<8x128xf32>
      %cst_148 = arith.constant 1.000000e+00 : f32
      %455 = vector.broadcast %cst_148 : f32 to vector<8x128xf32>
      %456 = arith.subf %454, %455 : vector<8x128xf32>
      %457 = arith.mulf %451, %403 : vector<8x128xf32>
      %458 = arith.mulf %444, %456 : vector<8x128xf32>
      %459 = arith.addf %457, %458 : vector<8x128xf32>
      %460 = math.tanh %459 : vector<8x128xf32>
      %461 = arith.mulf %452, %460 : vector<8x128xf32>
      %c0_149 = arith.constant 0 : index
      %462 = arith.index_cast %411 : i32 to index
      %c0_150 = arith.constant 0 : index
      %463 = vector.load %arg12[%c0_149, %462, %c0_150] : memref<1x64x128xf32, #tpu.memory_space<vmem>>, vector<1x8x128xf32>
      %464 = vector.shape_cast %463 : vector<1x8x128xf32> to vector<8x128xf32>
      %465 = vector.shape_cast %461 : vector<8x128xf32> to vector<1x8x128xf32>
      tpu.vector_store %arg12[%c0_149, %462, %c0_150], %465 {strides = array<i32>} : memref<1x64x128xf32, #tpu.memory_space<vmem>>, vector<1x8x128xf32>,
      %c8_i32_151 = arith.constant 8 : i32
      tpu.yield
    }) : () -> ()
    return
  }
  func.func @transform_0(%arg0: i32) -> (i32, i32, i32) {
    %c0_i32 = arith.constant 0 : i32
    %c0_i32_0 = arith.constant 0 : i32
    %c0_i32_1 = arith.constant 0 : i32
    return %arg0, %c0_i32, %c0_i32_0 : i32, i32, i32
  }
  func.func @transform_1(%arg0: i32) -> (i32, i32) {
    %c0_i32 = arith.constant 0 : i32
    %c0_i32_0 = arith.constant 0 : i32
    %c0_i32_1 = arith.constant 0 : i32
    return %c0_i32, %c0_i32_0 : i32, i32
  }
  func.func @transform_2(%arg0: i32) -> (i32, i32) {
    %c0_i32 = arith.constant 0 : i32
    %c0_i32_0 = arith.constant 0 : i32
    %c0_i32_1 = arith.constant 0 : i32
    return %c0_i32, %c0_i32_0 : i32, i32
  }
  func.func @transform_3(%arg0: i32) -> (i32, i32) {
    %c0_i32 = arith.constant 0 : i32
    %c0_i32_0 = arith.constant 0 : i32
    %c0_i32_1 = arith.constant 0 : i32
    return %c0_i32, %c0_i32_0 : i32, i32
  }
  func.func @transform_4(%arg0: i32) -> (i32, i32) {
    %c0_i32 = arith.constant 0 : i32
    %c0_i32_0 = arith.constant 0 : i32
    %c0_i32_1 = arith.constant 0 : i32
    return %c0_i32, %c0_i32_0 : i32, i32
  }
  func.func @transform_5(%arg0: i32) -> (i32, i32) {
    %c0_i32 = arith.constant 0 : i32
    %c0_i32_0 = arith.constant 0 : i32
    %c0_i32_1 = arith.constant 0 : i32
    return %c0_i32, %c0_i32_0 : i32, i32
  }
  func.func @transform_6(%arg0: i32) -> (i32, i32) {
    %c0_i32 = arith.constant 0 : i32
    %c0_i32_0 = arith.constant 0 : i32
    %c0_i32_1 = arith.constant 0 : i32
    return %c0_i32, %c0_i32_0 : i32, i32
  }
  func.func @transform_7(%arg0: i32) -> (i32, i32) {
    %c0_i32 = arith.constant 0 : i32
    %c0_i32_0 = arith.constant 0 : i32
    %c0_i32_1 = arith.constant 0 : i32
    return %c0_i32, %c0_i32_0 : i32, i32
  }
  func.func @transform_8(%arg0: i32) -> (i32, i32) {
    %c0_i32 = arith.constant 0 : i32
    %c0_i32_0 = arith.constant 0 : i32
    %c0_i32_1 = arith.constant 0 : i32
    return %c0_i32, %c0_i32_0 : i32, i32
  }
  func.func @transform_9(%arg0: i32) -> (i32, i32) {
    %c0_i32 = arith.constant 0 : i32
    %c0_i32_0 = arith.constant 0 : i32
    %c0_i32_1 = arith.constant 0 : i32
    return %c0_i32, %c0_i32_0 : i32, i32
  }
  func.func @transform_10(%arg0: i32) -> (i32, i32) {
    %c0_i32 = arith.constant 0 : i32
    %c0_i32_0 = arith.constant 0 : i32
    %c0_i32_1 = arith.constant 0 : i32
    return %c0_i32, %c0_i32_0 : i32, i32
  }
  func.func @transform_11(%arg0: i32) -> (i32, i32, i32) {
    %c0_i32 = arith.constant 0 : i32
    %c0_i32_0 = arith.constant 0 : i32
    %c0_i32_1 = arith.constant 0 : i32
    return %arg0, %c0_i32, %c0_i32_0 : i32, i32, i32
  }
}

</mosaic_0001>

<llo_original>
// kernel: tpu_custom_call.1
$region0: #{tpu_custom_call.1}
  #allocation0 [shape = 'u32[]', space=smem, size = 0x4, offset = 0x4, fixed_abs, tag = 'smem constant byte address 0x4 - core index']
  #allocation1 [shape = 'u32[144,128]{1,0:T(1,128)}', space=vmem, size = 0x12000, scoped, tag = 'internal scratch']
  #allocation2 [shape = 'f32[64,128]{1,0:T(8,128)}', space=vmem, size = 0x8000, scoped, tag = 'scratch operand']
  #allocation3 [shape = 'f32[64,128]{1,0:T(8,128)}', space=vmem, size = 0x8000, scoped, tag = 'scratch operand']
  %s0 = inlined_call_operand.vmem [shape: bf16[1,64,32], index: 0, kind: input, shape index: {}]
  %s1 = inlined_call_operand.hbm [shape: bf16[32,256], index: 1, kind: input, shape index: {}]
  %s2 = inlined_call_operand.vmem [shape: f32[1,256], index: 2, kind: input, shape index: {}]
  %s3 = inlined_call_operand.hbm [shape: bf16[128,128], index: 3, kind: input, shape index: {}]
  %s4 = inlined_call_operand.hbm [shape: f32[1,128], index: 4, kind: input, shape index: {}]
  %s5 = inlined_call_operand.vmem [shape: bf16[128,128], index: 5, kind: input, shape index: {}]
  %s6 = inlined_call_operand.vmem [shape: f32[1,128], index: 6, kind: input, shape index: {}]
  %s7 = inlined_call_operand.hbm [shape: bf16[128,256], index: 7, kind: input, shape index: {}]
  %s8 = inlined_call_operand.hbm [shape: bf16[128,256], index: 8, kind: input, shape index: {}]
  %s9 = inlined_call_operand.hbm [shape: bf16[128,256], index: 9, kind: input, shape index: {}]
  %s10 = inlined_call_operand.vmem [shape: f32[1,256], index: 10, kind: input, shape index: {}]
  %s11 = inlined_call_operand.hbm [shape: f32[1,64,128], index: 11, kind: output, shape index: {}]
  %s12 = sld [smem:[#allocation0]]
  $region80: #{tpu_custom_call.1} parent=0
    _
  %s14 = ssub.s32 1, %s12
  %s15 = scalar_select 0, %s14, %s12
  $region1: #{tpu_custom_call.1} parent=0
    #allocation4 [shape = 'u8[16384]{0}', space=vmem, size = 0x4000, scoped, tag = 'input window, operand 1, single buffered']
    #allocation5 [shape = 's32[1]{0}', space=sflag, size = 0x4, scoped, tag = 'scoped memory for tpu_custom_call.1']
    #allocation6 [shape = 's32[1]{0}', space=sflag, size = 0x4, scoped, tag = 'scoped memory for tpu_custom_call.1']
    #allocation7 [shape = 'u8[32768]{0}', space=vmem, size = 0x8000, scoped, tag = 'input window, operand 3, single buffered']
    #allocation8 [shape = 's32[1]{0}', space=sflag, size = 0x4, scoped, tag = 'scoped memory for tpu_custom_call.1']
    #allocation9 [shape = 'u8[512]{0}', space=vmem, size = 0x400, scoped, tag = 'input window, operand 4, single buffered']
    #allocation10 [shape = 'u8[65536]{0}', space=vmem, size = 0x10000, scoped, tag = 'input window, operand 7, single buffered']
    #allocation11 [shape = 's32[1]{0}', space=sflag, size = 0x4, scoped, tag = 'scoped memory for tpu_custom_call.1']
    #allocation12 [shape = 'u8[65536]{0}', space=vmem, size = 0x10000, scoped, tag = 'input window, operand 8, single buffered']
    #allocation13 [shape = 'u8[65536]{0}', space=vmem, size = 0x10000, scoped, tag = 'input window, operand 9, single buffered']
    #allocation14 [shape = 's32[1]{0}', space=sflag, size = 0x4, scoped, tag = 'scoped memory for tpu_custom_call.1']
    #allocation15 [shape = 'u8[32768]{0}', space=vmem, size = 0x8000, scoped, tag = 'output window, operand 0, single buffered']
    %16 = vsyncpa [#allocation5], 0
    %17 = vsyncpa [#allocation8], 0
    %18 = vsyncpa [#allocation11], 0
    %19 = vsyncpa [#allocation14], 0
    %20 = vsyncpa [#allocation6], 0
    // Predicated region
    $region2: #{tpu_custom_call.1} parent=1 // pred_check
      _
    $region3: #{tpu_custom_call.1} parent=1 // pred_check_branch
      %22 = sbr.rel (0) target = $region5
    $region4: #{tpu_custom_call.1} parent=1 // pred_region
      _
    $region5: #{tpu_custom_call.1} parent=1 // pred_fallthru
      _
    // Predicated region
    $region6: #{tpu_custom_call.1} parent=1 // pred_check
      _
    $region7: #{tpu_custom_call.1} parent=1 // pred_check_branch
      %24 = sbr.rel (0) target = $region9
    $region8: #{tpu_custom_call.1} parent=1 // pred_region
      %s26 = ssub.s32 512, 512
      %27 = vsyncadd [#allocation5], %s26
      %s28 = sshll.u32 [#allocation4], 4
      %s29 = int_to_ptr.vmem [resolvable:$true] %s28
      %34 = dma.hbm_to_vmem [thread:$0]  %s1, 512, %s29, [#allocation5], 128, 128, 8
    $region9: #{tpu_custom_call.1} parent=1 // pred_fallthru
      _
    // Predicated region
    $region10: #{tpu_custom_call.1} parent=1 // pred_check
      _
    $region11: #{tpu_custom_call.1} parent=1 // pred_check_branch
      %36 = sbr.rel (0) target = $region13
    $region12: #{tpu_custom_call.1} parent=1 // pred_region
      _
    $region13: #{tpu_custom_call.1} parent=1 // pred_fallthru
      _
    // Predicated region
    $region14: #{tpu_custom_call.1} parent=1 // pred_check
      _
    $region15: #{tpu_custom_call.1} parent=1 // pred_check_branch
      %38 = sbr.rel (0) target = $region17
    $region16: #{tpu_custom_call.1} parent=1 // pred_region
      %s40 = ssub.s32 1024, 1024
      %41 = vsyncadd [#allocation8], %s40
      %s42 = sshll.u32 [#allocation7], 4
      %s43 = int_to_ptr.vmem [resolvable:$true] %s42
      %48 = dma.hbm_to_vmem [thread:$0]  %s3, 1024, %s43, [#allocation8], 64, 64, 4
    $region17: #{tpu_custom_call.1} parent=1 // pred_fallthru
      _
    // Predicated region
    $region18: #{tpu_custom_call.1} parent=1 // pred_check
      _
    $region19: #{tpu_custom_call.1} parent=1 // pred_check_branch
      %50 = sbr.rel (0) target = $region21
    $region20: #{tpu_custom_call.1} parent=1 // pred_region
      %s52 = ssub.s32 16, 16
      %53 = vsyncadd [#allocation8], %s52
      %s55 = sshll.u32 [#allocation9], 4
      %s56 = int_to_ptr.vmem [resolvable:$true] %s55
      %58 = dma.hbm_to_vmem [thread:$0]  %s4, 16, %s56, [#allocation8]
    $region21: #{tpu_custom_call.1} parent=1 // pred_fallthru
      _
    // Predicated region
    $region22: #{tpu_custom_call.1} parent=1 // pred_check
      _
    $region23: #{tpu_custom_call.1} parent=1 // pred_check_branch
      %60 = sbr.rel (0) target = $region25
    $region24: #{tpu_custom_call.1} parent=1 // pred_region
      _
    $region25: #{tpu_custom_call.1} parent=1 // pred_fallthru
      _
    // Predicated region
    $region26: #{tpu_custom_call.1} parent=1 // pred_check
      _
    $region27: #{tpu_custom_call.1} parent=1 // pred_check_branch
      %62 = sbr.rel (0) target = $region29
    $region28: #{tpu_custom_call.1} parent=1 // pred_region
      _
    $region29: #{tpu_custom_call.1} parent=1 // pred_fallthru
      _
    // Predicated region
    $region30: #{tpu_custom_call.1} parent=1 // pred_check
      _
    $region31: #{tpu_custom_call.1} parent=1 // pred_check_branch
      %64 = sbr.rel (0) target = $region33
    $region32: #{tpu_custom_call.1} parent=1 // pred_region
      %s66 = ssub.s32 2048, 2048
      %67 = vsyncadd [#allocation11], %s66
      %s68 = sshll.u32 [#allocation10], 4
      %s69 = int_to_ptr.vmem [resolvable:$true] %s68
      %74 = dma.hbm_to_vmem [thread:$0]  %s7, 2048, %s69, [#allocation11], 128, 128, 8
    $region33: #{tpu_custom_call.1} parent=1 // pred_fallthru
      _
    // Predicated region
    $region34: #{tpu_custom_call.1} parent=1 // pred_check
      _
    $region35: #{tpu_custom_call.1} parent=1 // pred_check_branch
      %76 = sbr.rel (0) target = $region37
    $region36: #{tpu_custom_call.1} parent=1 // pred_region
      %s78 = ssub.s32 2048, 2048
      %79 = vsyncadd [#allocation11], %s78
      %s80 = sshll.u32 [#allocation12], 4
      %s81 = int_to_ptr.vmem [resolvable:$true] %s80
      %86 = dma.hbm_to_vmem [thread:$0]  %s8, 2048, %s81, [#allocation11], 128, 128, 8
    $region37: #{tpu_custom_call.1} parent=1 // pred_fallthru
      _
    // Predicated region
    $region38: #{tpu_custom_call.1} parent=1 // pred_check
      _
    $region39: #{tpu_custom_call.1} parent=1 // pred_check_branch
      %88 = sbr.rel (0) target = $region41
    $region40: #{tpu_custom_call.1} parent=1 // pred_region
      %s90 = ssub.s32 2048, 2048
      %91 = vsyncadd [#allocation14], %s90
      %s92 = sshll.u32 [#allocation13], 4
      %s93 = int_to_ptr.vmem [resolvable:$true] %s92
      %98 = dma.hbm_to_vmem [thread:$0]  %s9, 2048, %s93, [#allocation14], 128, 128, 8
    $region41: #{tpu_custom_call.1} parent=1 // pred_fallthru
      _
    // Predicated region
    $region42: #{tpu_custom_call.1} parent=1 // pred_check
      _
    $region43: #{tpu_custom_call.1} parent=1 // pred_check_branch
      %100 = sbr.rel (0) target = $region45
    $region44: #{tpu_custom_call.1} parent=1 // pred_region
      _
    $region45: #{tpu_custom_call.1} parent=1 // pred_fallthru
      _
    // Predicated region
    $region46: #{tpu_custom_call.1} parent=1 // pred_check
      _
    $region47: #{tpu_custom_call.1} parent=1 // pred_check_branch
      %102 = sbr.rel (0) target = $region49
    $region48: #{tpu_custom_call.1} parent=1 // pred_region
      %103 = dma.done [#allocation5], 512
    $region49: #{tpu_custom_call.1} parent=1 // pred_fallthru
      _
    // Predicated region
    $region50: #{tpu_custom_call.1} parent=1 // pred_check
      _
    $region51: #{tpu_custom_call.1} parent=1 // pred_check_branch
      %105 = sbr.rel (0) target = $region53
    $region52: #{tpu_custom_call.1} parent=1 // pred_region
      %106 = dma.done [#allocation8], 1024
    $region53: #{tpu_custom_call.1} parent=1 // pred_fallthru
      _
    // Predicated region
    $region54: #{tpu_custom_call.1} parent=1 // pred_check
      _
    $region55: #{tpu_custom_call.1} parent=1 // pred_check_branch
      %108 = sbr.rel (0) target = $region57
    $region56: #{tpu_custom_call.1} parent=1 // pred_region
      %109 = dma.done [#allocation8], 16
    $region57: #{tpu_custom_call.1} parent=1 // pred_fallthru
      _
    // Predicated region
    $region58: #{tpu_custom_call.1} parent=1 // pred_check
      _
    $region59: #{tpu_custom_call.1} parent=1 // pred_check_branch
      %111 = sbr.rel (0) target = $region61
    $region60: #{tpu_custom_call.1} parent=1 // pred_region
      %112 = dma.done [#allocation11], 2048
    $region61: #{tpu_custom_call.1} parent=1 // pred_fallthru
      _
    // Predicated region
    $region62: #{tpu_custom_call.1} parent=1 // pred_check
      _
    $region63: #{tpu_custom_call.1} parent=1 // pred_check_branch
      %114 = sbr.rel (0) target = $region65
    $region64: #{tpu_custom_call.1} parent=1 // pred_region
      %115 = dma.done [#allocation11], 2048
    $region65: #{tpu_custom_call.1} parent=1 // pred_fallthru
      _
    // Predicated region
    $region66: #{tpu_custom_call.1} parent=1 // pred_check
      _
    $region67: #{tpu_custom_call.1} parent=1 // pred_check_branch
      %117 = sbr.rel (0) target = $region69
    $region68: #{tpu_custom_call.1} parent=1 // pred_region
      %118 = dma.done [#allocation14], 2048
    $region69: #{tpu_custom_call.1} parent=1 // pred_fallthru
      _
    %v120 = vld [vmem:[#allocation9] sm:$0x1]
    %v122 = vlaneseq
    %v123 = vshrl.u32 %v122, 7
    %v124 = vsub.s32 0, %v123
    %v125 = vrot.slane %v120, %v124
    %v127 = vld [vmem:[%s6] sm:$0x1]
    %v129 = vlaneseq
    %v130 = vshrl.u32 %v129, 7
    %v131 = vsub.s32 0, %v130
    %v132 = vrot.slane %v127, %v131
    $region70: #{tpu_custom_call.1} parent=1
      #allocation16 [shape = 'u8[32768]{0}', space=vmem, size = 0x8000, scoped, tag = 'scoped memory for tpu_custom_call.1']
      %v134 = vld [vmem:[%s0] sm:$0xf]
      %v135 = vld [vmem:[%s0 + $0x4] sm:$0xf]
      %v136 = vld [vmem:[%s0 + $0x8] sm:$0xf]
      %v137 = vld [vmem:[%s0 + $0xc] sm:$0xf]
      %v138 = vld [vmem:[%s0 + $0x10] sm:$0xf]
      %v139 = vld [vmem:[%s0 + $0x14] sm:$0xf]
      %v140 = vld [vmem:[%s0 + $0x18] sm:$0xf]
      %v141 = vld [vmem:[%s0 + $0x1c] sm:$0xf]
      %v142 = vld [vmem:[#allocation4] sm:$0xff]
      %v143 = vld [vmem:[#allocation4 + $0x8] sm:$0xff]
      %v144 = vld [vmem:[#allocation4 + $0x10] sm:$0xff]
      %v145 = vld [vmem:[#allocation4 + $0x18] sm:$0xff]
      %v146 = vld [vmem:[%s2] sm:$0x3]
      %v148 = vlaneseq
      %v149 = vshrl.u32 %v148, 7
      %v150 = vsub.s32 0, %v149
      %v151 = vrot.slane %v146, %v150
      %v152 = vlaneseq
      %v153 = vshrl.u32 %v152, 7
      %v154 = vsub.s32 1, %v153
      %v155 = vrot.slane %v146, %v154
      %v166 = vunpack.c.l.b16 %v134
      %v167 = vunpack.c.l.b16 %v135
      %v168 = vunpack.c.l.b16 %v136
      %v169 = vunpack.c.l.b16 %v137
      %v170 = vunpack.c.l.b16 %v138
      %v171 = vunpack.c.l.b16 %v139
      %v172 = vunpack.c.l.b16 %v140
      %v173 = vunpack.c.l.b16 %v141
      %v174 = vpack.c.b16 %v167, %v166
      %v175 = vpack.c.b16 %v169, %v168
      %v176 = vpack.c.b16 %v171, %v170
      %v177 = vpack.c.b16 %v173, %v172
      %v182 = vunpack.c.l.b16 %v142
      %v183 = vunpack.c.h.b16 %v142
      %v184 = vunpack.c.l.b16 %v143
      %v185 = vunpack.c.h.b16 %v143
      %v186 = vunpack.c.l.b16 %v144
      %v187 = vunpack.c.h.b16 %v144
      %v188 = vunpack.c.l.b16 %v145
      %v189 = vunpack.c.h.b16 %v145
      %v190 = vpack.c.b16 %v184, %v182
      %v191 = vpack.c.b16 %v185, %v183
      %v192 = vpack.c.b16 %v188, %v186
      %v193 = vpack.c.b16 %v189, %v187
      %vm198 = vcmask 261120
      %v200 = vsel %vm198, %v174, 0
      %v203 = vsel %vm198, %v175, 0
      %v206 = vsel %vm198, %v176, 0
      %v209 = vsel %vm198, %v177, 0
      %211 = vmatprep.subr.bf16.mxu0 %v191
      %212 = vmatpush1.bf16.msra.mxu0 %v190
      %213 = vmatprep.subr.bf16.mxu0 %v193
      %214 = vmatpush1.bf16.msra.mxu0 %v192
      %215 = vmatprep.subr.bf16.mxu0 0
      %216 = vmatpush1.bf16.msra.mxu0 0
      %217 = vmatprep.subr.bf16.mxu0 0
      %218 = vmatpush1.bf16.msra.mxu0 0
      %219 = vmatprep.subr.bf16.mxu0 0
      %220 = vmatpush1.bf16.msra.mxu0 0
      %221 = vmatprep.subr.bf16.mxu0 0
      %222 = vmatpush1.bf16.msra.mxu0 0
      %223 = vmatprep.subr.bf16.mxu0 0
      %224 = vmatpush1.bf16.msra.mxu0 0
      %225 = vmatprep.subr.bf16.mxu0 0
      %226 = vmatpush1.bf16.msra.mxu0 0
      %227 = vmatprep.subr.bf16.mxu0 0
      %228 = vmatpush1.bf16.msra.mxu0 0
      %229 = vmatprep.subr.bf16.mxu0 0
      %230 = vmatpush1.bf16.msra.mxu0 0
      %231 = vmatprep.subr.bf16.mxu0 0
      %232 = vmatpush1.bf16.msra.mxu0 0
      %233 = vmatprep.subr.bf16.mxu0 0
      %234 = vmatpush1.bf16.msra.mxu0 0
      %235 = vmatprep.subr.bf16.mxu0 0
      %236 = vmatpush1.bf16.msra.mxu0 0
      %237 = vmatprep.subr.bf16.mxu0 0
      %238 = vmatpush1.bf16.msra.mxu0 0
      %239 = vmatprep.subr.bf16.mxu0 0
      %240 = vmatpush1.bf16.msra.mxu0 0
      %241 = vmatprep.subr.bf16.mxu0 0
      %242 = vmatpush1.bf16.msra.mxu0 0
      %243 = vmatprep.mubr.bf16.mxu0 0
      %244 = vmatmul.mubr.bf16.gmra.mrb[0].mxu0 %v200
      %v245 = vpop.f32.mrb[0].mxu0
      %v246 = vadd.f32 %v151, %v245
      %v247 = vpop.f32.mrb[0].mxu0
      %v248 = vadd.f32 %v155, %v247
      %v249 = vpop.f32.mrb[0].mxu0
      %v250 = vadd.f32 %v151, %v249
      %v251 = vpop.f32.mrb[0].mxu0
      %v252 = vadd.f32 %v155, %v251
      %253 = vmatprep.mubr.bf16.mxu0 0
      %254 = vmatmul.mubr.bf16.gmra.mrb[0].mxu0 %v203
      %v255 = vpop.f32.mrb[0].mxu0
      %v256 = vadd.f32 %v151, %v255
      %v257 = vpop.f32.mrb[0].mxu0
      %v258 = vadd.f32 %v155, %v257
      %v259 = vpop.f32.mrb[0].mxu0
      %v260 = vadd.f32 %v151, %v259
      %v261 = vpop.f32.mrb[0].mxu0
      %v262 = vadd.f32 %v155, %v261
      %263 = vmatprep.mubr.bf16.mxu0 0
      %264 = vmatmul.mubr.bf16.gmra.mrb[0].mxu0 %v206
      %v265 = vpop.f32.mrb[0].mxu0
      %v266 = vadd.f32 %v151, %v265
      %v267 = vpop.f32.mrb[0].mxu0
      %v268 = vadd.f32 %v155, %v267
      %v269 = vpop.f32.mrb[0].mxu0
      %v270 = vadd.f32 %v151, %v269
      %v271 = vpop.f32.mrb[0].mxu0
      %v272 = vadd.f32 %v155, %v271
      %273 = vmatprep.mubr.bf16.mxu0 0
      %274 = vmatmul.mubr.bf16.gmra.mrb[0].mxu0 %v209
      %v275 = vpop.f32.mrb[0].mxu0
      %v276 = vadd.f32 %v151, %v275
      %v277 = vpop.f32.mrb[0].mxu0
      %v278 = vadd.f32 %v155, %v277
      %v279 = vpop.f32.mrb[0].mxu0
      %v280 = vadd.f32 %v151, %v279
      %v281 = vpop.f32.mrb[0].mxu0
      %v282 = vadd.f32 %v155, %v281
      %283 = vdwg.mxu0
      %284 = vst [vmem:[#allocation2] sm:$0xff] %v246
      %285 = vst [vmem:[#allocation2 + $0x8] sm:$0xff] %v250
      %286 = vst [vmem:[#allocation2 + $0x10] sm:$0xff] %v256
      %287 = vst [vmem:[#allocation2 + $0x18] sm:$0xff] %v260
      %288 = vst [vmem:[#allocation2 + $0x20] sm:$0xff] %v266
      %289 = vst [vmem:[#allocation2 + $0x28] sm:$0xff] %v270
      %290 = vst [vmem:[#allocation2 + $0x30] sm:$0xff] %v276
      %291 = vst [vmem:[#allocation2 + $0x38] sm:$0xff] %v280
      %292 = vst [vmem:[#allocation16] sm:$0xff] %v248
      %293 = vst [vmem:[#allocation16 + $0x8] sm:$0xff] %v252
      %294 = vst [vmem:[#allocation16 + $0x10] sm:$0xff] %v258
      %295 = vst [vmem:[#allocation16 + $0x18] sm:$0xff] %v262
      %296 = vst [vmem:[#allocation16 + $0x20] sm:$0xff] %v268
      %297 = vst [vmem:[#allocation16 + $0x28] sm:$0xff] %v272
      %298 = vst [vmem:[#allocation16 + $0x30] sm:$0xff] %v278
      %299 = vst [vmem:[#allocation16 + $0x38] sm:$0xff] %v282
      %v300 = vld [vmem:[%s5] sm:$0xf]
      %v301 = vld [vmem:[%s5 + $0x4] sm:$0xf]
      %v302 = vld [vmem:[%s5 + $0x8] sm:$0xf]
      %v303 = vld [vmem:[%s5 + $0xc] sm:$0xf]
      %v304 = vld [vmem:[%s5 + $0x10] sm:$0xf]
      %v305 = vld [vmem:[%s5 + $0x14] sm:$0xf]
      %v306 = vld [vmem:[%s5 + $0x18] sm:$0xf]
      %v307 = vld [vmem:[%s5 + $0x1c] sm:$0xf]
      %v308 = vld [vmem:[%s5 + $0x20] sm:$0xf]
      %v309 = vld [vmem:[%s5 + $0x24] sm:$0xf]
      %v310 = vld [vmem:[%s5 + $0x28] sm:$0xf]
      %v311 = vld [vmem:[%s5 + $0x2c] sm:$0xf]
      %v312 = vld [vmem:[%s5 + $0x30] sm:$0xf]
      %v313 = vld [vmem:[%s5 + $0x34] sm:$0xf]
      %v314 = vld [vmem:[%s5 + $0x38] sm:$0xf]
      %v315 = vld [vmem:[%s5 + $0x3c] sm:$0xf]
      %s316 = scalar_lea.vmem [#allocation16], 56
      %v317 = vld [vmem:[%s316] sm:$0xff]
      %v334 = vunpack.c.l.b16 %v300
      %v335 = vunpack.c.l.b16 %v301
      %v336 = vunpack.c.l.b16 %v302
      %v337 = vunpack.c.l.b16 %v303
      %v338 = vunpack.c.l.b16 %v304
      %v339 = vunpack.c.l.b16 %v305
      %v340 = vunpack.c.l.b16 %v306
      %v341 = vunpack.c.l.b16 %v307
      %v342 = vunpack.c.l.b16 %v308
      %v343 = vunpack.c.l.b16 %v309
      %v344 = vunpack.c.l.b16 %v310
      %v345 = vunpack.c.l.b16 %v311
      %v346 = vunpack.c.l.b16 %v312
      %v347 = vunpack.c.l.b16 %v313
      %v348 = vunpack.c.l.b16 %v314
      %v349 = vunpack.c.l.b16 %v315
      %v350 = vpack.c.b16 %v335, %v334
      %v351 = vpack.c.b16 %v337, %v336
      %v352 = vpack.c.b16 %v339, %v338
      %v353 = vpack.c.b16 %v341, %v340
      %v354 = vpack.c.b16 %v343, %v342
      %v355 = vpack.c.b16 %v345, %v344
      %v356 = vpack.c.b16 %v347, %v346
      %v357 = vpack.c.b16 %v349, %v348
      %366 = vmatprep.subr.bf16.mxu0 0
      %367 = vmatpush1.bf16.msra.mxu0 %v350
      %368 = vmatprep.subr.bf16.mxu0 0
      %369 = vmatpush1.bf16.msra.mxu0 %v351
      %370 = vmatprep.subr.bf16.mxu0 0
      %371 = vmatpush1.bf16.msra.mxu0 %v352
      %372 = vmatprep.subr.bf16.mxu0 0
      %373 = vmatpush1.bf16.msra.mxu0 %v353
      %374 = vmatprep.subr.bf16.mxu0 0
      %375 = vmatpush1.bf16.msra.mxu0 %v354
      %376 = vmatprep.subr.bf16.mxu0 0
      %377 = vmatpush1.bf16.msra.mxu0 %v355
      %378 = vmatprep.subr.bf16.mxu0 0
      %379 = vmatpush1.bf16.msra.mxu0 %v356
      %380 = vmatprep.subr.bf16.mxu0 0
      %381 = vmatpush1.bf16.msra.mxu0 %v357
      %382 = vmatprep.subr.bf16.mxu0 0
      %383 = vmatpush1.bf16.msra.mxu0 0
      %384 = vmatprep.subr.bf16.mxu0 0
      %385 = vmatpush1.bf16.msra.mxu0 0
      %386 = vmatprep.subr.bf16.mxu0 0
      %387 = vmatpush1.bf16.msra.mxu0 0
      %388 = vmatprep.subr.bf16.mxu0 0
      %389 = vmatpush1.bf16.msra.mxu0 0
      %390 = vmatprep.subr.bf16.mxu0 0
      %391 = vmatpush1.bf16.msra.mxu0 0
      %392 = vmatprep.subr.bf16.mxu0 0
      %393 = vmatpush1.bf16.msra.mxu0 0
      %394 = vmatprep.subr.bf16.mxu0 0
      %395 = vmatpush1.bf16.msra.mxu0 0
      %396 = vmatprep.subr.bf16.mxu0 0
      %397 = vmatpush1.bf16.msra.mxu0 0
      %398 = vmatprep.mubr.bf16.mxu0 0
      %399 = vmatmul.mubr.bf16.gmra.mrb[0].mxu0 0
      %v400 = vpop.f32.mrb[0].mxu0
      %v401 = vadd.f32 0.0, %v400
      %v402 = vpop.f32.mrb[0].mxu0
      %v403 = vpop.f32.mrb[0].mxu0
      %v404 = vpop.f32.mrb[0].mxu0
      %405 = vdwg.mxu0
      %v406 = vadd.f32 %v317, %v401
      %v407 = vxor.u32 %v406, 2147483648
      %v408 = vmul.f32 %v407, 1.442695
      %v409 = vpow.pop %v408
      %v410 = vadd.f32 %v409, 1.0
      %v411 = vrcp.pop %v410
      %v412 = vmul.f32 1.0, %v411
      %413 = vrot.lane.b32.xlu0 %v412, 64
      %v414 = vpop.permute.xlu0 %413
      %v415 = vadd.f32 %v401, %v132
      %v416 = vmul.f32 %v414, %v415
      %v417 = vadd.f32 %v317, %v416
      %v418 = vtanh.pop %v417
      %419 = vrot.lane.b32.xlu0 %v412, 32
      %v420 = vpop.permute.xlu0 %419
      %v421 = vsub.f32 0.0, %v418
      %v422 = vmul.f32 %v420, %v421
      %v423 = vadd.f32 %v418, %v422
      %s424 = scalar_lea.vmem [#allocation3], 56
      %425 = vst [vmem:[%s424] sm:$0xff] %v423
      %s426 = scalar_lea.vmem [#allocation16], 48
      %v427 = vld [vmem:[%s426] sm:$0xff]
      %v428 = vpack.c.bf16 %v423, %v423
      %429 = vmatprep.subr.bf16.mxu0 0
      %430 = vmatpush1.bf16.msra.mxu0 %v350
      %431 = vmatprep.subr.bf16.mxu0 0
      %432 = vmatpush1.bf16.msra.mxu0 %v351
      %433 = vmatprep.subr.bf16.mxu0 0
      %434 = vmatpush1.bf16.msra.mxu0 %v352
      %435 = vmatprep.subr.bf16.mxu0 0
      %436 = vmatpush1.bf16.msra.mxu0 %v353
      %437 = vmatprep.subr.bf16.mxu0 0
      %438 = vmatpush1.bf16.msra.mxu0 %v354
      %439 = vmatprep.subr.bf16.mxu0 0
      %440 = vmatpush1.bf16.msra.mxu0 %v355
      %441 = vmatprep.subr.bf16.mxu0 0
      %442 = vmatpush1.bf16.msra.mxu0 %v356
      %443 = vmatprep.subr.bf16.mxu0 0
      %444 = vmatpush1.bf16.msra.mxu0 %v357
      %445 = vmatprep.subr.bf16.mxu0 0
      %446 = vmatpush1.bf16.msra.mxu0 0
      %447 = vmatprep.subr.bf16.mxu0 0
      %448 = vmatpush1.bf16.msra.mxu0 0
      %449 = vmatprep.subr.bf16.mxu0 0
      %450 = vmatpush1.bf16.msra.mxu0 0
      %451 = vmatprep.subr.bf16.mxu0 0
      %452 = vmatpush1.bf16.msra.mxu0 0
      %453 = vmatprep.subr.bf16.mxu0 0
      %454 = vmatpush1.bf16.msra.mxu0 0
      %455 = vmatprep.subr.bf16.mxu0 0
      %456 = vmatpush1.bf16.msra.mxu0 0
      %457 = vmatprep.subr.bf16.mxu0 0
      %458 = vmatpush1.bf16.msra.mxu0 0
      %459 = vmatprep.subr.bf16.mxu0 0
      %460 = vmatpush1.bf16.msra.mxu0 0
      %461 = vmatprep.mubr.bf16.mxu0 0
      %462 = vmatmul.mubr.bf16.gmra.mrb[0].mxu0 %v428
      %v463 = vpop.f32.mrb[0].mxu0
      %v464 = vadd.f32 0.0, %v463
      %v465 = vpop.f32.mrb[0].mxu0
      %v466 = vpop.f32.mrb[0].mxu0
      %v467 = vpop.f32.mrb[0].mxu0
      %468 = vdwg.mxu0
      %v469 = vadd.f32 %v427, %v464
      %v470 = vxor.u32 %v469, 2147483648
      %v471 = vmul.f32 %v470, 1.442695
      %v472 = vpow.pop %v471
      %v473 = vadd.f32 %v472, 1.0
      %v474 = vrcp.pop %v473
      %v475 = vmul.f32 1.0, %v474
      %476 = vrot.lane.b32.xlu0 %v475, 64
      %v477 = vpop.permute.xlu0 %476
      %v478 = vadd.f32 %v464, %v132
      %v479 = vmul.f32 %v477, %v478
      %v480 = vadd.f32 %v427, %v479
      %v481 = vtanh.pop %v480
      %482 = vrot.lane.b32.xlu0 %v475, 32
      %v483 = vpop.permute.xlu0 %482
      %v484 = vsub.f32 %v423, %v481
      %v485 = vmul.f32 %v483, %v484
      %v486 = vadd.f32 %v481, %v485
      %s487 = scalar_lea.vmem [#allocation3], 48
      %488 = vst [vmem:[%s487] sm:$0xff] %v486
      %s489 = scalar_lea.vmem [#allocation16], 40
      %v490 = vld [vmem:[%s489] sm:$0xff]
      %v491 = vpack.c.bf16 %v486, %v486
      %492 = vmatprep.subr.bf16.mxu0 0
      %493 = vmatpush1.bf16.msra.mxu0 %v350
      %494 = vmatprep.subr.bf16.mxu0 0
      %495 = vmatpush1.bf16.msra.mxu0 %v351
      %496 = vmatprep.subr.bf16.mxu0 0
      %497 = vmatpush1.bf16.msra.mxu0 %v352
      %498 = vmatprep.subr.bf16.mxu0 0
      %499 = vmatpush1.bf16.msra.mxu0 %v353
      %500 = vmatprep.subr.bf16.mxu0 0
      %501 = vmatpush1.bf16.msra.mxu0 %v354
      %502 = vmatprep.subr.bf16.mxu0 0
      %503 = vmatpush1.bf16.msra.mxu0 %v355
      %504 = vmatprep.subr.bf16.mxu0 0
      %505 = vmatpush1.bf16.msra.mxu0 %v356
      %506 = vmatprep.subr.bf16.mxu0 0
      %507 = vmatpush1.bf16.msra.mxu0 %v357
      %508 = vmatprep.subr.bf16.mxu0 0
      %509 = vmatpush1.bf16.msra.mxu0 0
      %510 = vmatprep.subr.bf16.mxu0 0
      %511 = vmatpush1.bf16.msra.mxu0 0
      %512 = vmatprep.subr.bf16.mxu0 0
      %513 = vmatpush1.bf16.msra.mxu0 0
      %514 = vmatprep.subr.bf16.mxu0 0
      %515 = vmatpush1.bf16.msra.mxu0 0
      %516 = vmatprep.subr.bf16.mxu0 0
      %517 = vmatpush1.bf16.msra.mxu0 0
      %518 = vmatprep.subr.bf16.mxu0 0
      %519 = vmatpush1.bf16.msra.mxu0 0
      %520 = vmatprep.subr.bf16.mxu0 0
      %521 = vmatpush1.bf16.msra.mxu0 0
      %522 = vmatprep.subr.bf16.mxu0 0
      %523 = vmatpush1.bf16.msra.mxu0 0
      %524 = vmatprep.mubr.bf16.mxu0 0
      %525 = vmatmul.mubr.bf16.gmra.mrb[0].mxu0 %v491
      %v526 = vpop.f32.mrb[0].mxu0
      %v527 = vadd.f32 0.0, %v526
      %v528 = vpop.f32.mrb[0].mxu0
      %v529 = vpop.f32.mrb[0].mxu0
      %v530 = vpop.f32.mrb[0].mxu0
      %531 = vdwg.mxu0
      %v532 = vadd.f32 %v490, %v527
      %v533 = vxor.u32 %v532, 2147483648
      %v534 = vmul.f32 %v533, 1.442695
      %v535 = vpow.pop %v534
      %v536 = vadd.f32 %v535, 1.0
      %v537 = vrcp.pop %v536
      %v538 = vmul.f32 1.0, %v537
      %539 = vrot.lane.b32.xlu0 %v538, 64
      %v540 = vpop.permute.xlu0 %539
      %v541 = vadd.f32 %v527, %v132
      %v542 = vmul.f32 %v540, %v541
      %v543 = vadd.f32 %v490, %v542
      %v544 = vtanh.pop %v543
      %545 = vrot.lane.b32.xlu0 %v538, 32
      %v546 = vpop.permute.xlu0 %545
      %v547 = vsub.f32 %v486, %v544
      %v548 = vmul.f32 %v546, %v547
      %v549 = vadd.f32 %v544, %v548
      %s550 = scalar_lea.vmem [#allocation3], 40
      %551 = vst [vmem:[%s550] sm:$0xff] %v549
      %s552 = scalar_lea.vmem [#allocation16], 32
      %v553 = vld [vmem:[%s552] sm:$0xff]
      %v554 = vpack.c.bf16 %v549, %v549
      %555 = vmatprep.subr.bf16.mxu0 0
      %556 = vmatpush1.bf16.msra.mxu0 %v350
      %557 = vmatprep.subr.bf16.mxu0 0
      %558 = vmatpush1.bf16.msra.mxu0 %v351
      %559 = vmatprep.subr.bf16.mxu0 0
      %560 = vmatpush1.bf16.msra.mxu0 %v352
      %561 = vmatprep.subr.bf16.mxu0 0
      %562 = vmatpush1.bf16.msra.mxu0 %v353
      %563 = vmatprep.subr.bf16.mxu0 0
      %564 = vmatpush1.bf16.msra.mxu0 %v354
      %565 = vmatprep.subr.bf16.mxu0 0
      %566 = vmatpush1.bf16.msra.mxu0 %v355
      %567 = vmatprep.subr.bf16.mxu0 0
      %568 = vmatpush1.bf16.msra.mxu0 %v356
      %569 = vmatprep.subr.bf16.mxu0 0
      %570 = vmatpush1.bf16.msra.mxu0 %v357
      %571 = vmatprep.subr.bf16.mxu0 0
      %572 = vmatpush1.bf16.msra.mxu0 0
      %573 = vmatprep.subr.bf16.mxu0 0
      %574 = vmatpush1.bf16.msra.mxu0 0
      %575 = vmatprep.subr.bf16.mxu0 0
      %576 = vmatpush1.bf16.msra.mxu0 0
      %577 = vmatprep.subr.bf16.mxu0 0
      %578 = vmatpush1.bf16.msra.mxu0 0
      %579 = vmatprep.subr.bf16.mxu0 0
      %580 = vmatpush1.bf16.msra.mxu0 0
      %581 = vmatprep.subr.bf16.mxu0 0
      %582 = vmatpush1.bf16.msra.mxu0 0
      %583 = vmatprep.subr.bf16.mxu0 0
      %584 = vmatpush1.bf16.msra.mxu0 0
      %585 = vmatprep.subr.bf16.mxu0 0
      %586 = vmatpush1.bf16.msra.mxu0 0
      %587 = vmatprep.mubr.bf16.mxu0 0
      %588 = vmatmul.mubr.bf16.gmra.mrb[0].mxu0 %v554
      %v589 = vpop.f32.mrb[0].mxu0
      %v590 = vadd.f32 0.0, %v589
      %v591 = vpop.f32.mrb[0].mxu0
      %v592 = vpop.f32.mrb[0].mxu0
      %v593 = vpop.f32.mrb[0].mxu0
      %594 = vdwg.mxu0
      %v595 = vadd.f32 %v553, %v590
      %v596 = vxor.u32 %v595, 2147483648
      %v597 = vmul.f32 %v596, 1.442695
      %v598 = vpow.pop %v597
      %v599 = vadd.f32 %v598, 1.0
      %v600 = vrcp.pop %v599
      %v601 = vmul.f32 1.0, %v600
      %602 = vrot.lane.b32.xlu0 %v601, 64
      %v603 = vpop.permute.xlu0 %602
      %v604 = vadd.f32 %v590, %v132
      %v605 = vmul.f32 %v603, %v604
      %v606 = vadd.f32 %v553, %v605
      %v607 = vtanh.pop %v606
      %608 = vrot.lane.b32.xlu0 %v601, 32
      %v609 = vpop.permute.xlu0 %608
      %v610 = vsub.f32 %v549, %v607
      %v611 = vmul.f32 %v609, %v610
      %v612 = vadd.f32 %v607, %v611
      %s613 = scalar_lea.vmem [#allocation3], 32
      %614 = vst [vmem:[%s613] sm:$0xff] %v612
      %s615 = scalar_lea.vmem [#allocation16], 24
      %v616 = vld [vmem:[%s615] sm:$0xff]
      %v617 = vpack.c.bf16 %v612, %v612
      %618 = vmatprep.subr.bf16.mxu0 0
      %619 = vmatpush1.bf16.msra.mxu0 %v350
      %620 = vmatprep.subr.bf16.mxu0 0
      %621 = vmatpush1.bf16.msra.mxu0 %v351
      %622 = vmatprep.subr.bf16.mxu0 0
      %623 = vmatpush1.bf16.msra.mxu0 %v352
      %624 = vmatprep.subr.bf16.mxu0 0
      %625 = vmatpush1.bf16.msra.mxu0 %v353
      %626 = vmatprep.subr.bf16.mxu0 0
      %627 = vmatpush1.bf16.msra.mxu0 %v354
      %628 = vmatprep.subr.bf16.mxu0 0
      %629 = vmatpush1.bf16.msra.mxu0 %v355
      %630 = vmatprep.subr.bf16.mxu0 0
      %631 = vmatpush1.bf16.msra.mxu0 %v356
      %632 = vmatprep.subr.bf16.mxu0 0
      %633 = vmatpush1.bf16.msra.mxu0 %v357
      %634 = vmatprep.subr.bf16.mxu0 0
      %635 = vmatpush1.bf16.msra.mxu0 0
      %636 = vmatprep.subr.bf16.mxu0 0
      %637 = vmatpush1.bf16.msra.mxu0 0
      %638 = vmatprep.subr.bf16.mxu0 0
      %639 = vmatpush1.bf16.msra.mxu0 0
      %640 = vmatprep.subr.bf16.mxu0 0
      %641 = vmatpush1.bf16.msra.mxu0 0
      %642 = vmatprep.subr.bf16.mxu0 0
      %643 = vmatpush1.bf16.msra.mxu0 0
      %644 = vmatprep.subr.bf16.mxu0 0
      %645 = vmatpush1.bf16.msra.mxu0 0
      %646 = vmatprep.subr.bf16.mxu0 0
      %647 = vmatpush1.bf16.msra.mxu0 0
      %648 = vmatprep.subr.bf16.mxu0 0
      %649 = vmatpush1.bf16.msra.mxu0 0
      %650 = vmatprep.mubr.bf16.mxu0 0
      %651 = vmatmul.mubr.bf16.gmra.mrb[0].mxu0 %v617
      %v652 = vpop.f32.mrb[0].mxu0
      %v653 = vadd.f32 0.0, %v652
      %v654 = vpop.f32.mrb[0].mxu0
      %v655 = vpop.f32.mrb[0].mxu0
      %v656 = vpop.f32.mrb[0].mxu0
      %657 = vdwg.mxu0
      %v658 = vadd.f32 %v616, %v653
      %v659 = vxor.u32 %v658, 2147483648
      %v660 = vmul.f32 %v659, 1.442695
      %v661 = vpow.pop %v660
      %v662 = vadd.f32 %v661, 1.0
      %v663 = vrcp.pop %v662
      %v664 = vmul.f32 1.0, %v663
      %665 = vrot.lane.b32.xlu0 %v664, 64
      %v666 = vpop.permute.xlu0 %665
      %v667 = vadd.f32 %v653, %v132
      %v668 = vmul.f32 %v666, %v667
      %v669 = vadd.f32 %v616, %v668
      %v670 = vtanh.pop %v669
      %671 = vrot.lane.b32.xlu0 %v664, 32
      %v672 = vpop.permute.xlu0 %671
      %v673 = vsub.f32 %v612, %v670
      %v674 = vmul.f32 %v672, %v673
      %v675 = vadd.f32 %v670, %v674
      %s676 = scalar_lea.vmem [#allocation3], 24
      %677 = vst [vmem:[%s676] sm:$0xff] %v675
      %s678 = scalar_lea.vmem [#allocation16], 16
      %v679 = vld [vmem:[%s678] sm:$0xff]
      %v680 = vpack.c.bf16 %v675, %v675
      %681 = vmatprep.subr.bf16.mxu0 0
      %682 = vmatpush1.bf16.msra.mxu0 %v350
      %683 = vmatprep.subr.bf16.mxu0 0
      %684 = vmatpush1.bf16.msra.mxu0 %v351
      %685 = vmatprep.subr.bf16.mxu0 0
      %686 = vmatpush1.bf16.msra.mxu0 %v352
      %687 = vmatprep.subr.bf16.mxu0 0
      %688 = vmatpush1.bf16.msra.mxu0 %v353
      %689 = vmatprep.subr.bf16.mxu0 0
      %690 = vmatpush1.bf16.msra.mxu0 %v354
      %691 = vmatprep.subr.bf16.mxu0 0
      %692 = vmatpush1.bf16.msra.mxu0 %v355
      %693 = vmatprep.subr.bf16.mxu0 0
      %694 = vmatpush1.bf16.msra.mxu0 %v356
      %695 = vmatprep.subr.bf16.mxu0 0
      %696 = vmatpush1.bf16.msra.mxu0 %v357
      %697 = vmatprep.subr.bf16.mxu0 0
      %698 = vmatpush1.bf16.msra.mxu0 0
      %699 = vmatprep.subr.bf16.mxu0 0
      %700 = vmatpush1.bf16.msra.mxu0 0
      %701 = vmatprep.subr.bf16.mxu0 0
      %702 = vmatpush1.bf16.msra.mxu0 0
      %703 = vmatprep.subr.bf16.mxu0 0
      %704 = vmatpush1.bf16.msra.mxu0 0
      %705 = vmatprep.subr.bf16.mxu0 0
      %706 = vmatpush1.bf16.msra.mxu0 0
      %707 = vmatprep.subr.bf16.mxu0 0
      %708 = vmatpush1.bf16.msra.mxu0 0
      %709 = vmatprep.subr.bf16.mxu0 0
      %710 = vmatpush1.bf16.msra.mxu0 0
      %711 = vmatprep.subr.bf16.mxu0 0
      %712 = vmatpush1.bf16.msra.mxu0 0
      %713 = vmatprep.mubr.bf16.mxu0 0
      %714 = vmatmul.mubr.bf16.gmra.mrb[0].mxu0 %v680
      %v715 = vpop.f32.mrb[0].mxu0
      %v716 = vadd.f32 0.0, %v715
      %v717 = vpop.f32.mrb[0].mxu0
      %v718 = vpop.f32.mrb[0].mxu0
      %v719 = vpop.f32.mrb[0].mxu0
      %720 = vdwg.mxu0
      %v721 = vadd.f32 %v679, %v716
      %v722 = vxor.u32 %v721, 2147483648
      %v723 = vmul.f32 %v722, 1.442695
      %v724 = vpow.pop %v723
      %v725 = vadd.f32 %v724, 1.0
      %v726 = vrcp.pop %v725
      %v727 = vmul.f32 1.0, %v726
      %728 = vrot.lane.b32.xlu0 %v727, 64
      %v729 = vpop.permute.xlu0 %728
      %v730 = vadd.f32 %v716, %v132
      %v731 = vmul.f32 %v729, %v730
      %v732 = vadd.f32 %v679, %v731
      %v733 = vtanh.pop %v732
      %734 = vrot.lane.b32.xlu0 %v727, 32
      %v735 = vpop.permute.xlu0 %734
      %v736 = vsub.f32 %v675, %v733
      %v737 = vmul.f32 %v735, %v736
      %v738 = vadd.f32 %v733, %v737
      %s739 = scalar_lea.vmem [#allocation3], 16
      %740 = vst [vmem:[%s739] sm:$0xff] %v738
      %s741 = scalar_lea.vmem [#allocation16], 8
      %v742 = vld [vmem:[%s741] sm:$0xff]
      %v743 = vpack.c.bf16 %v738, %v738
      %744 = vmatprep.subr.bf16.mxu0 0
      %745 = vmatpush1.bf16.msra.mxu0 %v350
      %746 = vmatprep.subr.bf16.mxu0 0
      %747 = vmatpush1.bf16.msra.mxu0 %v351
      %748 = vmatprep.subr.bf16.mxu0 0
      %749 = vmatpush1.bf16.msra.mxu0 %v352
      %750 = vmatprep.subr.bf16.mxu0 0
      %751 = vmatpush1.bf16.msra.mxu0 %v353
      %752 = vmatprep.subr.bf16.mxu0 0
      %753 = vmatpush1.bf16.msra.mxu0 %v354
      %754 = vmatprep.subr.bf16.mxu0 0
      %755 = vmatpush1.bf16.msra.mxu0 %v355
      %756 = vmatprep.subr.bf16.mxu0 0
      %757 = vmatpush1.bf16.msra.mxu0 %v356
      %758 = vmatprep.subr.bf16.mxu0 0
      %759 = vmatpush1.bf16.msra.mxu0 %v357
      %760 = vmatprep.subr.bf16.mxu0 0
      %761 = vmatpush1.bf16.msra.mxu0 0
      %762 = vmatprep.subr.bf16.mxu0 0
      %763 = vmatpush1.bf16.msra.mxu0 0
      %764 = vmatprep.subr.bf16.mxu0 0
      %765 = vmatpush1.bf16.msra.mxu0 0
      %766 = vmatprep.subr.bf16.mxu0 0
      %767 = vmatpush1.bf16.msra.mxu0 0
      %768 = vmatprep.subr.bf16.mxu0 0
      %769 = vmatpush1.bf16.msra.mxu0 0
      %770 = vmatprep.subr.bf16.mxu0 0
      %771 = vmatpush1.bf16.msra.mxu0 0
      %772 = vmatprep.subr.bf16.mxu0 0
      %773 = vmatpush1.bf16.msra.mxu0 0
      %774 = vmatprep.subr.bf16.mxu0 0
      %775 = vmatpush1.bf16.msra.mxu0 0
      %776 = vmatprep.mubr.bf16.mxu0 0
      %777 = vmatmul.mubr.bf16.gmra.mrb[0].mxu0 %v743
      %v778 = vpop.f32.mrb[0].mxu0
      %v779 = vadd.f32 0.0, %v778
      %v780 = vpop.f32.mrb[0].mxu0
      %v781 = vpop.f32.mrb[0].mxu0
      %v782 = vpop.f32.mrb[0].mxu0
      %783 = vdwg.mxu0
      %v784 = vadd.f32 %v742, %v779
      %v785 = vxor.u32 %v784, 2147483648
      %v786 = vmul.f32 %v785, 1.442695
      %v787 = vpow.pop %v786
      %v788 = vadd.f32 %v787, 1.0
      %v789 = vrcp.pop %v788
      %v790 = vmul.f32 1.0, %v789
      %791 = vrot.lane.b32.xlu0 %v790, 64
      %v792 = vpop.permute.xlu0 %791
      %v793 = vadd.f32 %v779, %v132
      %v794 = vmul.f32 %v792, %v793
      %v795 = vadd.f32 %v742, %v794
      %v796 = vtanh.pop %v795
      %797 = vrot.lane.b32.xlu0 %v790, 32
      %v798 = vpop.permute.xlu0 %797
      %v799 = vsub.f32 %v738, %v796
      %v800 = vmul.f32 %v798, %v799
      %v801 = vadd.f32 %v796, %v800
      %s802 = scalar_lea.vmem [#allocation3], 8
      %803 = vst [vmem:[%s802] sm:$0xff] %v801
      %v804 = vld [vmem:[#allocation16] sm:$0xff]
      %v805 = vpack.c.bf16 %v801, %v801
      %806 = vmatprep.subr.bf16.mxu0 0
      %807 = vmatpush1.bf16.msra.mxu0 %v350
      %808 = vmatprep.subr.bf16.mxu0 0
      %809 = vmatpush1.bf16.msra.mxu0 %v351
      %810 = vmatprep.subr.bf16.mxu0 0
      %811 = vmatpush1.bf16.msra.mxu0 %v352
      %812 = vmatprep.subr.bf16.mxu0 0
      %813 = vmatpush1.bf16.msra.mxu0 %v353
      %814 = vmatprep.subr.bf16.mxu0 0
      %815 = vmatpush1.bf16.msra.mxu0 %v354
      %816 = vmatprep.subr.bf16.mxu0 0
      %817 = vmatpush1.bf16.msra.mxu0 %v355
      %818 = vmatprep.subr.bf16.mxu0 0
      %819 = vmatpush1.bf16.msra.mxu0 %v356
      %820 = vmatprep.subr.bf16.mxu0 0
      %821 = vmatpush1.bf16.msra.mxu0 %v357
      %822 = vmatprep.subr.bf16.mxu0 0
      %823 = vmatpush1.bf16.msra.mxu0 0
      %824 = vmatprep.subr.bf16.mxu0 0
      %825 = vmatpush1.bf16.msra.mxu0 0
      %826 = vmatprep.subr.bf16.mxu0 0
      %827 = vmatpush1.bf16.msra.mxu0 0
      %828 = vmatprep.subr.bf16.mxu0 0
      %829 = vmatpush1.bf16.msra.mxu0 0
      %830 = vmatprep.subr.bf16.mxu0 0
      %831 = vmatpush1.bf16.msra.mxu0 0
      %832 = vmatprep.subr.bf16.mxu0 0
      %833 = vmatpush1.bf16.msra.mxu0 0
      %834 = vmatprep.subr.bf16.mxu0 0
      %835 = vmatpush1.bf16.msra.mxu0 0
      %836 = vmatprep.subr.bf16.mxu0 0
      %837 = vmatpush1.bf16.msra.mxu0 0
      %838 = vmatprep.mubr.bf16.mxu0 0
      %839 = vmatmul.mubr.bf16.gmra.mrb[0].mxu0 %v805
      %v840 = vpop.f32.mrb[0].mxu0
      %v841 = vadd.f32 0.0, %v840
      %v842 = vpop.f32.mrb[0].mxu0
      %v843 = vpop.f32.mrb[0].mxu0
      %v844 = vpop.f32.mrb[0].mxu0
      %845 = vdwg.mxu0
      %v846 = vadd.f32 %v804, %v841
      %v847 = vxor.u32 %v846, 2147483648
      %v848 = vmul.f32 %v847, 1.442695
      %v849 = vpow.pop %v848
      %v850 = vadd.f32 %v849, 1.0
      %v851 = vrcp.pop %v850
      %v852 = vmul.f32 1.0, %v851
      %853 = vrot.lane.b32.xlu0 %v852, 64
      %v854 = vpop.permute.xlu0 %853
      %v855 = vadd.f32 %v841, %v132
      %v856 = vmul.f32 %v854, %v855
      %v857 = vadd.f32 %v804, %v856
      %v858 = vtanh.pop %v857
      %859 = vrot.lane.b32.xlu0 %v852, 32
      %v860 = vpop.permute.xlu0 %859
      %v861 = vsub.f32 %v801, %v858
      %v862 = vmul.f32 %v860, %v861
      %v863 = vadd.f32 %v858, %v862
      %864 = vst [vmem:[#allocation3] sm:$0xff] %v863
    $region71: #{tpu_custom_call.1} parent=1
      #allocation17 [shape = 'u8[65536]{0}', space=vmem, size = 0x10000, scoped, tag = 'scoped memory for tpu_custom_call.1']
      %v865 = vld [vmem:[#allocation3] sm:$0xff]
      %v866 = vld [vmem:[#allocation3 + $0x8] sm:$0xff]
      %v867 = vld [vmem:[#allocation3 + $0x10] sm:$0xff]
      %v868 = vld [vmem:[#allocation3 + $0x18] sm:$0xff]
      %v869 = vld [vmem:[#allocation3 + $0x20] sm:$0xff]
      %v870 = vld [vmem:[#allocation3 + $0x28] sm:$0xff]
      %v871 = vld [vmem:[#allocation3 + $0x30] sm:$0xff]
      %v872 = vld [vmem:[#allocation3 + $0x38] sm:$0xff]
      %v873 = vpack.c.bf16 %v866, %v865
      %v874 = vpack.c.bf16 %v868, %v867
      %v875 = vpack.c.bf16 %v870, %v869
      %v876 = vpack.c.bf16 %v872, %v871
      %v877 = vld [vmem:[#allocation12] sm:$0xff]
      %v878 = vld [vmem:[#allocation12 + $0x8] sm:$0xff]
      %v879 = vld [vmem:[#allocation12 + $0x10] sm:$0xff]
      %v880 = vld [vmem:[#allocation12 + $0x18] sm:$0xff]
      %v881 = vld [vmem:[#allocation12 + $0x20] sm:$0xff]
      %v882 = vld [vmem:[#allocation12 + $0x28] sm:$0xff]
      %v883 = vld [vmem:[#allocation12 + $0x30] sm:$0xff]
      %v884 = vld [vmem:[#allocation12 + $0x38] sm:$0xff]
      %v885 = vld [vmem:[#allocation12 + $0x40] sm:$0xff]
      %v886 = vld [vmem:[#allocation12 + $0x48] sm:$0xff]
      %v887 = vld [vmem:[#allocation12 + $0x50] sm:$0xff]
      %v888 = vld [vmem:[#allocation12 + $0x58] sm:$0xff]
      %v889 = vld [vmem:[#allocation12 + $0x60] sm:$0xff]
      %v890 = vld [vmem:[#allocation12 + $0x68] sm:$0xff]
      %v891 = vld [vmem:[#allocation12 + $0x70] sm:$0xff]
      %v892 = vld [vmem:[#allocation12 + $0x78] sm:$0xff]
      %v893 = vld [vmem:[%s10] sm:$0x3]
      %v895 = vlaneseq
      %v896 = vshrl.u32 %v895, 7
      %v897 = vsub.s32 0, %v896
      %v898 = vrot.slane %v893, %v897
      %v899 = vlaneseq
      %v900 = vshrl.u32 %v899, 7
      %v901 = vsub.s32 1, %v900
      %v902 = vrot.slane %v893, %v901
      %v921 = vunpack.c.l.b16 %v877
      %v922 = vunpack.c.h.b16 %v877
      %v923 = vunpack.c.l.b16 %v878
      %v924 = vunpack.c.h.b16 %v878
      %v925 = vunpack.c.l.b16 %v879
      %v926 = vunpack.c.h.b16 %v879
      %v927 = vunpack.c.l.b16 %v880
      %v928 = vunpack.c.h.b16 %v880
      %v929 = vunpack.c.l.b16 %v881
      %v930 = vunpack.c.h.b16 %v881
      %v931 = vunpack.c.l.b16 %v882
      %v932 = vunpack.c.h.b16 %v882
      %v933 = vunpack.c.l.b16 %v883
      %v934 = vunpack.c.h.b16 %v883
      %v935 = vunpack.c.l.b16 %v884
      %v936 = vunpack.c.h.b16 %v884
      %v937 = vunpack.c.l.b16 %v885
      %v938 = vunpack.c.h.b16 %v885
      %v939 = vunpack.c.l.b16 %v886
      %v940 = vunpack.c.h.b16 %v886
      %v941 = vunpack.c.l.b16 %v887
      %v942 = vunpack.c.h.b16 %v887
      %v943 = vunpack.c.l.b16 %v888
      %v944 = vunpack.c.h.b16 %v888
      %v945 = vunpack.c.l.b16 %v889
      %v946 = vunpack.c.h.b16 %v889
      %v947 = vunpack.c.l.b16 %v890
      %v948 = vunpack.c.h.b16 %v890
      %v949 = vunpack.c.l.b16 %v891
      %v950 = vunpack.c.h.b16 %v891
      %v951 = vunpack.c.l.b16 %v892
      %v952 = vunpack.c.h.b16 %v892
      %v953 = vpack.c.b16 %v923, %v921
      %v954 = vpack.c.b16 %v924, %v922
      %v955 = vpack.c.b16 %v927, %v925
      %v956 = vpack.c.b16 %v928, %v926
      %v957 = vpack.c.b16 %v931, %v929
      %v958 = vpack.c.b16 %v932, %v930
      %v959 = vpack.c.b16 %v935, %v933
      %v960 = vpack.c.b16 %v936, %v934
      %v961 = vpack.c.b16 %v939, %v937
      %v962 = vpack.c.b16 %v940, %v938
      %v963 = vpack.c.b16 %v943, %v941
      %v964 = vpack.c.b16 %v944, %v942
      %v965 = vpack.c.b16 %v947, %v945
      %v966 = vpack.c.b16 %v948, %v946
      %v967 = vpack.c.b16 %v951, %v949
      %v968 = vpack.c.b16 %v952, %v950
      %985 = vmatprep.subr.bf16.mxu0 %v954
      %986 = vmatpush1.bf16.msra.mxu0 %v953
      %987 = vmatprep.subr.bf16.mxu0 %v956
      %988 = vmatpush1.bf16.msra.mxu0 %v955
      %989 = vmatprep.subr.bf16.mxu0 %v958
      %990 = vmatpush1.bf16.msra.mxu0 %v957
      %991 = vmatprep.subr.bf16.mxu0 %v960
      %992 = vmatpush1.bf16.msra.mxu0 %v959
      %993 = vmatprep.subr.bf16.mxu0 %v962
      %994 = vmatpush1.bf16.msra.mxu0 %v961
      %995 = vmatprep.subr.bf16.mxu0 %v964
      %996 = vmatpush1.bf16.msra.mxu0 %v963
      %997 = vmatprep.subr.bf16.mxu0 %v966
      %998 = vmatpush1.bf16.msra.mxu0 %v965
      %999 = vmatprep.subr.bf16.mxu0 %v968
      %1000 = vmatpush1.bf16.msra.mxu0 %v967
      %1001 = vmatprep.subr.bf16.mxu0 0
      %1002 = vmatpush1.bf16.msra.mxu0 0
      %1003 = vmatprep.subr.bf16.mxu0 0
      %1004 = vmatpush1.bf16.msra.mxu0 0
      %1005 = vmatprep.subr.bf16.mxu0 0
      %1006 = vmatpush1.bf16.msra.mxu0 0
      %1007 = vmatprep.subr.bf16.mxu0 0
      %1008 = vmatpush1.bf16.msra.mxu0 0
      %1009 = vmatprep.subr.bf16.mxu0 0
      %1010 = vmatpush1.bf16.msra.mxu0 0
      %1011 = vmatprep.subr.bf16.mxu0 0
      %1012 = vmatpush1.bf16.msra.mxu0 0
      %1013 = vmatprep.subr.bf16.mxu0 0
      %1014 = vmatpush1.bf16.msra.mxu0 0
      %1015 = vmatprep.subr.bf16.mxu0 0
      %1016 = vmatpush1.bf16.msra.mxu0 0
      %1017 = vmatprep.mubr.bf16.mxu0 0
      %1018 = vmatmul.mubr.bf16.gmra.mrb[0].mxu0 %v873
      %v1019 = vpop.f32.mrb[0].mxu0
      %v1020 = vadd.f32 %v898, %v1019
      %v1021 = vpop.f32.mrb[0].mxu0
      %v1022 = vadd.f32 %v902, %v1021
      %v1023 = vpop.f32.mrb[0].mxu0
      %v1024 = vadd.f32 %v898, %v1023
      %v1025 = vpop.f32.mrb[0].mxu0
      %v1026 = vadd.f32 %v902, %v1025
      %1027 = vmatprep.mubr.bf16.mxu0 0
      %1028 = vmatmul.mubr.bf16.gmra.mrb[0].mxu0 %v874
      %v1029 = vpop.f32.mrb[0].mxu0
      %v1030 = vadd.f32 %v898, %v1029
      %v1031 = vpop.f32.mrb[0].mxu0
      %v1032 = vadd.f32 %v902, %v1031
      %v1033 = vpop.f32.mrb[0].mxu0
      %v1034 = vadd.f32 %v898, %v1033
      %v1035 = vpop.f32.mrb[0].mxu0
      %v1036 = vadd.f32 %v902, %v1035
      %1037 = vmatprep.mubr.bf16.mxu0 0
      %1038 = vmatmul.mubr.bf16.gmra.mrb[0].mxu0 %v875
      %v1039 = vpop.f32.mrb[0].mxu0
      %v1040 = vadd.f32 %v898, %v1039
      %v1041 = vpop.f32.mrb[0].mxu0
      %v1042 = vadd.f32 %v902, %v1041
      %v1043 = vpop.f32.mrb[0].mxu0
      %v1044 = vadd.f32 %v898, %v1043
      %v1045 = vpop.f32.mrb[0].mxu0
      %v1046 = vadd.f32 %v902, %v1045
      %1047 = vmatprep.mubr.bf16.mxu0 0
      %1048 = vmatmul.mubr.bf16.gmra.mrb[0].mxu0 %v876
      %v1049 = vpop.f32.mrb[0].mxu0
      %v1050 = vadd.f32 %v898, %v1049
      %v1051 = vpop.f32.mrb[0].mxu0
      %v1052 = vadd.f32 %v902, %v1051
      %v1053 = vpop.f32.mrb[0].mxu0
      %v1054 = vadd.f32 %v898, %v1053
      %v1055 = vpop.f32.mrb[0].mxu0
      %v1056 = vadd.f32 %v902, %v1055
      %1057 = vdwg.mxu0
      %1058 = vst [vmem:[#allocation17] sm:$0xff] %v1020
      %1059 = vst [vmem:[#allocation17 + $0x8] sm:$0xff] %v1022
      %1060 = vst [vmem:[#allocation17 + $0x10] sm:$0xff] %v1024
      %1061 = vst [vmem:[#allocation17 + $0x18] sm:$0xff] %v1026
      %1062 = vst [vmem:[#allocation17 + $0x20] sm:$0xff] %v1030
      %1063 = vst [vmem:[#allocation17 + $0x28] sm:$0xff] %v1032
      %1064 = vst [vmem:[#allocation17 + $0x30] sm:$0xff] %v1034
      %1065 = vst [vmem:[#allocation17 + $0x38] sm:$0xff] %v1036
      %1066 = vst [vmem:[#allocation17 + $0x40] sm:$0xff] %v1040
      %1067 = vst [vmem:[#allocation17 + $0x48] sm:$0xff] %v1042
      %1068 = vst [vmem:[#allocation17 + $0x50] sm:$0xff] %v1044
      %1069 = vst [vmem:[#allocation17 + $0x58] sm:$0xff] %v1046
      %1070 = vst [vmem:[#allocation17 + $0x60] sm:$0xff] %v1050
      %1071 = vst [vmem:[#allocation17 + $0x68] sm:$0xff] %v1052
      %1072 = vst [vmem:[#allocation17 + $0x70] sm:$0xff] %v1054
      %1073 = vst [vmem:[#allocation17 + $0x78] sm:$0xff] %v1056
      %v1074 = vld [vmem:[#allocation7] sm:$0xf]
      %v1075 = vld [vmem:[#allocation7 + $0x4] sm:$0xf]
      %v1076 = vld [vmem:[#allocation7 + $0x8] sm:$0xf]
      %v1077 = vld [vmem:[#allocation7 + $0xc] sm:$0xf]
      %v1078 = vld [vmem:[#allocation7 + $0x10] sm:$0xf]
      %v1079 = vld [vmem:[#allocation7 + $0x14] sm:$0xf]
      %v1080 = vld [vmem:[#allocation7 + $0x18] sm:$0xf]
      %v1081 = vld [vmem:[#allocation7 + $0x1c] sm:$0xf]
      %v1082 = vld [vmem:[#allocation7 + $0x20] sm:$0xf]
      %v1083 = vld [vmem:[#allocation7 + $0x24] sm:$0xf]
      %v1084 = vld [vmem:[#allocation7 + $0x28] sm:$0xf]
      %v1085 = vld [vmem:[#allocation7 + $0x2c] sm:$0xf]
      %v1086 = vld [vmem:[#allocation7 + $0x30] sm:$0xf]
      %v1087 = vld [vmem:[#allocation7 + $0x34] sm:$0xf]
      %v1088 = vld [vmem:[#allocation7 + $0x38] sm:$0xf]
      %v1089 = vld [vmem:[#allocation7 + $0x3c] sm:$0xf]
      %v1090 = vld [vmem:[#allocation10] sm:$0xff]
      %v1091 = vld [vmem:[#allocation10 + $0x8] sm:$0xff]
      %v1092 = vld [vmem:[#allocation10 + $0x10] sm:$0xff]
      %v1093 = vld [vmem:[#allocation10 + $0x18] sm:$0xff]
      %v1094 = vld [vmem:[#allocation10 + $0x20] sm:$0xff]
      %v1095 = vld [vmem:[#allocation10 + $0x28] sm:$0xff]
      %v1096 = vld [vmem:[#allocation10 + $0x30] sm:$0xff]
      %v1097 = vld [vmem:[#allocation10 + $0x38] sm:$0xff]
      %v1098 = vld [vmem:[#allocation10 + $0x40] sm:$0xff]
      %v1099 = vld [vmem:[#allocation10 + $0x48] sm:$0xff]
      %v1100 = vld [vmem:[#allocation10 + $0x50] sm:$0xff]
      %v1101 = vld [vmem:[#allocation10 + $0x58] sm:$0xff]
      %v1102 = vld [vmem:[#allocation10 + $0x60] sm:$0xff]
      %v1103 = vld [vmem:[#allocation10 + $0x68] sm:$0xff]
      %v1104 = vld [vmem:[#allocation10 + $0x70] sm:$0xff]
      %v1105 = vld [vmem:[#allocation10 + $0x78] sm:$0xff]
      %v1106 = vld [vmem:[#allocation13] sm:$0xff]
      %v1107 = vld [vmem:[#allocation13 + $0x8] sm:$0xff]
      %v1108 = vld [vmem:[#allocation13 + $0x10] sm:$0xff]
      %v1109 = vld [vmem:[#allocation13 + $0x18] sm:$0xff]
      %v1110 = vld [vmem:[#allocation13 + $0x20] sm:$0xff]
      %v1111 = vld [vmem:[#allocation13 + $0x28] sm:$0xff]
      %v1112 = vld [vmem:[#allocation13 + $0x30] sm:$0xff]
      %v1113 = vld [vmem:[#allocation13 + $0x38] sm:$0xff]
      %v1114 = vld [vmem:[#allocation13 + $0x40] sm:$0xff]
      %v1115 = vld [vmem:[#allocation13 + $0x48] sm:$0xff]
      %v1116 = vld [vmem:[#allocation13 + $0x50] sm:$0xff]
      %v1117 = vld [vmem:[#allocation13 + $0x58] sm:$0xff]
      %v1118 = vld [vmem:[#allocation13 + $0x60] sm:$0xff]
      %v1119 = vld [vmem:[#allocation13 + $0x68] sm:$0xff]
      %v1120 = vld [vmem:[#allocation13 + $0x70] sm:$0xff]
      %v1121 = vld [vmem:[#allocation13 + $0x78] sm:$0xff]
      %v1122 = vld [vmem:[#allocation2] sm:$0xff]
      %v1139 = vunpack.c.l.b16 %v1074
      %v1140 = vunpack.c.l.b16 %v1075
      %v1141 = vunpack.c.l.b16 %v1076
      %v1142 = vunpack.c.l.b16 %v1077
      %v1143 = vunpack.c.l.b16 %v1078
      %v1144 = vunpack.c.l.b16 %v1079
      %v1145 = vunpack.c.l.b16 %v1080
      %v1146 = vunpack.c.l.b16 %v1081
      %v1147 = vunpack.c.l.b16 %v1082
      %v1148 = vunpack.c.l.b16 %v1083
      %v1149 = vunpack.c.l.b16 %v1084
      %v1150 = vunpack.c.l.b16 %v1085
      %v1151 = vunpack.c.l.b16 %v1086
      %v1152 = vunpack.c.l.b16 %v1087
      %v1153 = vunpack.c.l.b16 %v1088
      %v1154 = vunpack.c.l.b16 %v1089
      %v1155 = vpack.c.b16 %v1140, %v1139
      %v1156 = vpack.c.b16 %v1142, %v1141
      %v1157 = vpack.c.b16 %v1144, %v1143
      %v1158 = vpack.c.b16 %v1146, %v1145
      %v1159 = vpack.c.b16 %v1148, %v1147
      %v1160 = vpack.c.b16 %v1150, %v1149
      %v1161 = vpack.c.b16 %v1152, %v1151
      %v1162 = vpack.c.b16 %v1154, %v1153
      %1171 = vmatprep.subr.bf16.mxu0 0
      %1172 = vmatpush1.bf16.msra.mxu0 %v1155
      %1173 = vmatprep.subr.bf16.mxu0 0
      %1174 = vmatpush1.bf16.msra.mxu0 %v1156
      %1175 = vmatprep.subr.bf16.mxu0 0
      %1176 = vmatpush1.bf16.msra.mxu0 %v1157
      %1177 = vmatprep.subr.bf16.mxu0 0
      %1178 = vmatpush1.bf16.msra.mxu0 %v1158
      %1179 = vmatprep.subr.bf16.mxu0 0
      %1180 = vmatpush1.bf16.msra.mxu0 %v1159
      %1181 = vmatprep.subr.bf16.mxu0 0
      %1182 = vmatpush1.bf16.msra.mxu0 %v1160
      %1183 = vmatprep.subr.bf16.mxu0 0
      %1184 = vmatpush1.bf16.msra.mxu0 %v1161
      %1185 = vmatprep.subr.bf16.mxu0 0
      %1186 = vmatpush1.bf16.msra.mxu0 %v1162
      %1187 = vmatprep.subr.bf16.mxu0 0
      %1188 = vmatpush1.bf16.msra.mxu0 0
      %1189 = vmatprep.subr.bf16.mxu0 0
      %1190 = vmatpush1.bf16.msra.mxu0 0
      %1191 = vmatprep.subr.bf16.mxu0 0
      %1192 = vmatpush1.bf16.msra.mxu0 0
      %1193 = vmatprep.subr.bf16.mxu0 0
      %1194 = vmatpush1.bf16.msra.mxu0 0
      %1195 = vmatprep.subr.bf16.mxu0 0
      %1196 = vmatpush1.bf16.msra.mxu0 0
      %1197 = vmatprep.subr.bf16.mxu0 0
      %1198 = vmatpush1.bf16.msra.mxu0 0
      %1199 = vmatprep.subr.bf16.mxu0 0
      %1200 = vmatpush1.bf16.msra.mxu0 0
      %1201 = vmatprep.subr.bf16.mxu0 0
      %1202 = vmatpush1.bf16.msra.mxu0 0
      %1203 = vmatprep.mubr.bf16.mxu0 0
      %1204 = vmatmul.mubr.bf16.gmra.mrb[0].mxu0 0
      %v1205 = vpop.f32.mrb[0].mxu0
      %v1206 = vadd.f32 0.0, %v1205
      %v1207 = vpop.f32.mrb[0].mxu0
      %v1208 = vpop.f32.mrb[0].mxu0
      %v1209 = vpop.f32.mrb[0].mxu0
      %1210 = vdwg.mxu0
      %v1211 = vadd.f32 %v1122, %v1206
      %v1212 = vxor.u32 %v1211, 2147483648
      %v1213 = vmul.f32 %v1212, 1.442695
      %v1214 = vpow.pop %v1213
      %v1215 = vadd.f32 %v1214, 1.0
      %v1216 = vrcp.pop %v1215
      %v1217 = vmul.f32 1.0, %v1216
      %1218 = vrot.lane.b32.xlu0 %v1217, 64
      %v1219 = vpop.permute.xlu0 %1218
      %v1220 = vadd.f32 %v1206, %v125
      %v1221 = vmul.f32 %v1219, %v1220
      %v1222 = vadd.f32 %v1122, %v1221
      %v1223 = vtanh.pop %v1222
      %1224 = vrot.lane.b32.xlu0 %v1217, 32
      %v1225 = vpop.permute.xlu0 %1224
      %v1226 = vsub.f32 0.0, %v1223
      %v1227 = vmul.f32 %v1225, %v1226
      %v1228 = vadd.f32 %v1223, %v1227
      %s1229 = smul.u32 0, 2
      %s1230 = smul.addr %s1229, 8
      %s1231 = scalar_lea.vmem [#allocation17], %s1230
      %v1232 = vld [vmem:[%s1231] sm:$0xff]
      %v1233 = vld [vmem:[%s1231 + $0x8] sm:$0xff]
      %v1234 = vpack.c.bf16 %v1228, %v1228
      %v1251 = vunpack.c.l.b16 %v1090
      %v1252 = vunpack.c.h.b16 %v1090
      %v1253 = vunpack.c.l.b16 %v1091
      %v1254 = vunpack.c.h.b16 %v1091
      %v1255 = vunpack.c.l.b16 %v1092
      %v1256 = vunpack.c.h.b16 %v1092
      %v1257 = vunpack.c.l.b16 %v1093
      %v1258 = vunpack.c.h.b16 %v1093
      %v1259 = vunpack.c.l.b16 %v1094
      %v1260 = vunpack.c.h.b16 %v1094
      %v1261 = vunpack.c.l.b16 %v1095
      %v1262 = vunpack.c.h.b16 %v1095
      %v1263 = vunpack.c.l.b16 %v1096
      %v1264 = vunpack.c.h.b16 %v1096
      %v1265 = vunpack.c.l.b16 %v1097
      %v1266 = vunpack.c.h.b16 %v1097
      %v1267 = vunpack.c.l.b16 %v1098
      %v1268 = vunpack.c.h.b16 %v1098
      %v1269 = vunpack.c.l.b16 %v1099
      %v1270 = vunpack.c.h.b16 %v1099
      %v1271 = vunpack.c.l.b16 %v1100
      %v1272 = vunpack.c.h.b16 %v1100
      %v1273 = vunpack.c.l.b16 %v1101
      %v1274 = vunpack.c.h.b16 %v1101
      %v1275 = vunpack.c.l.b16 %v1102
      %v1276 = vunpack.c.h.b16 %v1102
      %v1277 = vunpack.c.l.b16 %v1103
      %v1278 = vunpack.c.h.b16 %v1103
      %v1279 = vunpack.c.l.b16 %v1104
      %v1280 = vunpack.c.h.b16 %v1104
      %v1281 = vunpack.c.l.b16 %v1105
      %v1282 = vunpack.c.h.b16 %v1105
      %v1283 = vpack.c.b16 %v1253, %v1251
      %v1284 = vpack.c.b16 %v1254, %v1252
      %v1285 = vpack.c.b16 %v1257, %v1255
      %v1286 = vpack.c.b16 %v1258, %v1256
      %v1287 = vpack.c.b16 %v1261, %v1259
      %v1288 = vpack.c.b16 %v1262, %v1260
      %v1289 = vpack.c.b16 %v1265, %v1263
      %v1290 = vpack.c.b16 %v1266, %v1264
      %v1291 = vpack.c.b16 %v1269, %v1267
      %v1292 = vpack.c.b16 %v1270, %v1268
      %v1293 = vpack.c.b16 %v1273, %v1271
      %v1294 = vpack.c.b16 %v1274, %v1272
      %v1295 = vpack.c.b16 %v1277, %v1275
      %v1296 = vpack.c.b16 %v1278, %v1276
      %v1297 = vpack.c.b16 %v1281, %v1279
      %v1298 = vpack.c.b16 %v1282, %v1280
      %1315 = vmatprep.subr.bf16.mxu0 %v1284
      %1316 = vmatpush1.bf16.msra.mxu0 %v1283
      %1317 = vmatprep.subr.bf16.mxu0 %v1286
      %1318 = vmatpush1.bf16.msra.mxu0 %v1285
      %1319 = vmatprep.subr.bf16.mxu0 %v1288
      %1320 = vmatpush1.bf16.msra.mxu0 %v1287
      %1321 = vmatprep.subr.bf16.mxu0 %v1290
      %1322 = vmatpush1.bf16.msra.mxu0 %v1289
      %1323 = vmatprep.subr.bf16.mxu0 %v1292
      %1324 = vmatpush1.bf16.msra.mxu0 %v1291
      %1325 = vmatprep.subr.bf16.mxu0 %v1294
      %1326 = vmatpush1.bf16.msra.mxu0 %v1293
      %1327 = vmatprep.subr.bf16.mxu0 %v1296
      %1328 = vmatpush1.bf16.msra.mxu0 %v1295
      %1329 = vmatprep.subr.bf16.mxu0 %v1298
      %1330 = vmatpush1.bf16.msra.mxu0 %v1297
      %1331 = vmatprep.subr.bf16.mxu0 0
      %1332 = vmatpush1.bf16.msra.mxu0 0
      %1333 = vmatprep.subr.bf16.mxu0 0
      %1334 = vmatpush1.bf16.msra.mxu0 0
      %1335 = vmatprep.subr.bf16.mxu0 0
      %1336 = vmatpush1.bf16.msra.mxu0 0
      %1337 = vmatprep.subr.bf16.mxu0 0
      %1338 = vmatpush1.bf16.msra.mxu0 0
      %1339 = vmatprep.subr.bf16.mxu0 0
      %1340 = vmatpush1.bf16.msra.mxu0 0
      %1341 = vmatprep.subr.bf16.mxu0 0
      %1342 = vmatpush1.bf16.msra.mxu0 0
      %1343 = vmatprep.subr.bf16.mxu0 0
      %1344 = vmatpush1.bf16.msra.mxu0 0
      %1345 = vmatprep.subr.bf16.mxu0 0
      %1346 = vmatpush1.bf16.msra.mxu0 0
      %1347 = vmatprep.mubr.bf16.mxu0 0
      %1348 = vmatmul.mubr.bf16.gmra.mrb[0].mxu0 %v1234
      %v1349 = vpop.f32.mrb[0].mxu0
      %v1350 = vadd.f32 0.0, %v1349
      %v1351 = vpop.f32.mrb[0].mxu0
      %v1352 = vadd.f32 0.0, %v1351
      %v1353 = vpop.f32.mrb[0].mxu0
      %v1354 = vpop.f32.mrb[0].mxu0
      %1355 = vdwg.mxu0
      %v1356 = vadd.f32 %v1232, %v1350
      %v1357 = vadd.f32 %v1233, %v1352
      %v1374 = vunpack.c.l.b16 %v1106
      %v1375 = vunpack.c.h.b16 %v1106
      %v1376 = vunpack.c.l.b16 %v1107
      %v1377 = vunpack.c.h.b16 %v1107
      %v1378 = vunpack.c.l.b16 %v1108
      %v1379 = vunpack.c.h.b16 %v1108
      %v1380 = vunpack.c.l.b16 %v1109
      %v1381 = vunpack.c.h.b16 %v1109
      %v1382 = vunpack.c.l.b16 %v1110
      %v1383 = vunpack.c.h.b16 %v1110
      %v1384 = vunpack.c.l.b16 %v1111
      %v1385 = vunpack.c.h.b16 %v1111
      %v1386 = vunpack.c.l.b16 %v1112
      %v1387 = vunpack.c.h.b16 %v1112
      %v1388 = vunpack.c.l.b16 %v1113
      %v1389 = vunpack.c.h.b16 %v1113
      %v1390 = vunpack.c.l.b16 %v1114
      %v1391 = vunpack.c.h.b16 %v1114
      %v1392 = vunpack.c.l.b16 %v1115
      %v1393 = vunpack.c.h.b16 %v1115
      %v1394 = vunpack.c.l.b16 %v1116
      %v1395 = vunpack.c.h.b16 %v1116
      %v1396 = vunpack.c.l.b16 %v1117
      %v1397 = vunpack.c.h.b16 %v1117
      %v1398 = vunpack.c.l.b16 %v1118
      %v1399 = vunpack.c.h.b16 %v1118
      %v1400 = vunpack.c.l.b16 %v1119
      %v1401 = vunpack.c.h.b16 %v1119
      %v1402 = vunpack.c.l.b16 %v1120
      %v1403 = vunpack.c.h.b16 %v1120
      %v1404 = vunpack.c.l.b16 %v1121
      %v1405 = vunpack.c.h.b16 %v1121
      %v1406 = vpack.c.b16 %v1376, %v1374
      %v1407 = vpack.c.b16 %v1377, %v1375
      %v1408 = vpack.c.b16 %v1380, %v1378
      %v1409 = vpack.c.b16 %v1381, %v1379
      %v1410 = vpack.c.b16 %v1384, %v1382
      %v1411 = vpack.c.b16 %v1385, %v1383
      %v1412 = vpack.c.b16 %v1388, %v1386
      %v1413 = vpack.c.b16 %v1389, %v1387
      %v1414 = vpack.c.b16 %v1392, %v1390
      %v1415 = vpack.c.b16 %v1393, %v1391
      %v1416 = vpack.c.b16 %v1396, %v1394
      %v1417 = vpack.c.b16 %v1397, %v1395
      %v1418 = vpack.c.b16 %v1400, %v1398
      %v1419 = vpack.c.b16 %v1401, %v1399
      %v1420 = vpack.c.b16 %v1404, %v1402
      %v1421 = vpack.c.b16 %v1405, %v1403
      %1438 = vmatprep.subr.bf16.mxu0 %v1407
      %1439 = vmatpush1.bf16.msra.mxu0 %v1406
      %1440 = vmatprep.subr.bf16.mxu0 %v1409
      %1441 = vmatpush1.bf16.msra.mxu0 %v1408
      %1442 = vmatprep.subr.bf16.mxu0 %v1411
      %1443 = vmatpush1.bf16.msra.mxu0 %v1410
      %1444 = vmatprep.subr.bf16.mxu0 %v1413
      %1445 = vmatpush1.bf16.msra.mxu0 %v1412
      %1446 = vmatprep.subr.bf16.mxu0 %v1415
      %1447 = vmatpush1.bf16.msra.mxu0 %v1414
      %1448 = vmatprep.subr.bf16.mxu0 %v1417
      %1449 = vmatpush1.bf16.msra.mxu0 %v1416
      %1450 = vmatprep.subr.bf16.mxu0 %v1419
      %1451 = vmatpush1.bf16.msra.mxu0 %v1418
      %1452 = vmatprep.subr.bf16.mxu0 %v1421
      %1453 = vmatpush1.bf16.msra.mxu0 %v1420
      %1454 = vmatprep.subr.bf16.mxu0 0
      %1455 = vmatpush1.bf16.msra.mxu0 0
      %1456 = vmatprep.subr.bf16.mxu0 0
      %1457 = vmatpush1.bf16.msra.mxu0 0
      %1458 = vmatprep.subr.bf16.mxu0 0
      %1459 = vmatpush1.bf16.msra.mxu0 0
      %1460 = vmatprep.subr.bf16.mxu0 0
      %1461 = vmatpush1.bf16.msra.mxu0 0
      %1462 = vmatprep.subr.bf16.mxu0 0
      %1463 = vmatpush1.bf16.msra.mxu0 0
      %1464 = vmatprep.subr.bf16.mxu0 0
      %1465 = vmatpush1.bf16.msra.mxu0 0
      %1466 = vmatprep.subr.bf16.mxu0 0
      %1467 = vmatpush1.bf16.msra.mxu0 0
      %1468 = vmatprep.subr.bf16.mxu0 0
      %1469 = vmatpush1.bf16.msra.mxu0 0
      %1470 = vmatprep.mubr.bf16.mxu0 0
      %1471 = vmatmul.mubr.bf16.gmra.mrb[0].mxu0 0
      %v1472 = vpop.f32.mrb[0].mxu0
      %v1473 = vadd.f32 0.0, %v1472
      %v1474 = vpop.f32.mrb[0].mxu0
      %v1475 = vadd.f32 0.0, %v1474
      %v1476 = vpop.f32.mrb[0].mxu0
      %v1477 = vpop.f32.mrb[0].mxu0
      %1478 = vdwg.mxu0
      %v1479 = vadd.f32 %v1356, %v1473
      %v1480 = vadd.f32 %v1357, %v1475
      %v1481 = vxor.u32 %v1479, 2147483648
      %v1482 = vmul.f32 %v1481, 1.442695
      %v1483 = vpow.pop %v1482
      %v1484 = vadd.f32 %v1483, 1.0
      %v1485 = vrcp.pop %v1484
      %v1486 = vmul.f32 1.0, %v1485
      %v1487 = vxor.u32 %v1480, 2147483648
      %v1488 = vmul.f32 %v1487, 1.442695
      %v1489 = vpow.pop %v1488
      %v1490 = vadd.f32 %v1489, 1.0
      %v1491 = vrcp.pop %v1490
      %v1492 = vmul.f32 1.0, %v1491
      %1493 = vrot.lane.b32.xlu0 %v1486, 64
      %v1494 = vpop.permute.xlu0 %1493
      %1495 = vrot.lane.b32.xlu0 %v1492, 64
      %v1496 = vpop.permute.xlu0 %1495
      %v1497 = vmul.f32 %v1492, 2.0
      %v1498 = vsub.f32 %v1497, 1.0
      %v1499 = vmul.f32 %v1494, 0.0
      %v1500 = vmul.f32 %v1486, %v1498
      %v1501 = vadd.f32 %v1499, %v1500
      %v1502 = vtanh.pop %v1501
      %v1503 = vmul.f32 %v1496, %v1502
      %1504 = vst [vmem:[#allocation15] sm:$0xff] %v1503
      %s1505 = scalar_lea.vmem [#allocation2], 8
      %v1506 = vld [vmem:[%s1505] sm:$0xff]
      %1507 = vmatprep.subr.bf16.mxu0 0
      %1508 = vmatpush1.bf16.msra.mxu0 %v1155
      %1509 = vmatprep.subr.bf16.mxu0 0
      %1510 = vmatpush1.bf16.msra.mxu0 %v1156
      %1511 = vmatprep.subr.bf16.mxu0 0
      %1512 = vmatpush1.bf16.msra.mxu0 %v1157
      %1513 = vmatprep.subr.bf16.mxu0 0
      %1514 = vmatpush1.bf16.msra.mxu0 %v1158
      %1515 = vmatprep.subr.bf16.mxu0 0
      %1516 = vmatpush1.bf16.msra.mxu0 %v1159
      %1517 = vmatprep.subr.bf16.mxu0 0
      %1518 = vmatpush1.bf16.msra.mxu0 %v1160
      %1519 = vmatprep.subr.bf16.mxu0 0
      %1520 = vmatpush1.bf16.msra.mxu0 %v1161
      %1521 = vmatprep.subr.bf16.mxu0 0
      %1522 = vmatpush1.bf16.msra.mxu0 %v1162
      %1523 = vmatprep.subr.bf16.mxu0 0
      %1524 = vmatpush1.bf16.msra.mxu0 0
      %1525 = vmatprep.subr.bf16.mxu0 0
      %1526 = vmatpush1.bf16.msra.mxu0 0
      %1527 = vmatprep.subr.bf16.mxu0 0
      %1528 = vmatpush1.bf16.msra.mxu0 0
      %1529 = vmatprep.subr.bf16.mxu0 0
      %1530 = vmatpush1.bf16.msra.mxu0 0
      %1531 = vmatprep.subr.bf16.mxu0 0
      %1532 = vmatpush1.bf16.msra.mxu0 0
      %1533 = vmatprep.subr.bf16.mxu0 0
      %1534 = vmatpush1.bf16.msra.mxu0 0
      %1535 = vmatprep.subr.bf16.mxu0 0
      %1536 = vmatpush1.bf16.msra.mxu0 0
      %1537 = vmatprep.subr.bf16.mxu0 0
      %1538 = vmatpush1.bf16.msra.mxu0 0
      %1539 = vmatprep.mubr.bf16.mxu0 0
      %1540 = vmatmul.mubr.bf16.gmra.mrb[0].mxu0 %v1234
      %v1541 = vpop.f32.mrb[0].mxu0
      %v1542 = vadd.f32 0.0, %v1541
      %v1543 = vpop.f32.mrb[0].mxu0
      %v1544 = vpop.f32.mrb[0].mxu0
      %v1545 = vpop.f32.mrb[0].mxu0
      %1546 = vdwg.mxu0
      %v1547 = vadd.f32 %v1506, %v1542
      %v1548 = vxor.u32 %v1547, 2147483648
      %v1549 = vmul.f32 %v1548, 1.442695
      %v1550 = vpow.pop %v1549
      %v1551 = vadd.f32 %v1550, 1.0
      %v1552 = vrcp.pop %v1551
      %v1553 = vmul.f32 1.0, %v1552
      %1554 = vrot.lane.b32.xlu0 %v1553, 64
      %v1555 = vpop.permute.xlu0 %1554
      %v1556 = vadd.f32 %v1542, %v125
      %v1557 = vmul.f32 %v1555, %v1556
      %v1558 = vadd.f32 %v1506, %v1557
      %v1559 = vtanh.pop %v1558
      %1560 = vrot.lane.b32.xlu0 %v1553, 32
      %v1561 = vpop.permute.xlu0 %1560
      %v1562 = vsub.f32 %v1228, %v1559
      %v1563 = vmul.f32 %v1561, %v1562
      %v1564 = vadd.f32 %v1559, %v1563
      %s1565 = smul.u32 1, 2
      %s1566 = smul.addr %s1565, 8
      %s1567 = scalar_lea.vmem [#allocation17], %s1566
      %v1568 = vld [vmem:[%s1567] sm:$0xff]
      %v1569 = vld [vmem:[%s1567 + $0x8] sm:$0xff]
      %v1570 = vpack.c.bf16 %v1564, %v1564
      %1571 = vmatprep.subr.bf16.mxu0 %v1284
      %1572 = vmatpush1.bf16.msra.mxu0 %v1283
      %1573 = vmatprep.subr.bf16.mxu0 %v1286
      %1574 = vmatpush1.bf16.msra.mxu0 %v1285
      %1575 = vmatprep.subr.bf16.mxu0 %v1288
      %1576 = vmatpush1.bf16.msra.mxu0 %v1287
      %1577 = vmatprep.subr.bf16.mxu0 %v1290
      %1578 = vmatpush1.bf16.msra.mxu0 %v1289
      %1579 = vmatprep.subr.bf16.mxu0 %v1292
      %1580 = vmatpush1.bf16.msra.mxu0 %v1291
      %1581 = vmatprep.subr.bf16.mxu0 %v1294
      %1582 = vmatpush1.bf16.msra.mxu0 %v1293
      %1583 = vmatprep.subr.bf16.mxu0 %v1296
      %1584 = vmatpush1.bf16.msra.mxu0 %v1295
      %1585 = vmatprep.subr.bf16.mxu0 %v1298
      %1586 = vmatpush1.bf16.msra.mxu0 %v1297
      %1587 = vmatprep.subr.bf16.mxu0 0
      %1588 = vmatpush1.bf16.msra.mxu0 0
      %1589 = vmatprep.subr.bf16.mxu0 0
      %1590 = vmatpush1.bf16.msra.mxu0 0
      %1591 = vmatprep.subr.bf16.mxu0 0
      %1592 = vmatpush1.bf16.msra.mxu0 0
      %1593 = vmatprep.subr.bf16.mxu0 0
      %1594 = vmatpush1.bf16.msra.mxu0 0
      %1595 = vmatprep.subr.bf16.mxu0 0
      %1596 = vmatpush1.bf16.msra.mxu0 0
      %1597 = vmatprep.subr.bf16.mxu0 0
      %1598 = vmatpush1.bf16.msra.mxu0 0
      %1599 = vmatprep.subr.bf16.mxu0 0
      %1600 = vmatpush1.bf16.msra.mxu0 0
      %1601 = vmatprep.subr.bf16.mxu0 0
      %1602 = vmatpush1.bf16.msra.mxu0 0
      %1603 = vmatprep.mubr.bf16.mxu0 0
      %1604 = vmatmul.mubr.bf16.gmra.mrb[0].mxu0 %v1570
      %v1605 = vpop.f32.mrb[0].mxu0
      %v1606 = vadd.f32 0.0, %v1605
      %v1607 = vpop.f32.mrb[0].mxu0
      %v1608 = vadd.f32 0.0, %v1607
      %v1609 = vpop.f32.mrb[0].mxu0
      %v1610 = vpop.f32.mrb[0].mxu0
      %1611 = vdwg.mxu0
      %v1612 = vadd.f32 %v1568, %v1606
      %v1613 = vadd.f32 %v1569, %v1608
      %v1614 = vpack.c.bf16 %v1503, %v1503
      %1615 = vmatprep.subr.bf16.mxu0 %v1407
      %1616 = vmatpush1.bf16.msra.mxu0 %v1406
      %1617 = vmatprep.subr.bf16.mxu0 %v1409
      %1618 = vmatpush1.bf16.msra.mxu0 %v1408
      %1619 = vmatprep.subr.bf16.mxu0 %v1411
      %1620 = vmatpush1.bf16.msra.mxu0 %v1410
      %1621 = vmatprep.subr.bf16.mxu0 %v1413
      %1622 = vmatpush1.bf16.msra.mxu0 %v1412
      %1623 = vmatprep.subr.bf16.mxu0 %v1415
      %1624 = vmatpush1.bf16.msra.mxu0 %v1414
      %1625 = vmatprep.subr.bf16.mxu0 %v1417
      %1626 = vmatpush1.bf16.msra.mxu0 %v1416
      %1627 = vmatprep.subr.bf16.mxu0 %v1419
      %1628 = vmatpush1.bf16.msra.mxu0 %v1418
      %1629 = vmatprep.subr.bf16.mxu0 %v1421
      %1630 = vmatpush1.bf16.msra.mxu0 %v1420
      %1631 = vmatprep.subr.bf16.mxu0 0
      %1632 = vmatpush1.bf16.msra.mxu0 0
      %1633 = vmatprep.subr.bf16.mxu0 0
      %1634 = vmatpush1.bf16.msra.mxu0 0
      %1635 = vmatprep.subr.bf16.mxu0 0
      %1636 = vmatpush1.bf16.msra.mxu0 0
      %1637 = vmatprep.subr.bf16.mxu0 0
      %1638 = vmatpush1.bf16.msra.mxu0 0
      %1639 = vmatprep.subr.bf16.mxu0 0
      %1640 = vmatpush1.bf16.msra.mxu0 0
      %1641 = vmatprep.subr.bf16.mxu0 0
      %1642 = vmatpush1.bf16.msra.mxu0 0
      %1643 = vmatprep.subr.bf16.mxu0 0
      %1644 = vmatpush1.bf16.msra.mxu0 0
      %1645 = vmatprep.subr.bf16.mxu0 0
      %1646 = vmatpush1.bf16.msra.mxu0 0
      %1647 = vmatprep.mubr.bf16.mxu0 0
      %1648 = vmatmul.mubr.bf16.gmra.mrb[0].mxu0 %v1614
      %v1649 = vpop.f32.mrb[0].mxu0
      %v1650 = vadd.f32 0.0, %v1649
      %v1651 = vpop.f32.mrb[0].mxu0
      %v1652 = vadd.f32 0.0, %v1651
      %v1653 = vpop.f32.mrb[0].mxu0
      %v1654 = vpop.f32.mrb[0].mxu0
      %1655 = vdwg.mxu0
      %v1656 = vadd.f32 %v1612, %v1650
      %v1657 = vadd.f32 %v1613, %v1652
      %v1658 = vxor.u32 %v1656, 2147483648
      %v1659 = vmul.f32 %v1658, 1.442695
      %v1660 = vpow.pop %v1659
      %v1661 = vadd.f32 %v1660, 1.0
      %v1662 = vrcp.pop %v1661
      %v1663 = vmul.f32 1.0, %v1662
      %v1664 = vxor.u32 %v1657, 2147483648
      %v1665 = vmul.f32 %v1664, 1.442695
      %v1666 = vpow.pop %v1665
      %v1667 = vadd.f32 %v1666, 1.0
      %v1668 = vrcp.pop %v1667
      %v1669 = vmul.f32 1.0, %v1668
      %1670 = vrot.lane.b32.xlu0 %v1663, 64
      %v1671 = vpop.permute.xlu0 %1670
      %1672 = vrot.lane.b32.xlu0 %v1669, 64
      %v1673 = vpop.permute.xlu0 %1672
      %v1674 = vmul.f32 %v1669, 2.0
      %v1675 = vsub.f32 %v1674, 1.0
      %v1676 = vmul.f32 %v1671, %v1501
      %v1677 = vmul.f32 %v1663, %v1675
      %v1678 = vadd.f32 %v1676, %v1677
      %v1679 = vtanh.pop %v1678
      %v1680 = vmul.f32 %v1673, %v1679
      %s1681 = scalar_lea.vmem [#allocation15], 8
      %1682 = vst [vmem:[%s1681] sm:$0xff] %v1680
      %s1683 = scalar_lea.vmem [#allocation2], 16
      %v1684 = vld [vmem:[%s1683] sm:$0xff]
      %1685 = vmatprep.subr.bf16.mxu0 0
      %1686 = vmatpush1.bf16.msra.mxu0 %v1155
      %1687 = vmatprep.subr.bf16.mxu0 0
      %1688 = vmatpush1.bf16.msra.mxu0 %v1156
      %1689 = vmatprep.subr.bf16.mxu0 0
      %1690 = vmatpush1.bf16.msra.mxu0 %v1157
      %1691 = vmatprep.subr.bf16.mxu0 0
      %1692 = vmatpush1.bf16.msra.mxu0 %v1158
      %1693 = vmatprep.subr.bf16.mxu0 0
      %1694 = vmatpush1.bf16.msra.mxu0 %v1159
      %1695 = vmatprep.subr.bf16.mxu0 0
      %1696 = vmatpush1.bf16.msra.mxu0 %v1160
      %1697 = vmatprep.subr.bf16.mxu0 0
      %1698 = vmatpush1.bf16.msra.mxu0 %v1161
      %1699 = vmatprep.subr.bf16.mxu0 0
      %1700 = vmatpush1.bf16.msra.mxu0 %v1162
      %1701 = vmatprep.subr.bf16.mxu0 0
      %1702 = vmatpush1.bf16.msra.mxu0 0
      %1703 = vmatprep.subr.bf16.mxu0 0
      %1704 = vmatpush1.bf16.msra.mxu0 0
      %1705 = vmatprep.subr.bf16.mxu0 0
      %1706 = vmatpush1.bf16.msra.mxu0 0
      %1707 = vmatprep.subr.bf16.mxu0 0
      %1708 = vmatpush1.bf16.msra.mxu0 0
      %1709 = vmatprep.subr.bf16.mxu0 0
      %1710 = vmatpush1.bf16.msra.mxu0 0
      %1711 = vmatprep.subr.bf16.mxu0 0
      %1712 = vmatpush1.bf16.msra.mxu0 0
      %1713 = vmatprep.subr.bf16.mxu0 0
      %1714 = vmatpush1.bf16.msra.mxu0 0
      %1715 = vmatprep.subr.bf16.mxu0 0
      %1716 = vmatpush1.bf16.msra.mxu0 0
      %1717 = vmatprep.mubr.bf16.mxu0 0
      %1718 = vmatmul.mubr.bf16.gmra.mrb[0].mxu0 %v1570
      %v1719 = vpop.f32.mrb[0].mxu0
      %v1720 = vadd.f32 0.0, %v1719
      %v1721 = vpop.f32.mrb[0].mxu0
      %v1722 = vpop.f32.mrb[0].mxu0
      %v1723 = vpop.f32.mrb[0].mxu0
      %1724 = vdwg.mxu0
      %v1725 = vadd.f32 %v1684, %v1720
      %v1726 = vxor.u32 %v1725, 2147483648
      %v1727 = vmul.f32 %v1726, 1.442695
      %v1728 = vpow.pop %v1727
      %v1729 = vadd.f32 %v1728, 1.0
      %v1730 = vrcp.pop %v1729
      %v1731 = vmul.f32 1.0, %v1730
      %1732 = vrot.lane.b32.xlu0 %v1731, 64
      %v1733 = vpop.permute.xlu0 %1732
      %v1734 = vadd.f32 %v1720, %v125
      %v1735 = vmul.f32 %v1733, %v1734
      %v1736 = vadd.f32 %v1684, %v1735
      %v1737 = vtanh.pop %v1736
      %1738 = vrot.lane.b32.xlu0 %v1731, 32
      %v1739 = vpop.permute.xlu0 %1738
      %v1740 = vsub.f32 %v1564, %v1737
      %v1741 = vmul.f32 %v1739, %v1740
      %v1742 = vadd.f32 %v1737, %v1741
      %s1743 = smul.u32 2, 2
      %s1744 = smul.addr %s1743, 8
      %s1745 = scalar_lea.vmem [#allocation17], %s1744
      %v1746 = vld [vmem:[%s1745] sm:$0xff]
      %v1747 = vld [vmem:[%s1745 + $0x8] sm:$0xff]
      %v1748 = vpack.c.bf16 %v1742, %v1742
      %1749 = vmatprep.subr.bf16.mxu0 %v1284
      %1750 = vmatpush1.bf16.msra.mxu0 %v1283
      %1751 = vmatprep.subr.bf16.mxu0 %v1286
      %1752 = vmatpush1.bf16.msra.mxu0 %v1285
      %1753 = vmatprep.subr.bf16.mxu0 %v1288
      %1754 = vmatpush1.bf16.msra.mxu0 %v1287
      %1755 = vmatprep.subr.bf16.mxu0 %v1290
      %1756 = vmatpush1.bf16.msra.mxu0 %v1289
      %1757 = vmatprep.subr.bf16.mxu0 %v1292
      %1758 = vmatpush1.bf16.msra.mxu0 %v1291
      %1759 = vmatprep.subr.bf16.mxu0 %v1294
      %1760 = vmatpush1.bf16.msra.mxu0 %v1293
      %1761 = vmatprep.subr.bf16.mxu0 %v1296
      %1762 = vmatpush1.bf16.msra.mxu0 %v1295
      %1763 = vmatprep.subr.bf16.mxu0 %v1298
      %1764 = vmatpush1.bf16.msra.mxu0 %v1297
      %1765 = vmatprep.subr.bf16.mxu0 0
      %1766 = vmatpush1.bf16.msra.mxu0 0
      %1767 = vmatprep.subr.bf16.mxu0 0
      %1768 = vmatpush1.bf16.msra.mxu0 0
      %1769 = vmatprep.subr.bf16.mxu0 0
      %1770 = vmatpush1.bf16.msra.mxu0 0
      %1771 = vmatprep.subr.bf16.mxu0 0
      %1772 = vmatpush1.bf16.msra.mxu0 0
      %1773 = vmatprep.subr.bf16.mxu0 0
      %1774 = vmatpush1.bf16.msra.mxu0 0
      %1775 = vmatprep.subr.bf16.mxu0 0
      %1776 = vmatpush1.bf16.msra.mxu0 0
      %1777 = vmatprep.subr.bf16.mxu0 0
      %1778 = vmatpush1.bf16.msra.mxu0 0
      %1779 = vmatprep.subr.bf16.mxu0 0
      %1780 = vmatpush1.bf16.msra.mxu0 0
      %1781 = vmatprep.mubr.bf16.mxu0 0
      %1782 = vmatmul.mubr.bf16.gmra.mrb[0].mxu0 %v1748
      %v1783 = vpop.f32.mrb[0].mxu0
      %v1784 = vadd.f32 0.0, %v1783
      %v1785 = vpop.f32.mrb[0].mxu0
      %v1786 = vadd.f32 0.0, %v1785
      %v1787 = vpop.f32.mrb[0].mxu0
      %v1788 = vpop.f32.mrb[0].mxu0
      %1789 = vdwg.mxu0
      %v1790 = vadd.f32 %v1746, %v1784
      %v1791 = vadd.f32 %v1747, %v1786
      %v1792 = vpack.c.bf16 %v1680, %v1680
      %1793 = vmatprep.subr.bf16.mxu0 %v1407
      %1794 = vmatpush1.bf16.msra.mxu0 %v1406
      %1795 = vmatprep.subr.bf16.mxu0 %v1409
      %1796 = vmatpush1.bf16.msra.mxu0 %v1408
      %1797 = vmatprep.subr.bf16.mxu0 %v1411
      %1798 = vmatpush1.bf16.msra.mxu0 %v1410
      %1799 = vmatprep.subr.bf16.mxu0 %v1413
      %1800 = vmatpush1.bf16.msra.mxu0 %v1412
      %1801 = vmatprep.subr.bf16.mxu0 %v1415
      %1802 = vmatpush1.bf16.msra.mxu0 %v1414
      %1803 = vmatprep.subr.bf16.mxu0 %v1417
      %1804 = vmatpush1.bf16.msra.mxu0 %v1416
      %1805 = vmatprep.subr.bf16.mxu0 %v1419
      %1806 = vmatpush1.bf16.msra.mxu0 %v1418
      %1807 = vmatprep.subr.bf16.mxu0 %v1421
      %1808 = vmatpush1.bf16.msra.mxu0 %v1420
      %1809 = vmatprep.subr.bf16.mxu0 0
      %1810 = vmatpush1.bf16.msra.mxu0 0
      %1811 = vmatprep.subr.bf16.mxu0 0
      %1812 = vmatpush1.bf16.msra.mxu0 0
      %1813 = vmatprep.subr.bf16.mxu0 0
      %1814 = vmatpush1.bf16.msra.mxu0 0
      %1815 = vmatprep.subr.bf16.mxu0 0
      %1816 = vmatpush1.bf16.msra.mxu0 0
      %1817 = vmatprep.subr.bf16.mxu0 0
      %1818 = vmatpush1.bf16.msra.mxu0 0
      %1819 = vmatprep.subr.bf16.mxu0 0
      %1820 = vmatpush1.bf16.msra.mxu0 0
      %1821 = vmatprep.subr.bf16.mxu0 0
      %1822 = vmatpush1.bf16.msra.mxu0 0
      %1823 = vmatprep.subr.bf16.mxu0 0
      %1824 = vmatpush1.bf16.msra.mxu0 0
      %1825 = vmatprep.mubr.bf16.mxu0 0
      %1826 = vmatmul.mubr.bf16.gmra.mrb[0].mxu0 %v1792
      %v1827 = vpop.f32.mrb[0].mxu0
      %v1828 = vadd.f32 0.0, %v1827
      %v1829 = vpop.f32.mrb[0].mxu0
      %v1830 = vadd.f32 0.0, %v1829
      %v1831 = vpop.f32.mrb[0].mxu0
      %v1832 = vpop.f32.mrb[0].mxu0
      %1833 = vdwg.mxu0
      %v1834 = vadd.f32 %v1790, %v1828
      %v1835 = vadd.f32 %v1791, %v1830
      %v1836 = vxor.u32 %v1834, 2147483648
      %v1837 = vmul.f32 %v1836, 1.442695
      %v1838 = vpow.pop %v1837
      %v1839 = vadd.f32 %v1838, 1.0
      %v1840 = vrcp.pop %v1839
      %v1841 = vmul.f32 1.0, %v1840
      %v1842 = vxor.u32 %v1835, 2147483648
      %v1843 = vmul.f32 %v1842, 1.442695
      %v1844 = vpow.pop %v1843
      %v1845 = vadd.f32 %v1844, 1.0
      %v1846 = vrcp.pop %v1845
      %v1847 = vmul.f32 1.0, %v1846
      %1848 = vrot.lane.b32.xlu0 %v1841, 64
      %v1849 = vpop.permute.xlu0 %1848
      %1850 = vrot.lane.b32.xlu0 %v1847, 64
      %v1851 = vpop.permute.xlu0 %1850
      %v1852 = vmul.f32 %v1847, 2.0
      %v1853 = vsub.f32 %v1852, 1.0
      %v1854 = vmul.f32 %v1849, %v1678
      %v1855 = vmul.f32 %v1841, %v1853
      %v1856 = vadd.f32 %v1854, %v1855
      %v1857 = vtanh.pop %v1856
      %v1858 = vmul.f32 %v1851, %v1857
      %s1859 = scalar_lea.vmem [#allocation15], 16
      %1860 = vst [vmem:[%s1859] sm:$0xff] %v1858
      %s1861 = scalar_lea.vmem [#allocation2], 24
      %v1862 = vld [vmem:[%s1861] sm:$0xff]
      %1863 = vmatprep.subr.bf16.mxu0 0
      %1864 = vmatpush1.bf16.msra.mxu0 %v1155
      %1865 = vmatprep.subr.bf16.mxu0 0
      %1866 = vmatpush1.bf16.msra.mxu0 %v1156
      %1867 = vmatprep.subr.bf16.mxu0 0
      %1868 = vmatpush1.bf16.msra.mxu0 %v1157
      %1869 = vmatprep.subr.bf16.mxu0 0
      %1870 = vmatpush1.bf16.msra.mxu0 %v1158
      %1871 = vmatprep.subr.bf16.mxu0 0
      %1872 = vmatpush1.bf16.msra.mxu0 %v1159
      %1873 = vmatprep.subr.bf16.mxu0 0
      %1874 = vmatpush1.bf16.msra.mxu0 %v1160
      %1875 = vmatprep.subr.bf16.mxu0 0
      %1876 = vmatpush1.bf16.msra.mxu0 %v1161
      %1877 = vmatprep.subr.bf16.mxu0 0
      %1878 = vmatpush1.bf16.msra.mxu0 %v1162
      %1879 = vmatprep.subr.bf16.mxu0 0
      %1880 = vmatpush1.bf16.msra.mxu0 0
      %1881 = vmatprep.subr.bf16.mxu0 0
      %1882 = vmatpush1.bf16.msra.mxu0 0
      %1883 = vmatprep.subr.bf16.mxu0 0
      %1884 = vmatpush1.bf16.msra.mxu0 0
      %1885 = vmatprep.subr.bf16.mxu0 0
      %1886 = vmatpush1.bf16.msra.mxu0 0
      %1887 = vmatprep.subr.bf16.mxu0 0
      %1888 = vmatpush1.bf16.msra.mxu0 0
      %1889 = vmatprep.subr.bf16.mxu0 0
      %1890 = vmatpush1.bf16.msra.mxu0 0
      %1891 = vmatprep.subr.bf16.mxu0 0
      %1892 = vmatpush1.bf16.msra.mxu0 0
      %1893 = vmatprep.subr.bf16.mxu0 0
      %1894 = vmatpush1.bf16.msra.mxu0 0
      %1895 = vmatprep.mubr.bf16.mxu0 0
      %1896 = vmatmul.mubr.bf16.gmra.mrb[0].mxu0 %v1748
      %v1897 = vpop.f32.mrb[0].mxu0
      %v1898 = vadd.f32 0.0, %v1897
      %v1899 = vpop.f32.mrb[0].mxu0
      %v1900 = vpop.f32.mrb[0].mxu0
      %v1901 = vpop.f32.mrb[0].mxu0
      %1902 = vdwg.mxu0
      %v1903 = vadd.f32 %v1862, %v1898
      %v1904 = vxor.u32 %v1903, 2147483648
      %v1905 = vmul.f32 %v1904, 1.442695
      %v1906 = vpow.pop %v1905
      %v1907 = vadd.f32 %v1906, 1.0
      %v1908 = vrcp.pop %v1907
      %v1909 = vmul.f32 1.0, %v1908
      %1910 = vrot.lane.b32.xlu0 %v1909, 64
      %v1911 = vpop.permute.xlu0 %1910
      %v1912 = vadd.f32 %v1898, %v125
      %v1913 = vmul.f32 %v1911, %v1912
      %v1914 = vadd.f32 %v1862, %v1913
      %v1915 = vtanh.pop %v1914
      %1916 = vrot.lane.b32.xlu0 %v1909, 32
      %v1917 = vpop.permute.xlu0 %1916
      %v1918 = vsub.f32 %v1742, %v1915
      %v1919 = vmul.f32 %v1917, %v1918
      %v1920 = vadd.f32 %v1915, %v1919
      %s1921 = smul.u32 3, 2
      %s1922 = smul.addr %s1921, 8
      %s1923 = scalar_lea.vmem [#allocation17], %s1922
      %v1924 = vld [vmem:[%s1923] sm:$0xff]
      %v1925 = vld [vmem:[%s1923 + $0x8] sm:$0xff]
      %v1926 = vpack.c.bf16 %v1920, %v1920
      %1927 = vmatprep.subr.bf16.mxu0 %v1284
      %1928 = vmatpush1.bf16.msra.mxu0 %v1283
      %1929 = vmatprep.subr.bf16.mxu0 %v1286
      %1930 = vmatpush1.bf16.msra.mxu0 %v1285
      %1931 = vmatprep.subr.bf16.mxu0 %v1288
      %1932 = vmatpush1.bf16.msra.mxu0 %v1287
      %1933 = vmatprep.subr.bf16.mxu0 %v1290
      %1934 = vmatpush1.bf16.msra.mxu0 %v1289
      %1935 = vmatprep.subr.bf16.mxu0 %v1292
      %1936 = vmatpush1.bf16.msra.mxu0 %v1291
      %1937 = vmatprep.subr.bf16.mxu0 %v1294
      %1938 = vmatpush1.bf16.msra.mxu0 %v1293
      %1939 = vmatprep.subr.bf16.mxu0 %v1296
      %1940 = vmatpush1.bf16.msra.mxu0 %v1295
      %1941 = vmatprep.subr.bf16.mxu0 %v1298
      %1942 = vmatpush1.bf16.msra.mxu0 %v1297
      %1943 = vmatprep.subr.bf16.mxu0 0
      %1944 = vmatpush1.bf16.msra.mxu0 0
      %1945 = vmatprep.subr.bf16.mxu0 0
      %1946 = vmatpush1.bf16.msra.mxu0 0
      %1947 = vmatprep.subr.bf16.mxu0 0
      %1948 = vmatpush1.bf16.msra.mxu0 0
      %1949 = vmatprep.subr.bf16.mxu0 0
      %1950 = vmatpush1.bf16.msra.mxu0 0
      %1951 = vmatprep.subr.bf16.mxu0 0
      %1952 = vmatpush1.bf16.msra.mxu0 0
      %1953 = vmatprep.subr.bf16.mxu0 0
      %1954 = vmatpush1.bf16.msra.mxu0 0
      %1955 = vmatprep.subr.bf16.mxu0 0
      %1956 = vmatpush1.bf16.msra.mxu0 0
      %1957 = vmatprep.subr.bf16.mxu0 0
      %1958 = vmatpush1.bf16.msra.mxu0 0
      %1959 = vmatprep.mubr.bf16.mxu0 0
      %1960 = vmatmul.mubr.bf16.gmra.mrb[0].mxu0 %v1926
      %v1961 = vpop.f32.mrb[0].mxu0
      %v1962 = vadd.f32 0.0, %v1961
      %v1963 = vpop.f32.mrb[0].mxu0
      %v1964 = vadd.f32 0.0, %v1963
      %v1965 = vpop.f32.mrb[0].mxu0
      %v1966 = vpop.f32.mrb[0].mxu0
      %1967 = vdwg.mxu0
      %v1968 = vadd.f32 %v1924, %v1962
      %v1969 = vadd.f32 %v1925, %v1964
      %v1970 = vpack.c.bf16 %v1858, %v1858
      %1971 = vmatprep.subr.bf16.mxu0 %v1407
      %1972 = vmatpush1.bf16.msra.mxu0 %v1406
      %1973 = vmatprep.subr.bf16.mxu0 %v1409
      %1974 = vmatpush1.bf16.msra.mxu0 %v1408
      %1975 = vmatprep.subr.bf16.mxu0 %v1411
      %1976 = vmatpush1.bf16.msra.mxu0 %v1410
      %1977 = vmatprep.subr.bf16.mxu0 %v1413
      %1978 = vmatpush1.bf16.msra.mxu0 %v1412
      %1979 = vmatprep.subr.bf16.mxu0 %v1415
      %1980 = vmatpush1.bf16.msra.mxu0 %v1414
      %1981 = vmatprep.subr.bf16.mxu0 %v1417
      %1982 = vmatpush1.bf16.msra.mxu0 %v1416
      %1983 = vmatprep.subr.bf16.mxu0 %v1419
      %1984 = vmatpush1.bf16.msra.mxu0 %v1418
      %1985 = vmatprep.subr.bf16.mxu0 %v1421
      %1986 = vmatpush1.bf16.msra.mxu0 %v1420
      %1987 = vmatprep.subr.bf16.mxu0 0
      %1988 = vmatpush1.bf16.msra.mxu0 0
      %1989 = vmatprep.subr.bf16.mxu0 0
      %1990 = vmatpush1.bf16.msra.mxu0 0
      %1991 = vmatprep.subr.bf16.mxu0 0
      %1992 = vmatpush1.bf16.msra.mxu0 0
      %1993 = vmatprep.subr.bf16.mxu0 0
      %1994 = vmatpush1.bf16.msra.mxu0 0
      %1995 = vmatprep.subr.bf16.mxu0 0
      %1996 = vmatpush1.bf16.msra.mxu0 0
      %1997 = vmatprep.subr.bf16.mxu0 0
      %1998 = vmatpush1.bf16.msra.mxu0 0
      %1999 = vmatprep.subr.bf16.mxu0 0
      %2000 = vmatpush1.bf16.msra.mxu0 0
      %2001 = vmatprep.subr.bf16.mxu0 0
      %2002 = vmatpush1.bf16.msra.mxu0 0
      %2003 = vmatprep.mubr.bf16.mxu0 0
      %2004 = vmatmul.mubr.bf16.gmra.mrb[0].mxu0 %v1970
      %v2005 = vpop.f32.mrb[0].mxu0
      %v2006 = vadd.f32 0.0, %v2005
      %v2007 = vpop.f32.mrb[0].mxu0
      %v2008 = vadd.f32 0.0, %v2007
      %v2009 = vpop.f32.mrb[0].mxu0
      %v2010 = vpop.f32.mrb[0].mxu0
      %2011 = vdwg.mxu0
      %v2012 = vadd.f32 %v1968, %v2006
      %v2013 = vadd.f32 %v1969, %v2008
      %v2014 = vxor.u32 %v2012, 2147483648
      %v2015 = vmul.f32 %v2014, 1.442695
      %v2016 = vpow.pop %v2015
      %v2017 = vadd.f32 %v2016, 1.0
      %v2018 = vrcp.pop %v2017
      %v2019 = vmul.f32 1.0, %v2018
      %v2020 = vxor.u32 %v2013, 2147483648
      %v2021 = vmul.f32 %v2020, 1.442695
      %v2022 = vpow.pop %v2021
      %v2023 = vadd.f32 %v2022, 1.0
      %v2024 = vrcp.pop %v2023
      %v2025 = vmul.f32 1.0, %v2024
      %2026 = vrot.lane.b32.xlu0 %v2019, 64
      %v2027 = vpop.permute.xlu0 %2026
      %2028 = vrot.lane.b32.xlu0 %v2025, 64
      %v2029 = vpop.permute.xlu0 %2028
      %v2030 = vmul.f32 %v2025, 2.0
      %v2031 = vsub.f32 %v2030, 1.0
      %v2032 = vmul.f32 %v2027, %v1856
      %v2033 = vmul.f32 %v2019, %v2031
      %v2034 = vadd.f32 %v2032, %v2033
      %v2035 = vtanh.pop %v2034
      %v2036 = vmul.f32 %v2029, %v2035
      %s2037 = scalar_lea.vmem [#allocation15], 24
      %2038 = vst [vmem:[%s2037] sm:$0xff] %v2036
      %s2039 = scalar_lea.vmem [#allocation2], 32
      %v2040 = vld [vmem:[%s2039] sm:$0xff]
      %2041 = vmatprep.subr.bf16.mxu0 0
      %2042 = vmatpush1.bf16.msra.mxu0 %v1155
      %2043 = vmatprep.subr.bf16.mxu0 0
      %2044 = vmatpush1.bf16.msra.mxu0 %v1156
      %2045 = vmatprep.subr.bf16.mxu0 0
      %2046 = vmatpush1.bf16.msra.mxu0 %v1157
      %2047 = vmatprep.subr.bf16.mxu0 0
      %2048 = vmatpush1.bf16.msra.mxu0 %v1158
      %2049 = vmatprep.subr.bf16.mxu0 0
      %2050 = vmatpush1.bf16.msra.mxu0 %v1159
      %2051 = vmatprep.subr.bf16.mxu0 0
      %2052 = vmatpush1.bf16.msra.mxu0 %v1160
      %2053 = vmatprep.subr.bf16.mxu0 0
      %2054 = vmatpush1.bf16.msra.mxu0 %v1161
      %2055 = vmatprep.subr.bf16.mxu0 0
      %2056 = vmatpush1.bf16.msra.mxu0 %v1162
      %2057 = vmatprep.subr.bf16.mxu0 0
      %2058 = vmatpush1.bf16.msra.mxu0 0
      %2059 = vmatprep.subr.bf16.mxu0 0
      %2060 = vmatpush1.bf16.msra.mxu0 0
      %2061 = vmatprep.subr.bf16.mxu0 0
      %2062 = vmatpush1.bf16.msra.mxu0 0
      %2063 = vmatprep.subr.bf16.mxu0 0
      %2064 = vmatpush1.bf16.msra.mxu0 0
      %2065 = vmatprep.subr.bf16.mxu0 0
      %2066 = vmatpush1.bf16.msra.mxu0 0
      %2067 = vmatprep.subr.bf16.mxu0 0
      %2068 = vmatpush1.bf16.msra.mxu0 0
      %2069 = vmatprep.subr.bf16.mxu0 0
      %2070 = vmatpush1.bf16.msra.mxu0 0
      %2071 = vmatprep.subr.bf16.mxu0 0
      %2072 = vmatpush1.bf16.msra.mxu0 0
      %2073 = vmatprep.mubr.bf16.mxu0 0
      %2074 = vmatmul.mubr.bf16.gmra.mrb[0].mxu0 %v1926
      %v2075 = vpop.f32.mrb[0].mxu0
      %v2076 = vadd.f32 0.0, %v2075
      %v2077 = vpop.f32.mrb[0].mxu0
      %v2078 = vpop.f32.mrb[0].mxu0
      %v2079 = vpop.f32.mrb[0].mxu0
      %2080 = vdwg.mxu0
      %v2081 = vadd.f32 %v2040, %v2076
      %v2082 = vxor.u32 %v2081, 2147483648
      %v2083 = vmul.f32 %v2082, 1.442695
      %v2084 = vpow.pop %v2083
      %v2085 = vadd.f32 %v2084, 1.0
      %v2086 = vrcp.pop %v2085
      %v2087 = vmul.f32 1.0, %v2086
      %2088 = vrot.lane.b32.xlu0 %v2087, 64
      %v2089 = vpop.permute.xlu0 %2088
      %v2090 = vadd.f32 %v2076, %v125
      %v2091 = vmul.f32 %v2089, %v2090
      %v2092 = vadd.f32 %v2040, %v2091
      %v2093 = vtanh.pop %v2092
      %2094 = vrot.lane.b32.xlu0 %v2087, 32
      %v2095 = vpop.permute.xlu0 %2094
      %v2096 = vsub.f32 %v1920, %v2093
      %v2097 = vmul.f32 %v2095, %v2096
      %v2098 = vadd.f32 %v2093, %v2097
      %s2099 = smul.u32 4, 2
      %s2100 = smul.addr %s2099, 8
      %s2101 = scalar_lea.vmem [#allocation17], %s2100
      %v2102 = vld [vmem:[%s2101] sm:$0xff]
      %v2103 = vld [vmem:[%s2101 + $0x8] sm:$0xff]
      %v2104 = vpack.c.bf16 %v2098, %v2098
      %2105 = vmatprep.subr.bf16.mxu0 %v1284
      %2106 = vmatpush1.bf16.msra.mxu0 %v1283
      %2107 = vmatprep.subr.bf16.mxu0 %v1286
      %2108 = vmatpush1.bf16.msra.mxu0 %v1285
      %2109 = vmatprep.subr.bf16.mxu0 %v1288
      %2110 = vmatpush1.bf16.msra.mxu0 %v1287
      %2111 = vmatprep.subr.bf16.mxu0 %v1290
      %2112 = vmatpush1.bf16.msra.mxu0 %v1289
      %2113 = vmatprep.subr.bf16.mxu0 %v1292
      %2114 = vmatpush1.bf16.msra.mxu0 %v1291
      %2115 = vmatprep.subr.bf16.mxu0 %v1294
      %2116 = vmatpush1.bf16.msra.mxu0 %v1293
      %2117 = vmatprep.subr.bf16.mxu0 %v1296
      %2118 = vmatpush1.bf16.msra.mxu0 %v1295
      %2119 = vmatprep.subr.bf16.mxu0 %v1298
      %2120 = vmatpush1.bf16.msra.mxu0 %v1297
      %2121 = vmatprep.subr.bf16.mxu0 0
      %2122 = vmatpush1.bf16.msra.mxu0 0
      %2123 = vmatprep.subr.bf16.mxu0 0
      %2124 = vmatpush1.bf16.msra.mxu0 0
      %2125 = vmatprep.subr.bf16.mxu0 0
      %2126 = vmatpush1.bf16.msra.mxu0 0
      %2127 = vmatprep.subr.bf16.mxu0 0
      %2128 = vmatpush1.bf16.msra.mxu0 0
      %2129 = vmatprep.subr.bf16.mxu0 0
      %2130 = vmatpush1.bf16.msra.mxu0 0
      %2131 = vmatprep.subr.bf16.mxu0 0
      %2132 = vmatpush1.bf16.msra.mxu0 0
      %2133 = vmatprep.subr.bf16.mxu0 0
      %2134 = vmatpush1.bf16.msra.mxu0 0
      %2135 = vmatprep.subr.bf16.mxu0 0
      %2136 = vmatpush1.bf16.msra.mxu0 0
      %2137 = vmatprep.mubr.bf16.mxu0 0
      %2138 = vmatmul.mubr.bf16.gmra.mrb[0].mxu0 %v2104
      %v2139 = vpop.f32.mrb[0].mxu0
      %v2140 = vadd.f32 0.0, %v2139
      %v2141 = vpop.f32.mrb[0].mxu0
      %v2142 = vadd.f32 0.0, %v2141
      %v2143 = vpop.f32.mrb[0].mxu0
      %v2144 = vpop.f32.mrb[0].mxu0
      %2145 = vdwg.mxu0
      %v2146 = vadd.f32 %v2102, %v2140
      %v2147 = vadd.f32 %v2103, %v2142
      %v2148 = vpack.c.bf16 %v2036, %v2036
      %2149 = vmatprep.subr.bf16.mxu0 %v1407
      %2150 = vmatpush1.bf16.msra.mxu0 %v1406
      %2151 = vmatprep.subr.bf16.mxu0 %v1409
      %2152 = vmatpush1.bf16.msra.mxu0 %v1408
      %2153 = vmatprep.subr.bf16.mxu0 %v1411
      %2154 = vmatpush1.bf16.msra.mxu0 %v1410
      %2155 = vmatprep.subr.bf16.mxu0 %v1413
      %2156 = vmatpush1.bf16.msra.mxu0 %v1412
      %2157 = vmatprep.subr.bf16.mxu0 %v1415
      %2158 = vmatpush1.bf16.msra.mxu0 %v1414
      %2159 = vmatprep.subr.bf16.mxu0 %v1417
      %2160 = vmatpush1.bf16.msra.mxu0 %v1416
      %2161 = vmatprep.subr.bf16.mxu0 %v1419
      %2162 = vmatpush1.bf16.msra.mxu0 %v1418
      %2163 = vmatprep.subr.bf16.mxu0 %v1421
      %2164 = vmatpush1.bf16.msra.mxu0 %v1420
      %2165 = vmatprep.subr.bf16.mxu0 0
      %2166 = vmatpush1.bf16.msra.mxu0 0
      %2167 = vmatprep.subr.bf16.mxu0 0
      %2168 = vmatpush1.bf16.msra.mxu0 0
      %2169 = vmatprep.subr.bf16.mxu0 0
      %2170 = vmatpush1.bf16.msra.mxu0 0
      %2171 = vmatprep.subr.bf16.mxu0 0
      %2172 = vmatpush1.bf16.msra.mxu0 0
      %2173 = vmatprep.subr.bf16.mxu0 0
      %2174 = vmatpush1.bf16.msra.mxu0 0
      %2175 = vmatprep.subr.bf16.mxu0 0
      %2176 = vmatpush1.bf16.msra.mxu0 0
      %2177 = vmatprep.subr.bf16.mxu0 0
      %2178 = vmatpush1.bf16.msra.mxu0 0
      %2179 = vmatprep.subr.bf16.mxu0 0
      %2180 = vmatpush1.bf16.msra.mxu0 0
      %2181 = vmatprep.mubr.bf16.mxu0 0
      %2182 = vmatmul.mubr.bf16.gmra.mrb[0].mxu0 %v2148
      %v2183 = vpop.f32.mrb[0].mxu0
      %v2184 = vadd.f32 0.0, %v2183
      %v2185 = vpop.f32.mrb[0].mxu0
      %v2186 = vadd.f32 0.0, %v2185
      %v2187 = vpop.f32.mrb[0].mxu0
      %v2188 = vpop.f32.mrb[0].mxu0
      %2189 = vdwg.mxu0
      %v2190 = vadd.f32 %v2146, %v2184
      %v2191 = vadd.f32 %v2147, %v2186
      %v2192 = vxor.u32 %v2190, 2147483648
      %v2193 = vmul.f32 %v2192, 1.442695
      %v2194 = vpow.pop %v2193
      %v2195 = vadd.f32 %v2194, 1.0
      %v2196 = vrcp.pop %v2195
      %v2197 = vmul.f32 1.0, %v2196
      %v2198 = vxor.u32 %v2191, 2147483648
      %v2199 = vmul.f32 %v2198, 1.442695
      %v2200 = vpow.pop %v2199
      %v2201 = vadd.f32 %v2200, 1.0
      %v2202 = vrcp.pop %v2201
      %v2203 = vmul.f32 1.0, %v2202
      %2204 = vrot.lane.b32.xlu0 %v2197, 64
      %v2205 = vpop.permute.xlu0 %2204
      %2206 = vrot.lane.b32.xlu0 %v2203, 64
      %v2207 = vpop.permute.xlu0 %2206
      %v2208 = vmul.f32 %v2203, 2.0
      %v2209 = vsub.f32 %v2208, 1.0
      %v2210 = vmul.f32 %v2205, %v2034
      %v2211 = vmul.f32 %v2197, %v2209
      %v2212 = vadd.f32 %v2210, %v2211
      %v2213 = vtanh.pop %v2212
      %v2214 = vmul.f32 %v2207, %v2213
      %s2215 = scalar_lea.vmem [#allocation15], 32
      %2216 = vst [vmem:[%s2215] sm:$0xff] %v2214
      %s2217 = scalar_lea.vmem [#allocation2], 40
      %v2218 = vld [vmem:[%s2217] sm:$0xff]
      %2219 = vmatprep.subr.bf16.mxu0 0
      %2220 = vmatpush1.bf16.msra.mxu0 %v1155
      %2221 = vmatprep.subr.bf16.mxu0 0
      %2222 = vmatpush1.bf16.msra.mxu0 %v1156
      %2223 = vmatprep.subr.bf16.mxu0 0
      %2224 = vmatpush1.bf16.msra.mxu0 %v1157
      %2225 = vmatprep.subr.bf16.mxu0 0
      %2226 = vmatpush1.bf16.msra.mxu0 %v1158
      %2227 = vmatprep.subr.bf16.mxu0 0
      %2228 = vmatpush1.bf16.msra.mxu0 %v1159
      %2229 = vmatprep.subr.bf16.mxu0 0
      %2230 = vmatpush1.bf16.msra.mxu0 %v1160
      %2231 = vmatprep.subr.bf16.mxu0 0
      %2232 = vmatpush1.bf16.msra.mxu0 %v1161
      %2233 = vmatprep.subr.bf16.mxu0 0
      %2234 = vmatpush1.bf16.msra.mxu0 %v1162
      %2235 = vmatprep.subr.bf16.mxu0 0
      %2236 = vmatpush1.bf16.msra.mxu0 0
      %2237 = vmatprep.subr.bf16.mxu0 0
      %2238 = vmatpush1.bf16.msra.mxu0 0
      %2239 = vmatprep.subr.bf16.mxu0 0
      %2240 = vmatpush1.bf16.msra.mxu0 0
      %2241 = vmatprep.subr.bf16.mxu0 0
      %2242 = vmatpush1.bf16.msra.mxu0 0
      %2243 = vmatprep.subr.bf16.mxu0 0
      %2244 = vmatpush1.bf16.msra.mxu0 0
      %2245 = vmatprep.subr.bf16.mxu0 0
      %2246 = vmatpush1.bf16.msra.mxu0 0
      %2247 = vmatprep.subr.bf16.mxu0 0
      %2248 = vmatpush1.bf16.msra.mxu0 0
      %2249 = vmatprep.subr.bf16.mxu0 0
      %2250 = vmatpush1.bf16.msra.mxu0 0
      %2251 = vmatprep.mubr.bf16.mxu0 0
      %2252 = vmatmul.mubr.bf16.gmra.mrb[0].mxu0 %v2104
      %v2253 = vpop.f32.mrb[0].mxu0
      %v2254 = vadd.f32 0.0, %v2253
      %v2255 = vpop.f32.mrb[0].mxu0
      %v2256 = vpop.f32.mrb[0].mxu0
      %v2257 = vpop.f32.mrb[0].mxu0
      %2258 = vdwg.mxu0
      %v2259 = vadd.f32 %v2218, %v2254
      %v2260 = vxor.u32 %v2259, 2147483648
      %v2261 = vmul.f32 %v2260, 1.442695
      %v2262 = vpow.pop %v2261
      %v2263 = vadd.f32 %v2262, 1.0
      %v2264 = vrcp.pop %v2263
      %v2265 = vmul.f32 1.0, %v2264
      %2266 = vrot.lane.b32.xlu0 %v2265, 64
      %v2267 = vpop.permute.xlu0 %2266
      %v2268 = vadd.f32 %v2254, %v125
      %v2269 = vmul.f32 %v2267, %v2268
      %v2270 = vadd.f32 %v2218, %v2269
      %v2271 = vtanh.pop %v2270
      %2272 = vrot.lane.b32.xlu0 %v2265, 32
      %v2273 = vpop.permute.xlu0 %2272
      %v2274 = vsub.f32 %v2098, %v2271
      %v2275 = vmul.f32 %v2273, %v2274
      %v2276 = vadd.f32 %v2271, %v2275
      %s2277 = smul.u32 5, 2
      %s2278 = smul.addr %s2277, 8
      %s2279 = scalar_lea.vmem [#allocation17], %s2278
      %v2280 = vld [vmem:[%s2279] sm:$0xff]
      %v2281 = vld [vmem:[%s2279 + $0x8] sm:$0xff]
      %v2282 = vpack.c.bf16 %v2276, %v2276
      %2283 = vmatprep.subr.bf16.mxu0 %v1284
      %2284 = vmatpush1.bf16.msra.mxu0 %v1283
      %2285 = vmatprep.subr.bf16.mxu0 %v1286
      %2286 = vmatpush1.bf16.msra.mxu0 %v1285
      %2287 = vmatprep.subr.bf16.mxu0 %v1288
      %2288 = vmatpush1.bf16.msra.mxu0 %v1287
      %2289 = vmatprep.subr.bf16.mxu0 %v1290
      %2290 = vmatpush1.bf16.msra.mxu0 %v1289
      %2291 = vmatprep.subr.bf16.mxu0 %v1292
      %2292 = vmatpush1.bf16.msra.mxu0 %v1291
      %2293 = vmatprep.subr.bf16.mxu0 %v1294
      %2294 = vmatpush1.bf16.msra.mxu0 %v1293
      %2295 = vmatprep.subr.bf16.mxu0 %v1296
      %2296 = vmatpush1.bf16.msra.mxu0 %v1295
      %2297 = vmatprep.subr.bf16.mxu0 %v1298
      %2298 = vmatpush1.bf16.msra.mxu0 %v1297
      %2299 = vmatprep.subr.bf16.mxu0 0
      %2300 = vmatpush1.bf16.msra.mxu0 0
      %2301 = vmatprep.subr.bf16.mxu0 0
      %2302 = vmatpush1.bf16.msra.mxu0 0
      %2303 = vmatprep.subr.bf16.mxu0 0
      %2304 = vmatpush1.bf16.msra.mxu0 0
      %2305 = vmatprep.subr.bf16.mxu0 0
      %2306 = vmatpush1.bf16.msra.mxu0 0
      %2307 = vmatprep.subr.bf16.mxu0 0
      %2308 = vmatpush1.bf16.msra.mxu0 0
      %2309 = vmatprep.subr.bf16.mxu0 0
      %2310 = vmatpush1.bf16.msra.mxu0 0
      %2311 = vmatprep.subr.bf16.mxu0 0
      %2312 = vmatpush1.bf16.msra.mxu0 0
      %2313 = vmatprep.subr.bf16.mxu0 0
      %2314 = vmatpush1.bf16.msra.mxu0 0
      %2315 = vmatprep.mubr.bf16.mxu0 0
      %2316 = vmatmul.mubr.bf16.gmra.mrb[0].mxu0 %v2282
      %v2317 = vpop.f32.mrb[0].mxu0
      %v2318 = vadd.f32 0.0, %v2317
      %v2319 = vpop.f32.mrb[0].mxu0
      %v2320 = vadd.f32 0.0, %v2319
      %v2321 = vpop.f32.mrb[0].mxu0
      %v2322 = vpop.f32.mrb[0].mxu0
      %2323 = vdwg.mxu0
      %v2324 = vadd.f32 %v2280, %v2318
      %v2325 = vadd.f32 %v2281, %v2320
      %v2326 = vpack.c.bf16 %v2214, %v2214
      %2327 = vmatprep.subr.bf16.mxu0 %v1407
      %2328 = vmatpush1.bf16.msra.mxu0 %v1406
      %2329 = vmatprep.subr.bf16.mxu0 %v1409
      %2330 = vmatpush1.bf16.msra.mxu0 %v1408
      %2331 = vmatprep.subr.bf16.mxu0 %v1411
      %2332 = vmatpush1.bf16.msra.mxu0 %v1410
      %2333 = vmatprep.subr.bf16.mxu0 %v1413
      %2334 = vmatpush1.bf16.msra.mxu0 %v1412
      %2335 = vmatprep.subr.bf16.mxu0 %v1415
      %2336 = vmatpush1.bf16.msra.mxu0 %v1414
      %2337 = vmatprep.subr.bf16.mxu0 %v1417
      %2338 = vmatpush1.bf16.msra.mxu0 %v1416
      %2339 = vmatprep.subr.bf16.mxu0 %v1419
      %2340 = vmatpush1.bf16.msra.mxu0 %v1418
      %2341 = vmatprep.subr.bf16.mxu0 %v1421
      %2342 = vmatpush1.bf16.msra.mxu0 %v1420
      %2343 = vmatprep.subr.bf16.mxu0 0
      %2344 = vmatpush1.bf16.msra.mxu0 0
      %2345 = vmatprep.subr.bf16.mxu0 0
      %2346 = vmatpush1.bf16.msra.mxu0 0
      %2347 = vmatprep.subr.bf16.mxu0 0
      %2348 = vmatpush1.bf16.msra.mxu0 0
      %2349 = vmatprep.subr.bf16.mxu0 0
      %2350 = vmatpush1.bf16.msra.mxu0 0
      %2351 = vmatprep.subr.bf16.mxu0 0
      %2352 = vmatpush1.bf16.msra.mxu0 0
      %2353 = vmatprep.subr.bf16.mxu0 0
      %2354 = vmatpush1.bf16.msra.mxu0 0
      %2355 = vmatprep.subr.bf16.mxu0 0
      %2356 = vmatpush1.bf16.msra.mxu0 0
      %2357 = vmatprep.subr.bf16.mxu0 0
      %2358 = vmatpush1.bf16.msra.mxu0 0
      %2359 = vmatprep.mubr.bf16.mxu0 0
      %2360 = vmatmul.mubr.bf16.gmra.mrb[0].mxu0 %v2326
      %v2361 = vpop.f32.mrb[0].mxu0
      %v2362 = vadd.f32 0.0, %v2361
      %v2363 = vpop.f32.mrb[0].mxu0
      %v2364 = vadd.f32 0.0, %v2363
      %v2365 = vpop.f32.mrb[0].mxu0
      %v2366 = vpop.f32.mrb[0].mxu0
      %2367 = vdwg.mxu0
      %v2368 = vadd.f32 %v2324, %v2362
      %v2369 = vadd.f32 %v2325, %v2364
      %v2370 = vxor.u32 %v2368, 2147483648
      %v2371 = vmul.f32 %v2370, 1.442695
      %v2372 = vpow.pop %v2371
      %v2373 = vadd.f32 %v2372, 1.0
      %v2374 = vrcp.pop %v2373
      %v2375 = vmul.f32 1.0, %v2374
      %v2376 = vxor.u32 %v2369, 2147483648
      %v2377 = vmul.f32 %v2376, 1.442695
      %v2378 = vpow.pop %v2377
      %v2379 = vadd.f32 %v2378, 1.0
      %v2380 = vrcp.pop %v2379
      %v2381 = vmul.f32 1.0, %v2380
      %2382 = vrot.lane.b32.xlu0 %v2375, 64
      %v2383 = vpop.permute.xlu0 %2382
      %2384 = vrot.lane.b32.xlu0 %v2381, 64
      %v2385 = vpop.permute.xlu0 %2384
      %v2386 = vmul.f32 %v2381, 2.0
      %v2387 = vsub.f32 %v2386, 1.0
      %v2388 = vmul.f32 %v2383, %v2212
      %v2389 = vmul.f32 %v2375, %v2387
      %v2390 = vadd.f32 %v2388, %v2389
      %v2391 = vtanh.pop %v2390
      %v2392 = vmul.f32 %v2385, %v2391
      %s2393 = scalar_lea.vmem [#allocation15], 40
      %2394 = vst [vmem:[%s2393] sm:$0xff] %v2392
      %s2395 = scalar_lea.vmem [#allocation2], 48
      %v2396 = vld [vmem:[%s2395] sm:$0xff]
      %2397 = vmatprep.subr.bf16.mxu0 0
      %2398 = vmatpush1.bf16.msra.mxu0 %v1155
      %2399 = vmatprep.subr.bf16.mxu0 0
      %2400 = vmatpush1.bf16.msra.mxu0 %v1156
      %2401 = vmatprep.subr.bf16.mxu0 0
      %2402 = vmatpush1.bf16.msra.mxu0 %v1157
      %2403 = vmatprep.subr.bf16.mxu0 0
      %2404 = vmatpush1.bf16.msra.mxu0 %v1158
      %2405 = vmatprep.subr.bf16.mxu0 0
      %2406 = vmatpush1.bf16.msra.mxu0 %v1159
      %2407 = vmatprep.subr.bf16.mxu0 0
      %2408 = vmatpush1.bf16.msra.mxu0 %v1160
      %2409 = vmatprep.subr.bf16.mxu0 0
      %2410 = vmatpush1.bf16.msra.mxu0 %v1161
      %2411 = vmatprep.subr.bf16.mxu0 0
      %2412 = vmatpush1.bf16.msra.mxu0 %v1162
      %2413 = vmatprep.subr.bf16.mxu0 0
      %2414 = vmatpush1.bf16.msra.mxu0 0
      %2415 = vmatprep.subr.bf16.mxu0 0
      %2416 = vmatpush1.bf16.msra.mxu0 0
      %2417 = vmatprep.subr.bf16.mxu0 0
      %2418 = vmatpush1.bf16.msra.mxu0 0
      %2419 = vmatprep.subr.bf16.mxu0 0
      %2420 = vmatpush1.bf16.msra.mxu0 0
      %2421 = vmatprep.subr.bf16.mxu0 0
      %2422 = vmatpush1.bf16.msra.mxu0 0
      %2423 = vmatprep.subr.bf16.mxu0 0
      %2424 = vmatpush1.bf16.msra.mxu0 0
      %2425 = vmatprep.subr.bf16.mxu0 0
      %2426 = vmatpush1.bf16.msra.mxu0 0
      %2427 = vmatprep.subr.bf16.mxu0 0
      %2428 = vmatpush1.bf16.msra.mxu0 0
      %2429 = vmatprep.mubr.bf16.mxu0 0
      %2430 = vmatmul.mubr.bf16.gmra.mrb[0].mxu0 %v2282
      %v2431 = vpop.f32.mrb[0].mxu0
      %v2432 = vadd.f32 0.0, %v2431
      %v2433 = vpop.f32.mrb[0].mxu0
      %v2434 = vpop.f32.mrb[0].mxu0
      %v2435 = vpop.f32.mrb[0].mxu0
      %2436 = vdwg.mxu0
      %v2437 = vadd.f32 %v2396, %v2432
      %v2438 = vxor.u32 %v2437, 2147483648
      %v2439 = vmul.f32 %v2438, 1.442695
      %v2440 = vpow.pop %v2439
      %v2441 = vadd.f32 %v2440, 1.0
      %v2442 = vrcp.pop %v2441
      %v2443 = vmul.f32 1.0, %v2442
      %2444 = vrot.lane.b32.xlu0 %v2443, 64
      %v2445 = vpop.permute.xlu0 %2444
      %v2446 = vadd.f32 %v2432, %v125
      %v2447 = vmul.f32 %v2445, %v2446
      %v2448 = vadd.f32 %v2396, %v2447
      %v2449 = vtanh.pop %v2448
      %2450 = vrot.lane.b32.xlu0 %v2443, 32
      %v2451 = vpop.permute.xlu0 %2450
      %v2452 = vsub.f32 %v2276, %v2449
      %v2453 = vmul.f32 %v2451, %v2452
      %v2454 = vadd.f32 %v2449, %v2453
      %s2455 = smul.u32 6, 2
      %s2456 = smul.addr %s2455, 8
      %s2457 = scalar_lea.vmem [#allocation17], %s2456
      %v2458 = vld [vmem:[%s2457] sm:$0xff]
      %v2459 = vld [vmem:[%s2457 + $0x8] sm:$0xff]
      %v2460 = vpack.c.bf16 %v2454, %v2454
      %2461 = vmatprep.subr.bf16.mxu0 %v1284
      %2462 = vmatpush1.bf16.msra.mxu0 %v1283
      %2463 = vmatprep.subr.bf16.mxu0 %v1286
      %2464 = vmatpush1.bf16.msra.mxu0 %v1285
      %2465 = vmatprep.subr.bf16.mxu0 %v1288
      %2466 = vmatpush1.bf16.msra.mxu0 %v1287
      %2467 = vmatprep.subr.bf16.mxu0 %v1290
      %2468 = vmatpush1.bf16.msra.mxu0 %v1289
      %2469 = vmatprep.subr.bf16.mxu0 %v1292
      %2470 = vmatpush1.bf16.msra.mxu0 %v1291
      %2471 = vmatprep.subr.bf16.mxu0 %v1294
      %2472 = vmatpush1.bf16.msra.mxu0 %v1293
      %2473 = vmatprep.subr.bf16.mxu0 %v1296
      %2474 = vmatpush1.bf16.msra.mxu0 %v1295
      %2475 = vmatprep.subr.bf16.mxu0 %v1298
      %2476 = vmatpush1.bf16.msra.mxu0 %v1297
      %2477 = vmatprep.subr.bf16.mxu0 0
      %2478 = vmatpush1.bf16.msra.mxu0 0
      %2479 = vmatprep.subr.bf16.mxu0 0
      %2480 = vmatpush1.bf16.msra.mxu0 0
      %2481 = vmatprep.subr.bf16.mxu0 0
      %2482 = vmatpush1.bf16.msra.mxu0 0
      %2483 = vmatprep.subr.bf16.mxu0 0
      %2484 = vmatpush1.bf16.msra.mxu0 0
      %2485 = vmatprep.subr.bf16.mxu0 0
      %2486 = vmatpush1.bf16.msra.mxu0 0
      %2487 = vmatprep.subr.bf16.mxu0 0
      %2488 = vmatpush1.bf16.msra.mxu0 0
      %2489 = vmatprep.subr.bf16.mxu0 0
      %2490 = vmatpush1.bf16.msra.mxu0 0
      %2491 = vmatprep.subr.bf16.mxu0 0
      %2492 = vmatpush1.bf16.msra.mxu0 0
      %2493 = vmatprep.mubr.bf16.mxu0 0
      %2494 = vmatmul.mubr.bf16.gmra.mrb[0].mxu0 %v2460
      %v2495 = vpop.f32.mrb[0].mxu0
      %v2496 = vadd.f32 0.0, %v2495
      %v2497 = vpop.f32.mrb[0].mxu0
      %v2498 = vadd.f32 0.0, %v2497
      %v2499 = vpop.f32.mrb[0].mxu0
      %v2500 = vpop.f32.mrb[0].mxu0
      %2501 = vdwg.mxu0
      %v2502 = vadd.f32 %v2458, %v2496
      %v2503 = vadd.f32 %v2459, %v2498
      %v2504 = vpack.c.bf16 %v2392, %v2392
      %2505 = vmatprep.subr.bf16.mxu0 %v1407
      %2506 = vmatpush1.bf16.msra.mxu0 %v1406
      %2507 = vmatprep.subr.bf16.mxu0 %v1409
      %2508 = vmatpush1.bf16.msra.mxu0 %v1408
      %2509 = vmatprep.subr.bf16.mxu0 %v1411
      %2510 = vmatpush1.bf16.msra.mxu0 %v1410
      %2511 = vmatprep.subr.bf16.mxu0 %v1413
      %2512 = vmatpush1.bf16.msra.mxu0 %v1412
      %2513 = vmatprep.subr.bf16.mxu0 %v1415
      %2514 = vmatpush1.bf16.msra.mxu0 %v1414
      %2515 = vmatprep.subr.bf16.mxu0 %v1417
      %2516 = vmatpush1.bf16.msra.mxu0 %v1416
      %2517 = vmatprep.subr.bf16.mxu0 %v1419
      %2518 = vmatpush1.bf16.msra.mxu0 %v1418
      %2519 = vmatprep.subr.bf16.mxu0 %v1421
      %2520 = vmatpush1.bf16.msra.mxu0 %v1420
      %2521 = vmatprep.subr.bf16.mxu0 0
      %2522 = vmatpush1.bf16.msra.mxu0 0
      %2523 = vmatprep.subr.bf16.mxu0 0
      %2524 = vmatpush1.bf16.msra.mxu0 0
      %2525 = vmatprep.subr.bf16.mxu0 0
      %2526 = vmatpush1.bf16.msra.mxu0 0
      %2527 = vmatprep.subr.bf16.mxu0 0
      %2528 = vmatpush1.bf16.msra.mxu0 0
      %2529 = vmatprep.subr.bf16.mxu0 0
      %2530 = vmatpush1.bf16.msra.mxu0 0
      %2531 = vmatprep.subr.bf16.mxu0 0
      %2532 = vmatpush1.bf16.msra.mxu0 0
      %2533 = vmatprep.subr.bf16.mxu0 0
      %2534 = vmatpush1.bf16.msra.mxu0 0
      %2535 = vmatprep.subr.bf16.mxu0 0
      %2536 = vmatpush1.bf16.msra.mxu0 0
      %2537 = vmatprep.mubr.bf16.mxu0 0
      %2538 = vmatmul.mubr.bf16.gmra.mrb[0].mxu0 %v2504
      %v2539 = vpop.f32.mrb[0].mxu0
      %v2540 = vadd.f32 0.0, %v2539
      %v2541 = vpop.f32.mrb[0].mxu0
      %v2542 = vadd.f32 0.0, %v2541
      %v2543 = vpop.f32.mrb[0].mxu0
      %v2544 = vpop.f32.mrb[0].mxu0
      %2545 = vdwg.mxu0
      %v2546 = vadd.f32 %v2502, %v2540
      %v2547 = vadd.f32 %v2503, %v2542
      %v2548 = vxor.u32 %v2546, 2147483648
      %v2549 = vmul.f32 %v2548, 1.442695
      %v2550 = vpow.pop %v2549
      %v2551 = vadd.f32 %v2550, 1.0
      %v2552 = vrcp.pop %v2551
      %v2553 = vmul.f32 1.0, %v2552
      %v2554 = vxor.u32 %v2547, 2147483648
      %v2555 = vmul.f32 %v2554, 1.442695
      %v2556 = vpow.pop %v2555
      %v2557 = vadd.f32 %v2556, 1.0
      %v2558 = vrcp.pop %v2557
      %v2559 = vmul.f32 1.0, %v2558
      %2560 = vrot.lane.b32.xlu0 %v2553, 64
      %v2561 = vpop.permute.xlu0 %2560
      %2562 = vrot.lane.b32.xlu0 %v2559, 64
      %v2563 = vpop.permute.xlu0 %2562
      %v2564 = vmul.f32 %v2559, 2.0
      %v2565 = vsub.f32 %v2564, 1.0
      %v2566 = vmul.f32 %v2561, %v2390
      %v2567 = vmul.f32 %v2553, %v2565
      %v2568 = vadd.f32 %v2566, %v2567
      %v2569 = vtanh.pop %v2568
      %v2570 = vmul.f32 %v2563, %v2569
      %s2571 = scalar_lea.vmem [#allocation15], 48
      %2572 = vst [vmem:[%s2571] sm:$0xff] %v2570
      %s2573 = scalar_lea.vmem [#allocation2], 56
      %v2574 = vld [vmem:[%s2573] sm:$0xff]
      %2575 = vmatprep.subr.bf16.mxu0 0
      %2576 = vmatpush1.bf16.msra.mxu0 %v1155
      %2577 = vmatprep.subr.bf16.mxu0 0
      %2578 = vmatpush1.bf16.msra.mxu0 %v1156
      %2579 = vmatprep.subr.bf16.mxu0 0
      %2580 = vmatpush1.bf16.msra.mxu0 %v1157
      %2581 = vmatprep.subr.bf16.mxu0 0
      %2582 = vmatpush1.bf16.msra.mxu0 %v1158
      %2583 = vmatprep.subr.bf16.mxu0 0
      %2584 = vmatpush1.bf16.msra.mxu0 %v1159
      %2585 = vmatprep.subr.bf16.mxu0 0
      %2586 = vmatpush1.bf16.msra.mxu0 %v1160
      %2587 = vmatprep.subr.bf16.mxu0 0
      %2588 = vmatpush1.bf16.msra.mxu0 %v1161
      %2589 = vmatprep.subr.bf16.mxu0 0
      %2590 = vmatpush1.bf16.msra.mxu0 %v1162
      %2591 = vmatprep.subr.bf16.mxu0 0
      %2592 = vmatpush1.bf16.msra.mxu0 0
      %2593 = vmatprep.subr.bf16.mxu0 0
      %2594 = vmatpush1.bf16.msra.mxu0 0
      %2595 = vmatprep.subr.bf16.mxu0 0
      %2596 = vmatpush1.bf16.msra.mxu0 0
      %2597 = vmatprep.subr.bf16.mxu0 0
      %2598 = vmatpush1.bf16.msra.mxu0 0
      %2599 = vmatprep.subr.bf16.mxu0 0
      %2600 = vmatpush1.bf16.msra.mxu0 0
      %2601 = vmatprep.subr.bf16.mxu0 0
      %2602 = vmatpush1.bf16.msra.mxu0 0
      %2603 = vmatprep.subr.bf16.mxu0 0
      %2604 = vmatpush1.bf16.msra.mxu0 0
      %2605 = vmatprep.subr.bf16.mxu0 0
      %2606 = vmatpush1.bf16.msra.mxu0 0
      %2607 = vmatprep.mubr.bf16.mxu0 0
      %2608 = vmatmul.mubr.bf16.gmra.mrb[0].mxu0 %v2460
      %v2609 = vpop.f32.mrb[0].mxu0
      %v2610 = vadd.f32 0.0, %v2609
      %v2611 = vpop.f32.mrb[0].mxu0
      %v2612 = vpop.f32.mrb[0].mxu0
      %v2613 = vpop.f32.mrb[0].mxu0
      %2614 = vdwg.mxu0
      %v2615 = vadd.f32 %v2574, %v2610
      %v2616 = vxor.u32 %v2615, 2147483648
      %v2617 = vmul.f32 %v2616, 1.442695
      %v2618 = vpow.pop %v2617
      %v2619 = vadd.f32 %v2618, 1.0
      %v2620 = vrcp.pop %v2619
      %v2621 = vmul.f32 1.0, %v2620
      %2622 = vrot.lane.b32.xlu0 %v2621, 64
      %v2623 = vpop.permute.xlu0 %2622
      %v2624 = vadd.f32 %v2610, %v125
      %v2625 = vmul.f32 %v2623, %v2624
      %v2626 = vadd.f32 %v2574, %v2625
      %v2627 = vtanh.pop %v2626
      %2628 = vrot.lane.b32.xlu0 %v2621, 32
      %v2629 = vpop.permute.xlu0 %2628
      %v2630 = vsub.f32 %v2454, %v2627
      %v2631 = vmul.f32 %v2629, %v2630
      %v2632 = vadd.f32 %v2627, %v2631
      %s2633 = smul.u32 7, 2
      %s2634 = smul.addr %s2633, 8
      %s2635 = scalar_lea.vmem [#allocation17], %s2634
      %v2636 = vld [vmem:[%s2635] sm:$0xff]
      %v2637 = vld [vmem:[%s2635 + $0x8] sm:$0xff]
      %v2638 = vpack.c.bf16 %v2632, %v2632
      %2639 = vmatprep.subr.bf16.mxu0 %v1284
      %2640 = vmatpush1.bf16.msra.mxu0 %v1283
      %2641 = vmatprep.subr.bf16.mxu0 %v1286
      %2642 = vmatpush1.bf16.msra.mxu0 %v1285
      %2643 = vmatprep.subr.bf16.mxu0 %v1288
      %2644 = vmatpush1.bf16.msra.mxu0 %v1287
      %2645 = vmatprep.subr.bf16.mxu0 %v1290
      %2646 = vmatpush1.bf16.msra.mxu0 %v1289
      %2647 = vmatprep.subr.bf16.mxu0 %v1292
      %2648 = vmatpush1.bf16.msra.mxu0 %v1291
      %2649 = vmatprep.subr.bf16.mxu0 %v1294
      %2650 = vmatpush1.bf16.msra.mxu0 %v1293
      %2651 = vmatprep.subr.bf16.mxu0 %v1296
      %2652 = vmatpush1.bf16.msra.mxu0 %v1295
      %2653 = vmatprep.subr.bf16.mxu0 %v1298
      %2654 = vmatpush1.bf16.msra.mxu0 %v1297
      %2655 = vmatprep.subr.bf16.mxu0 0
      %2656 = vmatpush1.bf16.msra.mxu0 0
      %2657 = vmatprep.subr.bf16.mxu0 0
      %2658 = vmatpush1.bf16.msra.mxu0 0
      %2659 = vmatprep.subr.bf16.mxu0 0
      %2660 = vmatpush1.bf16.msra.mxu0 0
      %2661 = vmatprep.subr.bf16.mxu0 0
      %2662 = vmatpush1.bf16.msra.mxu0 0
      %2663 = vmatprep.subr.bf16.mxu0 0
      %2664 = vmatpush1.bf16.msra.mxu0 0
      %2665 = vmatprep.subr.bf16.mxu0 0
      %2666 = vmatpush1.bf16.msra.mxu0 0
      %2667 = vmatprep.subr.bf16.mxu0 0
      %2668 = vmatpush1.bf16.msra.mxu0 0
      %2669 = vmatprep.subr.bf16.mxu0 0
      %2670 = vmatpush1.bf16.msra.mxu0 0
      %2671 = vmatprep.mubr.bf16.mxu0 0
      %2672 = vmatmul.mubr.bf16.gmra.mrb[0].mxu0 %v2638
      %v2673 = vpop.f32.mrb[0].mxu0
      %v2674 = vadd.f32 0.0, %v2673
      %v2675 = vpop.f32.mrb[0].mxu0
      %v2676 = vadd.f32 0.0, %v2675
      %v2677 = vpop.f32.mrb[0].mxu0
      %v2678 = vpop.f32.mrb[0].mxu0
      %2679 = vdwg.mxu0
      %v2680 = vadd.f32 %v2636, %v2674
      %v2681 = vadd.f32 %v2637, %v2676
      %v2682 = vpack.c.bf16 %v2570, %v2570
      %2683 = vmatprep.subr.bf16.mxu0 %v1407
      %2684 = vmatpush1.bf16.msra.mxu0 %v1406
      %2685 = vmatprep.subr.bf16.mxu0 %v1409
      %2686 = vmatpush1.bf16.msra.mxu0 %v1408
      %2687 = vmatprep.subr.bf16.mxu0 %v1411
      %2688 = vmatpush1.bf16.msra.mxu0 %v1410
      %2689 = vmatprep.subr.bf16.mxu0 %v1413
      %2690 = vmatpush1.bf16.msra.mxu0 %v1412
      %2691 = vmatprep.subr.bf16.mxu0 %v1415
      %2692 = vmatpush1.bf16.msra.mxu0 %v1414
      %2693 = vmatprep.subr.bf16.mxu0 %v1417
      %2694 = vmatpush1.bf16.msra.mxu0 %v1416
      %2695 = vmatprep.subr.bf16.mxu0 %v1419
      %2696 = vmatpush1.bf16.msra.mxu0 %v1418
      %2697 = vmatprep.subr.bf16.mxu0 %v1421
      %2698 = vmatpush1.bf16.msra.mxu0 %v1420
      %2699 = vmatprep.subr.bf16.mxu0 0
      %2700 = vmatpush1.bf16.msra.mxu0 0
      %2701 = vmatprep.subr.bf16.mxu0 0
      %2702 = vmatpush1.bf16.msra.mxu0 0
      %2703 = vmatprep.subr.bf16.mxu0 0
      %2704 = vmatpush1.bf16.msra.mxu0 0
      %2705 = vmatprep.subr.bf16.mxu0 0
      %2706 = vmatpush1.bf16.msra.mxu0 0
      %2707 = vmatprep.subr.bf16.mxu0 0
      %2708 = vmatpush1.bf16.msra.mxu0 0
      %2709 = vmatprep.subr.bf16.mxu0 0
      %2710 = vmatpush1.bf16.msra.mxu0 0
      %2711 = vmatprep.subr.bf16.mxu0 0
      %2712 = vmatpush1.bf16.msra.mxu0 0
      %2713 = vmatprep.subr.bf16.mxu0 0
      %2714 = vmatpush1.bf16.msra.mxu0 0
      %2715 = vmatprep.mubr.bf16.mxu0 0
      %2716 = vmatmul.mubr.bf16.gmra.mrb[0].mxu0 %v2682
      %v2717 = vpop.f32.mrb[0].mxu0
      %v2718 = vadd.f32 0.0, %v2717
      %v2719 = vpop.f32.mrb[0].mxu0
      %v2720 = vadd.f32 0.0, %v2719
      %v2721 = vpop.f32.mrb[0].mxu0
      %v2722 = vpop.f32.mrb[0].mxu0
      %2723 = vdwg.mxu0
      %v2724 = vadd.f32 %v2680, %v2718
      %v2725 = vadd.f32 %v2681, %v2720
      %v2726 = vxor.u32 %v2724, 2147483648
      %v2727 = vmul.f32 %v2726, 1.442695
      %v2728 = vpow.pop %v2727
      %v2729 = vadd.f32 %v2728, 1.0
      %v2730 = vrcp.pop %v2729
      %v2731 = vmul.f32 1.0, %v2730
      %v2732 = vxor.u32 %v2725, 2147483648
      %v2733 = vmul.f32 %v2732, 1.442695
      %v2734 = vpow.pop %v2733
      %v2735 = vadd.f32 %v2734, 1.0
      %v2736 = vrcp.pop %v2735
      %v2737 = vmul.f32 1.0, %v2736
      %2738 = vrot.lane.b32.xlu0 %v2731, 64
      %v2739 = vpop.permute.xlu0 %2738
      %2740 = vrot.lane.b32.xlu0 %v2737, 64
      %v2741 = vpop.permute.xlu0 %2740
      %v2742 = vmul.f32 %v2737, 2.0
      %v2743 = vsub.f32 %v2742, 1.0
      %v2744 = vmul.f32 %v2739, %v2568
      %v2745 = vmul.f32 %v2731, %v2743
      %v2746 = vadd.f32 %v2744, %v2745
      %v2747 = vtanh.pop %v2746
      %v2748 = vmul.f32 %v2741, %v2747
      %s2749 = scalar_lea.vmem [#allocation15], 56
      %2750 = vst [vmem:[%s2749] sm:$0xff] %v2748
    // Predicated region
    $region72: #{tpu_custom_call.1} parent=1 // pred_check
      _
    $region73: #{tpu_custom_call.1} parent=1 // pred_check_branch
      %2752 = sbr.rel (0) target = $region75
    $region74: #{tpu_custom_call.1} parent=1 // pred_region
      %s2754 = ssub.s32 1024, 1024
      %2755 = vsyncadd [#allocation6], %s2754
      %s2756 = sshll.u32 [#allocation15], 4
      %s2757 = int_to_ptr.vmem [resolvable:$true] %s2756
      %2762 = dma.vmem_to_hbm [thread:$0]  %s2757, 1024, %s11, [#allocation6], 128, 128, 8
    $region75: #{tpu_custom_call.1} parent=1 // pred_fallthru
      _
    // Predicated region
    $region76: #{tpu_custom_call.1} parent=1 // pred_check
      _
    $region77: #{tpu_custom_call.1} parent=1 // pred_check_branch
      %2764 = sbr.rel (0) target = $region79
    $region78: #{tpu_custom_call.1} parent=1 // pred_region
      %2765 = dma.done [#allocation6], 1024
    $region79: #{tpu_custom_call.1} parent=1 // pred_fallthru
      _
    %2766 = vsyncpa [#allocation5], 1
    %2767 = vsyncpa [#allocation8], 1
    %2768 = vsyncpa [#allocation11], 1
    %2769 = vsyncpa [#allocation14], 1
    %2770 = vsyncpa [#allocation6], 1

</llo_original>
